<compile_context>
chip_gen: v7x
topology: tpu7x:2x2x1
jax: 0.10.0
libtpu: 0.0.40
codegen_flags: <defaults>
</compile_context>

<pallas_src>
import functools
import math

import jax
import jax.numpy as jnp
import numpy as np
from jax.experimental import pallas as pl
from jax.experimental.pallas import tpu as pltpu

LN_EPS = 1e-5  # torch.nn.LayerNorm default


def _round_up(x, m):
    return ((x + m - 1) // m) * m


# --------------------------------------------------------------------------- kernel
def _layer_norm(y, gamma, beta):
    mean = jnp.mean(y, axis=-1, keepdims=True)
    var = jnp.mean(jnp.square(y - mean), axis=-1, keepdims=True)
    return (y - mean) * jax.lax.rsqrt(var + LN_EPS) * gamma + beta


def _mha_addnorm(q_src, kv_src, wq, bq, wkv, bkv, gamma, beta, attn_ref,
                 *, num_heads, head_dim):
    """MultiHeadAttention (no out-proj) + residual + LayerNorm for one q-tile.

    q_src : (tq, D) f32 query / residual rows
    kv_src: (Tk, D) f32 key/value source rows
    wq    : (D, D)  bf16 (1/sqrt(dh) pre-folded)    bq : (1, D)  f32 (scaled)
    wkv   : (D, 2D) bf16 (K | V packed)             bkv: (1, 2D) f32
    attn_ref: (1, H, tq, Tk_pad) output block; last dim zero-padded so every
              store is a dense, unmasked lane write.
    Returns the (tq, D) f32 AddNorm output.
    """
    H, dh = num_heads, head_dim
    tq, D = q_src.shape
    Tk = kv_src.shape[0]
    Tk_pad = attn_ref.shape[-1]
    pad = Tk_pad - Tk

    # Lane-dense (full-width) projections: two 2-D MXU matmuls instead of H
    # narrow per-head passes.  bf16 operands, f32 accumulation.
    q2 = jnp.dot(q_src.astype(jnp.bfloat16), wq,
                 preferred_element_type=jnp.float32) + bq            # (tq, D)
    kv2 = jnp.dot(kv_src.astype(jnp.bfloat16), wkv,
                  preferred_element_type=jnp.float32) + bkv          # (Tk, 2D)

    zpad = jnp.zeros((tq, pad), jnp.float32) if pad else None        # hoisted
    ctx_parts = []
    for h in range(H):                            # static unroll over heads
        qh = q2[:, h * dh:(h + 1) * dh].astype(jnp.bfloat16)         # (tq, dh)
        kh = kv2[:, h * dh:(h + 1) * dh].astype(jnp.bfloat16)        # (Tk, dh)
        vh = kv2[:, D + h * dh:D + (h + 1) * dh].astype(jnp.bfloat16)

        # scores (scale already folded into wq/bq), softmax in f32
        s = jax.lax.dot_general(qh, kh, (((1,), (1,)), ((), ())),
                                preferred_element_type=jnp.float32)  # (tq, Tk)
        s = s - jnp.max(s, axis=-1, keepdims=True)
        e = jnp.exp(s)
        attn = e * (1.0 / jnp.sum(e, axis=-1, keepdims=True))        # exact

        # dense lane-aligned store of the attention map (zero pad -> 128 mult)
        attn_ref[0, h] = attn if pad == 0 else jnp.concatenate(
            [attn, zpad], axis=-1)

        ctx_parts.append(jnp.dot(attn.astype(jnp.bfloat16), vh,
                                 preferred_element_type=jnp.float32))  # (tq, dh)

    # Head -> lane placement via concatenation (no one-hot MXU matmul).
    ctx = jnp.concatenate(ctx_parts, axis=-1)                         # (tq, D)
    return _layer_norm(ctx + q_src, gamma, beta)


def decoder_layer_kernel(xq_ref, xf_ref, mem_ref,
                         wq_s, bq_s, wkv_s, bkv_s, g_s, be_s,
                         wq_m, bq_m, wkv_m, bkv_m, g_m, be_m,
                         w1_ref, b1_ref, w2_ref, b2_ref, g_f, be_f,
                         out_ref, sattn_ref, mattn_ref,
                         *, num_heads, head_dim):
    xq = xq_ref[0]       # (tq, D)  query-tile rows of the decoder input
    xf = xf_ref[0]       # (Tq, D)  full decoder input (self-attn K/V source)
    mem = mem_ref[0]     # (Tk, D)  encoder memory

    # 1) self-attention + AddNorm
    x1 = _mha_addnorm(xq, xf, wq_s[...], bq_s[...], wkv_s[...], bkv_s[...],
                      g_s[...], be_s[...], sattn_ref,
                      num_heads=num_heads, head_dim=head_dim)
    # 2) memory attention + AddNorm
    x2 = _mha_addnorm(x1, mem, wq_m[...], bq_m[...], wkv_m[...], bkv_m[...],
                      g_m[...], be_m[...], mattn_ref,
                      num_heads=num_heads, head_dim=head_dim)
    # 3) position-wise feed-forward + AddNorm (dropout = identity in eval)
    h = jnp.dot(x2.astype(jnp.bfloat16), w1_ref[...],
                preferred_element_type=jnp.float32) + b1_ref[...]
    h = jnp.maximum(h, 0.0)
    y = jnp.dot(h.astype(jnp.bfloat16), w2_ref[...],
                preferred_element_type=jnp.float32) + b2_ref[...]
    out_ref[0] = _layer_norm(y + x2, g_f[...], be_f[...])


# --------------------------------------------------------------------------- wrapper
def speech_transformer_decoder_layer(inputs, memory, packed, num_heads,
                                     *, q_tile=128):
    B, Tq, D = inputs.shape
    Tk = memory.shape[1]
    H = num_heads
    dh = D // H
    sa, ma, ff = packed["self_attn"], packed["mem_attn"], packed["ff"]
    d_ff = ff["w1"].shape[1]

    tq = min(q_tile, Tq)               # query rows per grid step
    nq = pl.cdiv(Tq, tq)
    Tq_pad = _round_up(Tq, 128)        # lane-dense attention-map stores
    Tk_pad = _round_up(Tk, 128)

    args = (inputs, inputs, memory,
            sa["wq"], sa["bq"], sa["wkv"], sa["bkv"], sa["gamma"], sa["beta"],
            ma["wq"], ma["bq"], ma["wkv"], ma["bkv"], ma["gamma"], ma["beta"],
            ff["w1"], ff["b1"], ff["w2"], ff["b2"], ff["gamma"], ff["beta"])

    def _const_spec(a):
        nd = a.ndim
        return pl.BlockSpec(a.shape, lambda b, qi, _nd=nd: (0,) * _nd)

    in_specs = [pl.BlockSpec((1, tq, D), lambda b, qi: (b, qi, 0)),   # q tile
                pl.BlockSpec((1, Tq, D), lambda b, qi: (b, 0, 0)),    # full x
                pl.BlockSpec((1, Tk, D), lambda b, qi: (b, 0, 0))]    # memory
    in_specs += [_const_spec(a) for a in args[3:]]

    out_specs = (pl.BlockSpec((1, tq, D), lambda b, qi: (b, qi, 0)),
                 pl.BlockSpec((1, H, tq, Tq_pad), lambda b, qi: (b, 0, qi, 0)),
                 pl.BlockSpec((1, H, tq, Tk_pad), lambda b, qi: (b, 0, qi, 0)))
    out_shape = (jax.ShapeDtypeStruct((B, Tq, D), jnp.float32),
                 jax.ShapeDtypeStruct((B, H, Tq, Tq_pad), jnp.float32),
                 jax.ShapeDtypeStruct((B, H, Tq, Tk_pad), jnp.float32))

    # Advisory cost estimate (helps XLA schedule around the custom call).
    macs = B * (Tq * D * D + Tq * D * 2 * D + 2 * Tq * Tq * D        # self-attn
                + Tq * D * D + Tk * D * 2 * D + 2 * Tq * Tk * D      # mem-attn
                + 2 * Tq * D * d_ff)                                 # FFN
    w_bytes = sum(int(np.prod(a.shape)) * a.dtype.itemsize for a in args[3:])
    io_bytes = 4 * (2 * B * Tq * D + B * Tk * D
                    + B * H * Tq * (Tq_pad + Tk_pad))
    cost = pl.CostEstimate(flops=int(2 * macs),
                           transcendentals=int(B * H * Tq * (Tq + Tk)),
                           bytes_accessed=int(w_bytes + io_bytes))

    out, self_attn, memory_attn = pl.pallas_call(
        functools.partial(decoder_layer_kernel, num_heads=H, head_dim=dh),
        grid=(B, nq),
        in_specs=in_specs,
        out_specs=out_specs,
        out_shape=out_shape,
        compiler_params=pltpu.CompilerParams(
            # batch and query-tile axes are independent -> megacore sharding
            dimension_semantics=("parallel", "parallel"),
            # above the 16/32 MiB scoped defaults (v5e/v6e), below v7x's
            # 64 MiB physical; raise further for large production tiles.
            vmem_limit_bytes=48 * 1024 * 1024),
        cost_estimate=cost,
    )(*args)

    # PyTorch convention: (num_heads * batch, Tq, Tk), head-major; strip the
    # lane padding added for dense stores.
    self_attn = jnp.transpose(self_attn[:, :, :, :Tq],
                              (1, 0, 2, 3)).reshape(H * B, Tq, Tq)
    memory_attn = jnp.transpose(memory_attn[:, :, :, :Tk],
                                (1, 0, 2, 3)).reshape(H * B, Tq, Tk)
    return out, self_attn, memory_attn


# --------------------------------------------------------------------------- params
def init_params(key, d_model, d_ff):
    """PyTorch-layout parameters (nn.Linear weight = (out, in))."""
    ks = jax.random.split(key, 8)

    def lin_w(k, out_dim, in_dim):
        return jax.random.normal(k, (out_dim, in_dim), jnp.float32) * 0.05

    def vec(k, dim, scale=0.05):
        return jax.random.normal(k, (dim,), jnp.float32) * scale

    def attn_block(k):
        kk = jax.random.split(k, 8)
        return dict(
            wq=lin_w(kk[0], d_model, d_model), bq=vec(kk[1], d_model),
            wk=lin_w(kk[2], d_model, d_model), bk=vec(kk[3], d_model),
            wv=lin_w(kk[4], d_model, d_model), bv=vec(kk[5], d_model),
            gamma=1.0 + vec(kk[6], d_model, 0.1),
            beta=vec(kk[7], d_model, 0.1),
        )

    return dict(
        self_attn=attn_block(ks[0]),
        mem_attn=attn_block(ks[1]),
        ff=dict(
            w1=lin_w(ks[2], d_ff, d_model), b1=vec(ks[3], d_ff),
            w2=lin_w(ks[4], d_model, d_ff), b2=vec(ks[5], d_model),
            gamma=1.0 + vec(ks[6], d_model, 0.1),
            beta=vec(ks[7], d_model, 0.1),
        ),
    )


def pack_params(params, num_heads):
    """One-time conversion to the kernel layout (done at init, not per call):
       weights pre-transposed to (in, out); K|V packed into one matmul
       operand; 1/sqrt(dh) folded into Wq/bq; matmul weights cast to bf16
       (accumulation inside the kernel stays f32)."""
    H = num_heads
    D = params["self_attn"]["wq"].shape[0]
    dh = D // H
    scale = 1.0 / math.sqrt(dh)

    def pack_attn(p):
        return dict(
            wq=(p["wq"].T * scale).astype(jnp.bfloat16),                 # (D, D)
            bq=(p["bq"] * scale).reshape(1, D),
            wkv=jnp.concatenate([p["wk"].T, p["wv"].T],
                                axis=1).astype(jnp.bfloat16),            # (D, 2D)
            bkv=jnp.concatenate([p["bk"], p["bv"]]).reshape(1, 2 * D),
            gamma=p["gamma"].reshape(1, D),
            beta=p["beta"].reshape(1, D),
        )

    ffp = params["ff"]
    d_ff = ffp["w1"].shape[0]
    ff = dict(
        w1=ffp["w1"].T.astype(jnp.bfloat16), b1=ffp["b1"].reshape(1, d_ff),
        w2=ffp["w2"].T.astype(jnp.bfloat16), b2=ffp["b2"].reshape(1, D),
        gamma=ffp["gamma"].reshape(1, D), beta=ffp["beta"].reshape(1, D),
    )

    return dict(self_attn=pack_attn(params["self_attn"]),
                mem_attn=pack_attn(params["mem_attn"]),
                ff=ff)


# --------------------------------------------------------------------------- pure-JAX reference (f32)
def _ref_layernorm(y, gamma, beta):
    mean = y.mean(-1, keepdims=True)
    var = ((y - mean) ** 2).mean(-1, keepdims=True)
    return (y - mean) / jnp.sqrt(var + LN_EPS) * gamma + beta


def _ref_mha_addnorm(q, kv, p, H):
    B, Tq, D = q.shape
    Tk = kv.shape[1]
    dh = D // H
    Q = q @ p["wq"].T + p["bq"]
    K = kv @ p["wk"].T + p["bk"]
    V = kv @ p["wv"].T + p["bv"]
    Qh = Q.reshape(B, Tq, H, dh).transpose(2, 0, 1, 3)
    Kh = K.reshape(B, Tk, H, dh).transpose(2, 0, 1, 3)
    Vh = V.reshape(B, Tk, H, dh).transpose(2, 0, 1, 3)
    score = jnp.einsum("hbqd,hbkd->hbqk", Qh, Kh) / math.sqrt(dh)
    attn = jax.nn.softmax(score, axis=-1)
    ctx = jnp.einsum("hbqk,hbkd->hbqd", attn, Vh)
    ctx = ctx.transpose(1, 2, 0, 3).reshape(B, Tq, D)
    out = _ref_layernorm(ctx + q, p["gamma"], p["beta"])
    return out, attn.reshape(H * B, Tq, Tk)


def _ref_layer(inputs, memory, params, H):
    o, sa = _ref_mha_addnorm(inputs, inputs, params["self_attn"], H)
    o, ma = _ref_mha_addnorm(o, memory, params["mem_attn"], H)
    p = params["ff"]
    h = jnp.maximum(o @ p["w1"].T + p["b1"], 0.0)
    y = h @ p["w2"].T + p["b2"]
    o2 = _ref_layernorm(y + o, p["gamma"], p["beta"])
    return o2, sa, ma


# --------------------------------------------------------------------------- main
if __name__ == "__main__":
    d_model, num_heads, d_ff = 32, 4, 64
    B, T_dec, T_mem = 2, 8, 16

    key = jax.random.PRNGKey(0)
    k_in, k_mem, k_par = jax.random.split(key, 3)
    inputs = jax.random.normal(k_in, (B, T_dec, d_model), jnp.float32)
    memory = jax.random.normal(k_mem, (B, T_mem, d_model), jnp.float32)
    params = init_params(k_par, d_model, d_ff)
    packed = pack_params(params, num_heads)   # one-time packing, as at module init

    out, self_attn, memory_attn = speech_transformer_decoder_layer(
        inputs, memory, packed, num_heads)
    out = jax.block_until_ready(out)
    self_attn = jax.block_until_ready(self_attn)
    memory_attn = jax.block_until_ready(memory_attn)

    ref_out, ref_sa, ref_ma = _ref_layer(inputs, memory, params, num_heads)
    assert out.shape == (B, T_dec, d_model)
    assert self_attn.shape == (num_heads * B, T_dec, T_dec)
    assert memory_attn.shape == (num_heads * B, T_dec, T_mem)
    # Tolerance reflects bf16 matmul operands (f32 accumulation) vs f32 reference.
    np.testing.assert_allclose(np.asarray(out), np.asarray(ref_out),
                               rtol=2e-2, atol=3e-2)
    np.testing.assert_allclose(np.asarray(self_attn), np.asarray(ref_sa),
                               rtol=2e-2, atol=3e-2)
    np.testing.assert_allclose(np.asarray(memory_attn), np.asarray(ref_ma),
                               rtol=2e-2, atol=3e-2)

    print("KERNEL_OK")
</pallas_src>

<mosaic_0001>
module attributes {stable_mosaic.version = 11 : i64} {
  func.func @decoder_layer_kernel(%arg0: i32, %arg1: i32, %arg2: memref<1x8x32xf32, #tpu.memory_space<vmem>>, %arg3: memref<1x8x32xf32, #tpu.memory_space<vmem>>, %arg4: memref<1x16x32xf32, #tpu.memory_space<vmem>>, %arg5: memref<32x32xbf16, #tpu.memory_space<vmem>>, %arg6: memref<1x32xf32, #tpu.memory_space<vmem>>, %arg7: memref<32x64xbf16, #tpu.memory_space<vmem>>, %arg8: memref<1x64xf32, #tpu.memory_space<vmem>>, %arg9: memref<1x32xf32, #tpu.memory_space<vmem>>, %arg10: memref<1x32xf32, #tpu.memory_space<vmem>>, %arg11: memref<32x32xbf16, #tpu.memory_space<vmem>>, %arg12: memref<1x32xf32, #tpu.memory_space<vmem>>, %arg13: memref<32x64xbf16, #tpu.memory_space<vmem>>, %arg14: memref<1x64xf32, #tpu.memory_space<vmem>>, %arg15: memref<1x32xf32, #tpu.memory_space<vmem>>, %arg16: memref<1x32xf32, #tpu.memory_space<vmem>>, %arg17: memref<32x64xbf16, #tpu.memory_space<vmem>>, %arg18: memref<1x64xf32, #tpu.memory_space<vmem>>, %arg19: memref<64x32xbf16, #tpu.memory_space<vmem>>, %arg20: memref<1x32xf32, #tpu.memory_space<vmem>>, %arg21: memref<1x32xf32, #tpu.memory_space<vmem>>, %arg22: memref<1x32xf32, #tpu.memory_space<vmem>>, %arg23: memref<1x8x32xf32, #tpu.memory_space<vmem>>, %arg24: memref<1x4x8x128xf32, #tpu.memory_space<vmem>>, %arg25: memref<1x4x8x128xf32, #tpu.memory_space<vmem>>) attributes {dimension_semantics = [#tpu.dimension_semantics<parallel>, #tpu.dimension_semantics<parallel>], iteration_bounds = array<i64: 2, 1>, scalar_prefetch = 0 : i64, scratch_operands = 0 : i64, tpu.core_type = #tpu.core_type<tc>, window_params = [{transform_indices = @transform_0, window_bounds = array<i64: 1, 8, 32>}, {transform_indices = @transform_1, window_bounds = array<i64: 1, 8, 32>}, {transform_indices = @transform_2, window_bounds = array<i64: 1, 16, 32>}, {pipeline_mode = #tpu.pipeline_mode<synchronous>, transform_indices = @transform_3, window_bounds = array<i64: 32, 32>}, {pipeline_mode = #tpu.pipeline_mode<synchronous>, transform_indices = @transform_4, window_bounds = array<i64: 1, 32>}, {pipeline_mode = #tpu.pipeline_mode<synchronous>, transform_indices = @transform_5, window_bounds = array<i64: 32, 64>}, {pipeline_mode = #tpu.pipeline_mode<synchronous>, transform_indices = @transform_6, window_bounds = array<i64: 1, 64>}, {pipeline_mode = #tpu.pipeline_mode<synchronous>, transform_indices = @transform_7, window_bounds = array<i64: 1, 32>}, {pipeline_mode = #tpu.pipeline_mode<synchronous>, transform_indices = @transform_8, window_bounds = array<i64: 1, 32>}, {pipeline_mode = #tpu.pipeline_mode<synchronous>, transform_indices = @transform_9, window_bounds = array<i64: 32, 32>}, {pipeline_mode = #tpu.pipeline_mode<synchronous>, transform_indices = @transform_10, window_bounds = array<i64: 1, 32>}, {pipeline_mode = #tpu.pipeline_mode<synchronous>, transform_indices = @transform_11, window_bounds = array<i64: 32, 64>}, {pipeline_mode = #tpu.pipeline_mode<synchronous>, transform_indices = @transform_12, window_bounds = array<i64: 1, 64>}, {pipeline_mode = #tpu.pipeline_mode<synchronous>, transform_indices = @transform_13, window_bounds = array<i64: 1, 32>}, {pipeline_mode = #tpu.pipeline_mode<synchronous>, transform_indices = @transform_14, window_bounds = array<i64: 1, 32>}, {pipeline_mode = #tpu.pipeline_mode<synchronous>, transform_indices = @transform_15, window_bounds = array<i64: 32, 64>}, {pipeline_mode = #tpu.pipeline_mode<synchronous>, transform_indices = @transform_16, window_bounds = array<i64: 1, 64>}, {pipeline_mode = #tpu.pipeline_mode<synchronous>, transform_indices = @transform_17, window_bounds = array<i64: 64, 32>}, {pipeline_mode = #tpu.pipeline_mode<synchronous>, transform_indices = @transform_18, window_bounds = array<i64: 1, 32>}, {pipeline_mode = #tpu.pipeline_mode<synchronous>, transform_indices = @transform_19, window_bounds = array<i64: 1, 32>}, {pipeline_mode = #tpu.pipeline_mode<synchronous>, transform_indices = @transform_20, window_bounds = array<i64: 1, 32>}, {transform_indices = @transform_21, window_bounds = array<i64: 1, 8, 32>}, {transform_indices = @transform_22, window_bounds = array<i64: 1, 4, 8, 128>}, {transform_indices = @transform_23, window_bounds = array<i64: 1, 4, 8, 128>}]} {
    %c0 = arith.constant 0 : index
    %c0_0 = arith.constant 0 : index
    %c0_1 = arith.constant 0 : index
    %0 = vector.load %arg2[%c0, %c0_0, %c0_1] : memref<1x8x32xf32, #tpu.memory_space<vmem>>, vector<1x8x32xf32>
    %1 = vector.shape_cast %0 : vector<1x8x32xf32> to vector<8x32xf32>
    %c0_2 = arith.constant 0 : index
    %c0_3 = arith.constant 0 : index
    %c0_4 = arith.constant 0 : index
    %2 = vector.load %arg3[%c0_2, %c0_3, %c0_4] : memref<1x8x32xf32, #tpu.memory_space<vmem>>, vector<1x8x32xf32>
    %3 = vector.shape_cast %2 : vector<1x8x32xf32> to vector<8x32xf32>
    %c0_5 = arith.constant 0 : index
    %c0_6 = arith.constant 0 : index
    %c0_7 = arith.constant 0 : index
    %4 = vector.load %arg4[%c0_5, %c0_6, %c0_7] : memref<1x16x32xf32, #tpu.memory_space<vmem>>, vector<1x16x32xf32>
    %5 = vector.shape_cast %4 : vector<1x16x32xf32> to vector<16x32xf32>
    %c0_8 = arith.constant 0 : index
    %c0_9 = arith.constant 0 : index
    %6 = vector.load %arg5[%c0_8, %c0_9] : memref<32x32xbf16, #tpu.memory_space<vmem>>, vector<32x32xbf16>
    %c0_10 = arith.constant 0 : index
    %c0_11 = arith.constant 0 : index
    %7 = vector.load %arg6[%c0_10, %c0_11] : memref<1x32xf32, #tpu.memory_space<vmem>>, vector<1x32xf32>
    %c0_12 = arith.constant 0 : index
    %c0_13 = arith.constant 0 : index
    %8 = vector.load %arg7[%c0_12, %c0_13] : memref<32x64xbf16, #tpu.memory_space<vmem>>, vector<32x64xbf16>
    %c0_14 = arith.constant 0 : index
    %c0_15 = arith.constant 0 : index
    %9 = vector.load %arg8[%c0_14, %c0_15] : memref<1x64xf32, #tpu.memory_space<vmem>>, vector<1x64xf32>
    %c0_16 = arith.constant 0 : index
    %c0_17 = arith.constant 0 : index
    %10 = vector.load %arg9[%c0_16, %c0_17] : memref<1x32xf32, #tpu.memory_space<vmem>>, vector<1x32xf32>
    %c0_18 = arith.constant 0 : index
    %c0_19 = arith.constant 0 : index
    %11 = vector.load %arg10[%c0_18, %c0_19] : memref<1x32xf32, #tpu.memory_space<vmem>>, vector<1x32xf32>
    %12 = arith.truncf %1 : vector<8x32xf32> to vector<8x32xbf16>
    %cst = arith.constant dense<0.000000e+00> : vector<8x32xf32>
    %13 = tpu.matmul %12, %6, %cst {dimension_numbers = #tpu.dot_dimension_numbers<[1], [0], [0], [1], [0, 0, 1, 1], [], []>} : vector<8x32xbf16>, vector<32x32xbf16>, vector<8x32xf32> -> vector<8x32xf32>
    %14 = vector.broadcast %7 : vector<1x32xf32> to vector<8x32xf32>
    %15 = arith.addf %13, %14 : vector<8x32xf32>
    %16 = arith.truncf %3 : vector<8x32xf32> to vector<8x32xbf16>
    %cst_20 = arith.constant dense<0.000000e+00> : vector<8x64xf32>
    %17 = tpu.matmul %16, %8, %cst_20 {dimension_numbers = #tpu.dot_dimension_numbers<[1], [0], [0], [1], [0, 0, 1, 1], [], []>} : vector<8x32xbf16>, vector<32x64xbf16>, vector<8x64xf32> -> vector<8x64xf32>
    %18 = vector.broadcast %9 : vector<1x64xf32> to vector<8x64xf32>
    %19 = arith.addf %17, %18 : vector<8x64xf32>
    %cst_21 = arith.constant 0.000000e+00 : f32
    %20 = vector.broadcast %cst_21 : f32 to vector<8x120xf32>
    %21 = vector.extract_strided_slice %15 {offsets = [0, 0], sizes = [8, 8], strides = [1, 1]} : vector<8x32xf32> to vector<8x8xf32>
    %22 = arith.truncf %21 : vector<8x8xf32> to vector<8x8xbf16>
    %23 = vector.extract_strided_slice %19 {offsets = [0, 0], sizes = [8, 8], strides = [1, 1]} : vector<8x64xf32> to vector<8x8xf32>
    %24 = arith.truncf %23 : vector<8x8xf32> to vector<8x8xbf16>
    %25 = vector.extract_strided_slice %19 {offsets = [0, 32], sizes = [8, 8], strides = [1, 1]} : vector<8x64xf32> to vector<8x8xf32>
    %26 = arith.truncf %25 : vector<8x8xf32> to vector<8x8xbf16>
    %cst_22 = arith.constant dense<0.000000e+00> : vector<8x8xf32>
    %27 = tpu.matmul %22, %24, %cst_22 {dimension_numbers = #tpu.dot_dimension_numbers<[1], [1], [0], [0], [0, 0, 1, 0], [], []>} : vector<8x8xbf16>, vector<8x8xbf16>, vector<8x8xf32> -> vector<8x8xf32>
    %cst_23 = arith.constant dense<0xFF800000> : vector<8xf32>
    %28 = vector.multi_reduction <maximumf>, %27, %cst_23 [1] : vector<8x8xf32> to vector<8xf32>
    %29 = vector.shape_cast %28 : vector<8xf32> to vector<8x1xf32>
    %30 = vector.broadcast %29 : vector<8x1xf32> to vector<8x8xf32>
    %31 = arith.subf %27, %30 : vector<8x8xf32>
    %32 = math.exp %31 : vector<8x8xf32>
    %cst_24 = arith.constant dense<0.000000e+00> : vector<8xf32>
    %33 = vector.multi_reduction <add>, %32, %cst_24 [1] : vector<8x8xf32> to vector<8xf32>
    %34 = vector.shape_cast %33 : vector<8xf32> to vector<8x1xf32>
    %cst_25 = arith.constant 1.000000e+00 : f32
    %35 = vector.broadcast %cst_25 : f32 to vector<8x1xf32>
    %36 = arith.divf %35, %34 : vector<8x1xf32>
    %37 = vector.broadcast %36 : vector<8x1xf32> to vector<8x8xf32>
    %38 = arith.mulf %32, %37 : vector<8x8xf32>
    %39 = tpu.concatenate %38, %20 in 1 : vector<8x8xf32>, vector<8x120xf32> -> vector<8x128xf32>
    %c0_26 = arith.constant 0 : index
    %c0_27 = arith.constant 0 : index
    %c0_28 = arith.constant 0 : index
    %c0_29 = arith.constant 0 : index
    %40 = vector.load %arg24[%c0_26, %c0_27, %c0_28, %c0_29] : memref<1x4x8x128xf32, #tpu.memory_space<vmem>>, vector<1x1x8x128xf32>
    %41 = vector.shape_cast %40 : vector<1x1x8x128xf32> to vector<8x128xf32>
    %42 = vector.shape_cast %39 : vector<8x128xf32> to vector<1x1x8x128xf32>
    tpu.vector_store %arg24[%c0_26, %c0_27, %c0_28, %c0_29], %42 {strides = array<i32>} : memref<1x4x8x128xf32, #tpu.memory_space<vmem>>, vector<1x1x8x128xf32>,
    %43 = arith.truncf %38 : vector<8x8xf32> to vector<8x8xbf16>
    %cst_30 = arith.constant dense<0.000000e+00> : vector<8x8xf32>
    %44 = tpu.matmul %43, %26, %cst_30 {dimension_numbers = #tpu.dot_dimension_numbers<[1], [0], [0], [1], [0, 0, 1, 1], [], []>} : vector<8x8xbf16>, vector<8x8xbf16>, vector<8x8xf32> -> vector<8x8xf32>
    %45 = vector.extract_strided_slice %15 {offsets = [0, 8], sizes = [8, 8], strides = [1, 1]} : vector<8x32xf32> to vector<8x8xf32>
    %46 = arith.truncf %45 : vector<8x8xf32> to vector<8x8xbf16>
    %47 = vector.extract_strided_slice %19 {offsets = [0, 8], sizes = [8, 8], strides = [1, 1]} : vector<8x64xf32> to vector<8x8xf32>
    %48 = arith.truncf %47 : vector<8x8xf32> to vector<8x8xbf16>
    %49 = vector.extract_strided_slice %19 {offsets = [0, 40], sizes = [8, 8], strides = [1, 1]} : vector<8x64xf32> to vector<8x8xf32>
    %50 = arith.truncf %49 : vector<8x8xf32> to vector<8x8xbf16>
    %cst_31 = arith.constant dense<0.000000e+00> : vector<8x8xf32>
    %51 = tpu.matmul %46, %48, %cst_31 {dimension_numbers = #tpu.dot_dimension_numbers<[1], [1], [0], [0], [0, 0, 1, 0], [], []>} : vector<8x8xbf16>, vector<8x8xbf16>, vector<8x8xf32> -> vector<8x8xf32>
    %cst_32 = arith.constant dense<0xFF800000> : vector<8xf32>
    %52 = vector.multi_reduction <maximumf>, %51, %cst_32 [1] : vector<8x8xf32> to vector<8xf32>
    %53 = vector.shape_cast %52 : vector<8xf32> to vector<8x1xf32>
    %54 = vector.broadcast %53 : vector<8x1xf32> to vector<8x8xf32>
    %55 = arith.subf %51, %54 : vector<8x8xf32>
    %56 = math.exp %55 : vector<8x8xf32>
    %cst_33 = arith.constant dense<0.000000e+00> : vector<8xf32>
    %57 = vector.multi_reduction <add>, %56, %cst_33 [1] : vector<8x8xf32> to vector<8xf32>
    %58 = vector.shape_cast %57 : vector<8xf32> to vector<8x1xf32>
    %cst_34 = arith.constant 1.000000e+00 : f32
    %59 = vector.broadcast %cst_34 : f32 to vector<8x1xf32>
    %60 = arith.divf %59, %58 : vector<8x1xf32>
    %61 = vector.broadcast %60 : vector<8x1xf32> to vector<8x8xf32>
    %62 = arith.mulf %56, %61 : vector<8x8xf32>
    %63 = tpu.concatenate %62, %20 in 1 : vector<8x8xf32>, vector<8x120xf32> -> vector<8x128xf32>
    %c0_35 = arith.constant 0 : index
    %c1 = arith.constant 1 : index
    %c0_36 = arith.constant 0 : index
    %c0_37 = arith.constant 0 : index
    %64 = vector.load %arg24[%c0_35, %c1, %c0_36, %c0_37] : memref<1x4x8x128xf32, #tpu.memory_space<vmem>>, vector<1x1x8x128xf32>
    %65 = vector.shape_cast %64 : vector<1x1x8x128xf32> to vector<8x128xf32>
    %66 = vector.shape_cast %63 : vector<8x128xf32> to vector<1x1x8x128xf32>
    tpu.vector_store %arg24[%c0_35, %c1, %c0_36, %c0_37], %66 {strides = array<i32>} : memref<1x4x8x128xf32, #tpu.memory_space<vmem>>, vector<1x1x8x128xf32>,
    %67 = arith.truncf %62 : vector<8x8xf32> to vector<8x8xbf16>
    %cst_38 = arith.constant dense<0.000000e+00> : vector<8x8xf32>
    %68 = tpu.matmul %67, %50, %cst_38 {dimension_numbers = #tpu.dot_dimension_numbers<[1], [0], [0], [1], [0, 0, 1, 1], [], []>} : vector<8x8xbf16>, vector<8x8xbf16>, vector<8x8xf32> -> vector<8x8xf32>
    %69 = vector.extract_strided_slice %15 {offsets = [0, 16], sizes = [8, 8], strides = [1, 1]} : vector<8x32xf32> to vector<8x8xf32>
    %70 = arith.truncf %69 : vector<8x8xf32> to vector<8x8xbf16>
    %71 = vector.extract_strided_slice %19 {offsets = [0, 16], sizes = [8, 8], strides = [1, 1]} : vector<8x64xf32> to vector<8x8xf32>
    %72 = arith.truncf %71 : vector<8x8xf32> to vector<8x8xbf16>
    %73 = vector.extract_strided_slice %19 {offsets = [0, 48], sizes = [8, 8], strides = [1, 1]} : vector<8x64xf32> to vector<8x8xf32>
    %74 = arith.truncf %73 : vector<8x8xf32> to vector<8x8xbf16>
    %cst_39 = arith.constant dense<0.000000e+00> : vector<8x8xf32>
    %75 = tpu.matmul %70, %72, %cst_39 {dimension_numbers = #tpu.dot_dimension_numbers<[1], [1], [0], [0], [0, 0, 1, 0], [], []>} : vector<8x8xbf16>, vector<8x8xbf16>, vector<8x8xf32> -> vector<8x8xf32>
    %cst_40 = arith.constant dense<0xFF800000> : vector<8xf32>
    %76 = vector.multi_reduction <maximumf>, %75, %cst_40 [1] : vector<8x8xf32> to vector<8xf32>
    %77 = vector.shape_cast %76 : vector<8xf32> to vector<8x1xf32>
    %78 = vector.broadcast %77 : vector<8x1xf32> to vector<8x8xf32>
    %79 = arith.subf %75, %78 : vector<8x8xf32>
    %80 = math.exp %79 : vector<8x8xf32>
    %cst_41 = arith.constant dense<0.000000e+00> : vector<8xf32>
    %81 = vector.multi_reduction <add>, %80, %cst_41 [1] : vector<8x8xf32> to vector<8xf32>
    %82 = vector.shape_cast %81 : vector<8xf32> to vector<8x1xf32>
    %cst_42 = arith.constant 1.000000e+00 : f32
    %83 = vector.broadcast %cst_42 : f32 to vector<8x1xf32>
    %84 = arith.divf %83, %82 : vector<8x1xf32>
    %85 = vector.broadcast %84 : vector<8x1xf32> to vector<8x8xf32>
    %86 = arith.mulf %80, %85 : vector<8x8xf32>
    %87 = tpu.concatenate %86, %20 in 1 : vector<8x8xf32>, vector<8x120xf32> -> vector<8x128xf32>
    %c0_43 = arith.constant 0 : index
    %c2 = arith.constant 2 : index
    %c0_44 = arith.constant 0 : index
    %c0_45 = arith.constant 0 : index
    %88 = vector.load %arg24[%c0_43, %c2, %c0_44, %c0_45] : memref<1x4x8x128xf32, #tpu.memory_space<vmem>>, vector<1x1x8x128xf32>
    %89 = vector.shape_cast %88 : vector<1x1x8x128xf32> to vector<8x128xf32>
    %90 = vector.shape_cast %87 : vector<8x128xf32> to vector<1x1x8x128xf32>
    tpu.vector_store %arg24[%c0_43, %c2, %c0_44, %c0_45], %90 {strides = array<i32>} : memref<1x4x8x128xf32, #tpu.memory_space<vmem>>, vector<1x1x8x128xf32>,
    %91 = arith.truncf %86 : vector<8x8xf32> to vector<8x8xbf16>
    %cst_46 = arith.constant dense<0.000000e+00> : vector<8x8xf32>
    %92 = tpu.matmul %91, %74, %cst_46 {dimension_numbers = #tpu.dot_dimension_numbers<[1], [0], [0], [1], [0, 0, 1, 1], [], []>} : vector<8x8xbf16>, vector<8x8xbf16>, vector<8x8xf32> -> vector<8x8xf32>
    %93 = vector.extract_strided_slice %15 {offsets = [0, 24], sizes = [8, 8], strides = [1, 1]} : vector<8x32xf32> to vector<8x8xf32>
    %94 = arith.truncf %93 : vector<8x8xf32> to vector<8x8xbf16>
    %95 = vector.extract_strided_slice %19 {offsets = [0, 24], sizes = [8, 8], strides = [1, 1]} : vector<8x64xf32> to vector<8x8xf32>
    %96 = arith.truncf %95 : vector<8x8xf32> to vector<8x8xbf16>
    %97 = vector.extract_strided_slice %19 {offsets = [0, 56], sizes = [8, 8], strides = [1, 1]} : vector<8x64xf32> to vector<8x8xf32>
    %98 = arith.truncf %97 : vector<8x8xf32> to vector<8x8xbf16>
    %cst_47 = arith.constant dense<0.000000e+00> : vector<8x8xf32>
    %99 = tpu.matmul %94, %96, %cst_47 {dimension_numbers = #tpu.dot_dimension_numbers<[1], [1], [0], [0], [0, 0, 1, 0], [], []>} : vector<8x8xbf16>, vector<8x8xbf16>, vector<8x8xf32> -> vector<8x8xf32>
    %cst_48 = arith.constant dense<0xFF800000> : vector<8xf32>
    %100 = vector.multi_reduction <maximumf>, %99, %cst_48 [1] : vector<8x8xf32> to vector<8xf32>
    %101 = vector.shape_cast %100 : vector<8xf32> to vector<8x1xf32>
    %102 = vector.broadcast %101 : vector<8x1xf32> to vector<8x8xf32>
    %103 = arith.subf %99, %102 : vector<8x8xf32>
    %104 = math.exp %103 : vector<8x8xf32>
    %cst_49 = arith.constant dense<0.000000e+00> : vector<8xf32>
    %105 = vector.multi_reduction <add>, %104, %cst_49 [1] : vector<8x8xf32> to vector<8xf32>
    %106 = vector.shape_cast %105 : vector<8xf32> to vector<8x1xf32>
    %cst_50 = arith.constant 1.000000e+00 : f32
    %107 = vector.broadcast %cst_50 : f32 to vector<8x1xf32>
    %108 = arith.divf %107, %106 : vector<8x1xf32>
    %109 = vector.broadcast %108 : vector<8x1xf32> to vector<8x8xf32>
    %110 = arith.mulf %104, %109 : vector<8x8xf32>
    %111 = tpu.concatenate %110, %20 in 1 : vector<8x8xf32>, vector<8x120xf32> -> vector<8x128xf32>
    %c0_51 = arith.constant 0 : index
    %c3 = arith.constant 3 : index
    %c0_52 = arith.constant 0 : index
    %c0_53 = arith.constant 0 : index
    %112 = vector.load %arg24[%c0_51, %c3, %c0_52, %c0_53] : memref<1x4x8x128xf32, #tpu.memory_space<vmem>>, vector<1x1x8x128xf32>
    %113 = vector.shape_cast %112 : vector<1x1x8x128xf32> to vector<8x128xf32>
    %114 = vector.shape_cast %111 : vector<8x128xf32> to vector<1x1x8x128xf32>
    tpu.vector_store %arg24[%c0_51, %c3, %c0_52, %c0_53], %114 {strides = array<i32>} : memref<1x4x8x128xf32, #tpu.memory_space<vmem>>, vector<1x1x8x128xf32>,
    %115 = arith.truncf %110 : vector<8x8xf32> to vector<8x8xbf16>
    %cst_54 = arith.constant dense<0.000000e+00> : vector<8x8xf32>
    %116 = tpu.matmul %115, %98, %cst_54 {dimension_numbers = #tpu.dot_dimension_numbers<[1], [0], [0], [1], [0, 0, 1, 1], [], []>} : vector<8x8xbf16>, vector<8x8xbf16>, vector<8x8xf32> -> vector<8x8xf32>
    %117 = tpu.concatenate %44, %68, %92, %116 in 1 : vector<8x8xf32>, vector<8x8xf32>, vector<8x8xf32>, vector<8x8xf32> -> vector<8x32xf32>
    %118 = arith.addf %117, %1 : vector<8x32xf32>
    %cst_55 = arith.constant dense<0.000000e+00> : vector<8xf32>
    %119 = vector.multi_reduction <add>, %118, %cst_55 [1] : vector<8x32xf32> to vector<8xf32>
    %120 = vector.shape_cast %119 : vector<8xf32> to vector<8x1xf32>
    %cst_56 = arith.constant 3.200000e+01 : f32
    %121 = vector.broadcast %cst_56 : f32 to vector<8x1xf32>
    %122 = arith.divf %120, %121 : vector<8x1xf32>
    %123 = vector.broadcast %122 : vector<8x1xf32> to vector<8x32xf32>
    %124 = arith.subf %118, %123 : vector<8x32xf32>
    %125 = arith.mulf %124, %124 : vector<8x32xf32>
    %cst_57 = arith.constant dense<0.000000e+00> : vector<8xf32>
    %126 = vector.multi_reduction <add>, %125, %cst_57 [1] : vector<8x32xf32> to vector<8xf32>
    %127 = vector.shape_cast %126 : vector<8xf32> to vector<8x1xf32>
    %cst_58 = arith.constant 3.200000e+01 : f32
    %128 = vector.broadcast %cst_58 : f32 to vector<8x1xf32>
    %129 = arith.divf %127, %128 : vector<8x1xf32>
    %130 = vector.broadcast %122 : vector<8x1xf32> to vector<8x32xf32>
    %131 = arith.subf %118, %130 : vector<8x32xf32>
    %cst_59 = arith.constant 9.99999974E-6 : f32
    %132 = vector.broadcast %cst_59 : f32 to vector<8x1xf32>
    %133 = arith.addf %129, %132 : vector<8x1xf32>
    %134 = math.rsqrt %133 : vector<8x1xf32>
    %135 = vector.broadcast %134 : vector<8x1xf32> to vector<8x32xf32>
    %136 = arith.mulf %131, %135 : vector<8x32xf32>
    %137 = vector.broadcast %10 : vector<1x32xf32> to vector<8x32xf32>
    %138 = arith.mulf %136, %137 : vector<8x32xf32>
    %139 = vector.broadcast %11 : vector<1x32xf32> to vector<8x32xf32>
    %140 = arith.addf %138, %139 : vector<8x32xf32>
    %c0_60 = arith.constant 0 : index
    %c0_61 = arith.constant 0 : index
    %141 = vector.load %arg11[%c0_60, %c0_61] : memref<32x32xbf16, #tpu.memory_space<vmem>>, vector<32x32xbf16>
    %c0_62 = arith.constant 0 : index
    %c0_63 = arith.constant 0 : index
    %142 = vector.load %arg12[%c0_62, %c0_63] : memref<1x32xf32, #tpu.memory_space<vmem>>, vector<1x32xf32>
    %c0_64 = arith.constant 0 : index
    %c0_65 = arith.constant 0 : index
    %143 = vector.load %arg13[%c0_64, %c0_65] : memref<32x64xbf16, #tpu.memory_space<vmem>>, vector<32x64xbf16>
    %c0_66 = arith.constant 0 : index
    %c0_67 = arith.constant 0 : index
    %144 = vector.load %arg14[%c0_66, %c0_67] : memref<1x64xf32, #tpu.memory_space<vmem>>, vector<1x64xf32>
    %c0_68 = arith.constant 0 : index
    %c0_69 = arith.constant 0 : index
    %145 = vector.load %arg15[%c0_68, %c0_69] : memref<1x32xf32, #tpu.memory_space<vmem>>, vector<1x32xf32>
    %c0_70 = arith.constant 0 : index
    %c0_71 = arith.constant 0 : index
    %146 = vector.load %arg16[%c0_70, %c0_71] : memref<1x32xf32, #tpu.memory_space<vmem>>, vector<1x32xf32>
    %147 = arith.truncf %140 : vector<8x32xf32> to vector<8x32xbf16>
    %cst_72 = arith.constant dense<0.000000e+00> : vector<8x32xf32>
    %148 = tpu.matmul %147, %141, %cst_72 {dimension_numbers = #tpu.dot_dimension_numbers<[1], [0], [0], [1], [0, 0, 1, 1], [], []>} : vector<8x32xbf16>, vector<32x32xbf16>, vector<8x32xf32> -> vector<8x32xf32>
    %149 = vector.broadcast %142 : vector<1x32xf32> to vector<8x32xf32>
    %150 = arith.addf %148, %149 : vector<8x32xf32>
    %151 = arith.truncf %5 : vector<16x32xf32> to vector<16x32xbf16>
    %cst_73 = arith.constant dense<0.000000e+00> : vector<16x64xf32>
    %152 = tpu.matmul %151, %143, %cst_73 {dimension_numbers = #tpu.dot_dimension_numbers<[1], [0], [0], [1], [0, 0, 1, 1], [], []>} : vector<16x32xbf16>, vector<32x64xbf16>, vector<16x64xf32> -> vector<16x64xf32>
    %153 = vector.broadcast %144 : vector<1x64xf32> to vector<16x64xf32>
    %154 = arith.addf %152, %153 : vector<16x64xf32>
    %cst_74 = arith.constant 0.000000e+00 : f32
    %155 = vector.broadcast %cst_74 : f32 to vector<8x112xf32>
    %156 = vector.extract_strided_slice %150 {offsets = [0, 0], sizes = [8, 8], strides = [1, 1]} : vector<8x32xf32> to vector<8x8xf32>
    %157 = arith.truncf %156 : vector<8x8xf32> to vector<8x8xbf16>
    %158 = vector.extract_strided_slice %154 {offsets = [0, 0], sizes = [16, 8], strides = [1, 1]} : vector<16x64xf32> to vector<16x8xf32>
    %159 = arith.truncf %158 : vector<16x8xf32> to vector<16x8xbf16>
    %160 = vector.extract_strided_slice %154 {offsets = [0, 32], sizes = [16, 8], strides = [1, 1]} : vector<16x64xf32> to vector<16x8xf32>
    %161 = arith.truncf %160 : vector<16x8xf32> to vector<16x8xbf16>
    %cst_75 = arith.constant dense<0.000000e+00> : vector<8x16xf32>
    %162 = tpu.matmul %157, %159, %cst_75 {dimension_numbers = #tpu.dot_dimension_numbers<[1], [1], [0], [0], [0, 0, 1, 0], [], []>} : vector<8x8xbf16>, vector<16x8xbf16>, vector<8x16xf32> -> vector<8x16xf32>
    %cst_76 = arith.constant dense<0xFF800000> : vector<8xf32>
    %163 = vector.multi_reduction <maximumf>, %162, %cst_76 [1] : vector<8x16xf32> to vector<8xf32>
    %164 = vector.shape_cast %163 : vector<8xf32> to vector<8x1xf32>
    %165 = vector.broadcast %164 : vector<8x1xf32> to vector<8x16xf32>
    %166 = arith.subf %162, %165 : vector<8x16xf32>
    %167 = math.exp %166 : vector<8x16xf32>
    %cst_77 = arith.constant dense<0.000000e+00> : vector<8xf32>
    %168 = vector.multi_reduction <add>, %167, %cst_77 [1] : vector<8x16xf32> to vector<8xf32>
    %169 = vector.shape_cast %168 : vector<8xf32> to vector<8x1xf32>
    %cst_78 = arith.constant 1.000000e+00 : f32
    %170 = vector.broadcast %cst_78 : f32 to vector<8x1xf32>
    %171 = arith.divf %170, %169 : vector<8x1xf32>
    %172 = vector.broadcast %171 : vector<8x1xf32> to vector<8x16xf32>
    %173 = arith.mulf %167, %172 : vector<8x16xf32>
    %174 = tpu.concatenate %173, %155 in 1 : vector<8x16xf32>, vector<8x112xf32> -> vector<8x128xf32>
    %c0_79 = arith.constant 0 : index
    %c0_80 = arith.constant 0 : index
    %c0_81 = arith.constant 0 : index
    %c0_82 = arith.constant 0 : index
    %175 = vector.load %arg25[%c0_79, %c0_80, %c0_81, %c0_82] : memref<1x4x8x128xf32, #tpu.memory_space<vmem>>, vector<1x1x8x128xf32>
    %176 = vector.shape_cast %175 : vector<1x1x8x128xf32> to vector<8x128xf32>
    %177 = vector.shape_cast %174 : vector<8x128xf32> to vector<1x1x8x128xf32>
    tpu.vector_store %arg25[%c0_79, %c0_80, %c0_81, %c0_82], %177 {strides = array<i32>} : memref<1x4x8x128xf32, #tpu.memory_space<vmem>>, vector<1x1x8x128xf32>,
    %178 = arith.truncf %173 : vector<8x16xf32> to vector<8x16xbf16>
    %cst_83 = arith.constant dense<0.000000e+00> : vector<8x8xf32>
    %179 = tpu.matmul %178, %161, %cst_83 {dimension_numbers = #tpu.dot_dimension_numbers<[1], [0], [0], [1], [0, 0, 1, 1], [], []>} : vector<8x16xbf16>, vector<16x8xbf16>, vector<8x8xf32> -> vector<8x8xf32>
    %180 = vector.extract_strided_slice %150 {offsets = [0, 8], sizes = [8, 8], strides = [1, 1]} : vector<8x32xf32> to vector<8x8xf32>
    %181 = arith.truncf %180 : vector<8x8xf32> to vector<8x8xbf16>
    %182 = vector.extract_strided_slice %154 {offsets = [0, 8], sizes = [16, 8], strides = [1, 1]} : vector<16x64xf32> to vector<16x8xf32>
    %183 = arith.truncf %182 : vector<16x8xf32> to vector<16x8xbf16>
    %184 = vector.extract_strided_slice %154 {offsets = [0, 40], sizes = [16, 8], strides = [1, 1]} : vector<16x64xf32> to vector<16x8xf32>
    %185 = arith.truncf %184 : vector<16x8xf32> to vector<16x8xbf16>
    %cst_84 = arith.constant dense<0.000000e+00> : vector<8x16xf32>
    %186 = tpu.matmul %181, %183, %cst_84 {dimension_numbers = #tpu.dot_dimension_numbers<[1], [1], [0], [0], [0, 0, 1, 0], [], []>} : vector<8x8xbf16>, vector<16x8xbf16>, vector<8x16xf32> -> vector<8x16xf32>
    %cst_85 = arith.constant dense<0xFF800000> : vector<8xf32>
    %187 = vector.multi_reduction <maximumf>, %186, %cst_85 [1] : vector<8x16xf32> to vector<8xf32>
    %188 = vector.shape_cast %187 : vector<8xf32> to vector<8x1xf32>
    %189 = vector.broadcast %188 : vector<8x1xf32> to vector<8x16xf32>
    %190 = arith.subf %186, %189 : vector<8x16xf32>
    %191 = math.exp %190 : vector<8x16xf32>
    %cst_86 = arith.constant dense<0.000000e+00> : vector<8xf32>
    %192 = vector.multi_reduction <add>, %191, %cst_86 [1] : vector<8x16xf32> to vector<8xf32>
    %193 = vector.shape_cast %192 : vector<8xf32> to vector<8x1xf32>
    %cst_87 = arith.constant 1.000000e+00 : f32
    %194 = vector.broadcast %cst_87 : f32 to vector<8x1xf32>
    %195 = arith.divf %194, %193 : vector<8x1xf32>
    %196 = vector.broadcast %195 : vector<8x1xf32> to vector<8x16xf32>
    %197 = arith.mulf %191, %196 : vector<8x16xf32>
    %198 = tpu.concatenate %197, %155 in 1 : vector<8x16xf32>, vector<8x112xf32> -> vector<8x128xf32>
    %c0_88 = arith.constant 0 : index
    %c1_89 = arith.constant 1 : index
    %c0_90 = arith.constant 0 : index
    %c0_91 = arith.constant 0 : index
    %199 = vector.load %arg25[%c0_88, %c1_89, %c0_90, %c0_91] : memref<1x4x8x128xf32, #tpu.memory_space<vmem>>, vector<1x1x8x128xf32>
    %200 = vector.shape_cast %199 : vector<1x1x8x128xf32> to vector<8x128xf32>
    %201 = vector.shape_cast %198 : vector<8x128xf32> to vector<1x1x8x128xf32>
    tpu.vector_store %arg25[%c0_88, %c1_89, %c0_90, %c0_91], %201 {strides = array<i32>} : memref<1x4x8x128xf32, #tpu.memory_space<vmem>>, vector<1x1x8x128xf32>,
    %202 = arith.truncf %197 : vector<8x16xf32> to vector<8x16xbf16>
    %cst_92 = arith.constant dense<0.000000e+00> : vector<8x8xf32>
    %203 = tpu.matmul %202, %185, %cst_92 {dimension_numbers = #tpu.dot_dimension_numbers<[1], [0], [0], [1], [0, 0, 1, 1], [], []>} : vector<8x16xbf16>, vector<16x8xbf16>, vector<8x8xf32> -> vector<8x8xf32>
    %204 = vector.extract_strided_slice %150 {offsets = [0, 16], sizes = [8, 8], strides = [1, 1]} : vector<8x32xf32> to vector<8x8xf32>
    %205 = arith.truncf %204 : vector<8x8xf32> to vector<8x8xbf16>
    %206 = vector.extract_strided_slice %154 {offsets = [0, 16], sizes = [16, 8], strides = [1, 1]} : vector<16x64xf32> to vector<16x8xf32>
    %207 = arith.truncf %206 : vector<16x8xf32> to vector<16x8xbf16>
    %208 = vector.extract_strided_slice %154 {offsets = [0, 48], sizes = [16, 8], strides = [1, 1]} : vector<16x64xf32> to vector<16x8xf32>
    %209 = arith.truncf %208 : vector<16x8xf32> to vector<16x8xbf16>
    %cst_93 = arith.constant dense<0.000000e+00> : vector<8x16xf32>
    %210 = tpu.matmul %205, %207, %cst_93 {dimension_numbers = #tpu.dot_dimension_numbers<[1], [1], [0], [0], [0, 0, 1, 0], [], []>} : vector<8x8xbf16>, vector<16x8xbf16>, vector<8x16xf32> -> vector<8x16xf32>
    %cst_94 = arith.constant dense<0xFF800000> : vector<8xf32>
    %211 = vector.multi_reduction <maximumf>, %210, %cst_94 [1] : vector<8x16xf32> to vector<8xf32>
    %212 = vector.shape_cast %211 : vector<8xf32> to vector<8x1xf32>
    %213 = vector.broadcast %212 : vector<8x1xf32> to vector<8x16xf32>
    %214 = arith.subf %210, %213 : vector<8x16xf32>
    %215 = math.exp %214 : vector<8x16xf32>
    %cst_95 = arith.constant dense<0.000000e+00> : vector<8xf32>
    %216 = vector.multi_reduction <add>, %215, %cst_95 [1] : vector<8x16xf32> to vector<8xf32>
    %217 = vector.shape_cast %216 : vector<8xf32> to vector<8x1xf32>
    %cst_96 = arith.constant 1.000000e+00 : f32
    %218 = vector.broadcast %cst_96 : f32 to vector<8x1xf32>
    %219 = arith.divf %218, %217 : vector<8x1xf32>
    %220 = vector.broadcast %219 : vector<8x1xf32> to vector<8x16xf32>
    %221 = arith.mulf %215, %220 : vector<8x16xf32>
    %222 = tpu.concatenate %221, %155 in 1 : vector<8x16xf32>, vector<8x112xf32> -> vector<8x128xf32>
    %c0_97 = arith.constant 0 : index
    %c2_98 = arith.constant 2 : index
    %c0_99 = arith.constant 0 : index
    %c0_100 = arith.constant 0 : index
    %223 = vector.load %arg25[%c0_97, %c2_98, %c0_99, %c0_100] : memref<1x4x8x128xf32, #tpu.memory_space<vmem>>, vector<1x1x8x128xf32>
    %224 = vector.shape_cast %223 : vector<1x1x8x128xf32> to vector<8x128xf32>
    %225 = vector.shape_cast %222 : vector<8x128xf32> to vector<1x1x8x128xf32>
    tpu.vector_store %arg25[%c0_97, %c2_98, %c0_99, %c0_100], %225 {strides = array<i32>} : memref<1x4x8x128xf32, #tpu.memory_space<vmem>>, vector<1x1x8x128xf32>,
    %226 = arith.truncf %221 : vector<8x16xf32> to vector<8x16xbf16>
    %cst_101 = arith.constant dense<0.000000e+00> : vector<8x8xf32>
    %227 = tpu.matmul %226, %209, %cst_101 {dimension_numbers = #tpu.dot_dimension_numbers<[1], [0], [0], [1], [0, 0, 1, 1], [], []>} : vector<8x16xbf16>, vector<16x8xbf16>, vector<8x8xf32> -> vector<8x8xf32>
    %228 = vector.extract_strided_slice %150 {offsets = [0, 24], sizes = [8, 8], strides = [1, 1]} : vector<8x32xf32> to vector<8x8xf32>
    %229 = arith.truncf %228 : vector<8x8xf32> to vector<8x8xbf16>
    %230 = vector.extract_strided_slice %154 {offsets = [0, 24], sizes = [16, 8], strides = [1, 1]} : vector<16x64xf32> to vector<16x8xf32>
    %231 = arith.truncf %230 : vector<16x8xf32> to vector<16x8xbf16>
    %232 = vector.extract_strided_slice %154 {offsets = [0, 56], sizes = [16, 8], strides = [1, 1]} : vector<16x64xf32> to vector<16x8xf32>
    %233 = arith.truncf %232 : vector<16x8xf32> to vector<16x8xbf16>
    %cst_102 = arith.constant dense<0.000000e+00> : vector<8x16xf32>
    %234 = tpu.matmul %229, %231, %cst_102 {dimension_numbers = #tpu.dot_dimension_numbers<[1], [1], [0], [0], [0, 0, 1, 0], [], []>} : vector<8x8xbf16>, vector<16x8xbf16>, vector<8x16xf32> -> vector<8x16xf32>
    %cst_103 = arith.constant dense<0xFF800000> : vector<8xf32>
    %235 = vector.multi_reduction <maximumf>, %234, %cst_103 [1] : vector<8x16xf32> to vector<8xf32>
    %236 = vector.shape_cast %235 : vector<8xf32> to vector<8x1xf32>
    %237 = vector.broadcast %236 : vector<8x1xf32> to vector<8x16xf32>
    %238 = arith.subf %234, %237 : vector<8x16xf32>
    %239 = math.exp %238 : vector<8x16xf32>
    %cst_104 = arith.constant dense<0.000000e+00> : vector<8xf32>
    %240 = vector.multi_reduction <add>, %239, %cst_104 [1] : vector<8x16xf32> to vector<8xf32>
    %241 = vector.shape_cast %240 : vector<8xf32> to vector<8x1xf32>
    %cst_105 = arith.constant 1.000000e+00 : f32
    %242 = vector.broadcast %cst_105 : f32 to vector<8x1xf32>
    %243 = arith.divf %242, %241 : vector<8x1xf32>
    %244 = vector.broadcast %243 : vector<8x1xf32> to vector<8x16xf32>
    %245 = arith.mulf %239, %244 : vector<8x16xf32>
    %246 = tpu.concatenate %245, %155 in 1 : vector<8x16xf32>, vector<8x112xf32> -> vector<8x128xf32>
    %c0_106 = arith.constant 0 : index
    %c3_107 = arith.constant 3 : index
    %c0_108 = arith.constant 0 : index
    %c0_109 = arith.constant 0 : index
    %247 = vector.load %arg25[%c0_106, %c3_107, %c0_108, %c0_109] : memref<1x4x8x128xf32, #tpu.memory_space<vmem>>, vector<1x1x8x128xf32>
    %248 = vector.shape_cast %247 : vector<1x1x8x128xf32> to vector<8x128xf32>
    %249 = vector.shape_cast %246 : vector<8x128xf32> to vector<1x1x8x128xf32>
    tpu.vector_store %arg25[%c0_106, %c3_107, %c0_108, %c0_109], %249 {strides = array<i32>} : memref<1x4x8x128xf32, #tpu.memory_space<vmem>>, vector<1x1x8x128xf32>,
    %250 = arith.truncf %245 : vector<8x16xf32> to vector<8x16xbf16>
    %cst_110 = arith.constant dense<0.000000e+00> : vector<8x8xf32>
    %251 = tpu.matmul %250, %233, %cst_110 {dimension_numbers = #tpu.dot_dimension_numbers<[1], [0], [0], [1], [0, 0, 1, 1], [], []>} : vector<8x16xbf16>, vector<16x8xbf16>, vector<8x8xf32> -> vector<8x8xf32>
    %252 = tpu.concatenate %179, %203, %227, %251 in 1 : vector<8x8xf32>, vector<8x8xf32>, vector<8x8xf32>, vector<8x8xf32> -> vector<8x32xf32>
    %253 = arith.addf %252, %140 : vector<8x32xf32>
    %cst_111 = arith.constant dense<0.000000e+00> : vector<8xf32>
    %254 = vector.multi_reduction <add>, %253, %cst_111 [1] : vector<8x32xf32> to vector<8xf32>
    %255 = vector.shape_cast %254 : vector<8xf32> to vector<8x1xf32>
    %cst_112 = arith.constant 3.200000e+01 : f32
    %256 = vector.broadcast %cst_112 : f32 to vector<8x1xf32>
    %257 = arith.divf %255, %256 : vector<8x1xf32>
    %258 = vector.broadcast %257 : vector<8x1xf32> to vector<8x32xf32>
    %259 = arith.subf %253, %258 : vector<8x32xf32>
    %260 = arith.mulf %259, %259 : vector<8x32xf32>
    %cst_113 = arith.constant dense<0.000000e+00> : vector<8xf32>
    %261 = vector.multi_reduction <add>, %260, %cst_113 [1] : vector<8x32xf32> to vector<8xf32>
    %262 = vector.shape_cast %261 : vector<8xf32> to vector<8x1xf32>
    %cst_114 = arith.constant 3.200000e+01 : f32
    %263 = vector.broadcast %cst_114 : f32 to vector<8x1xf32>
    %264 = arith.divf %262, %263 : vector<8x1xf32>
    %265 = vector.broadcast %257 : vector<8x1xf32> to vector<8x32xf32>
    %266 = arith.subf %253, %265 : vector<8x32xf32>
    %cst_115 = arith.constant 9.99999974E-6 : f32
    %267 = vector.broadcast %cst_115 : f32 to vector<8x1xf32>
    %268 = arith.addf %264, %267 : vector<8x1xf32>
    %269 = math.rsqrt %268 : vector<8x1xf32>
    %270 = vector.broadcast %269 : vector<8x1xf32> to vector<8x32xf32>
    %271 = arith.mulf %266, %270 : vector<8x32xf32>
    %272 = vector.broadcast %145 : vector<1x32xf32> to vector<8x32xf32>
    %273 = arith.mulf %271, %272 : vector<8x32xf32>
    %274 = vector.broadcast %146 : vector<1x32xf32> to vector<8x32xf32>
    %275 = arith.addf %273, %274 : vector<8x32xf32>
    %276 = arith.truncf %275 : vector<8x32xf32> to vector<8x32xbf16>
    %c0_116 = arith.constant 0 : index
    %c0_117 = arith.constant 0 : index
    %277 = vector.load %arg17[%c0_116, %c0_117] : memref<32x64xbf16, #tpu.memory_space<vmem>>, vector<32x64xbf16>
    %cst_118 = arith.constant dense<0.000000e+00> : vector<8x64xf32>
    %278 = tpu.matmul %276, %277, %cst_118 {dimension_numbers = #tpu.dot_dimension_numbers<[1], [0], [0], [1], [0, 0, 1, 1], [], []>} : vector<8x32xbf16>, vector<32x64xbf16>, vector<8x64xf32> -> vector<8x64xf32>
    %c0_119 = arith.constant 0 : index
    %c0_120 = arith.constant 0 : index
    %279 = vector.load %arg18[%c0_119, %c0_120] : memref<1x64xf32, #tpu.memory_space<vmem>>, vector<1x64xf32>
    %280 = vector.broadcast %279 : vector<1x64xf32> to vector<8x64xf32>
    %281 = arith.addf %278, %280 : vector<8x64xf32>
    %cst_121 = arith.constant 0.000000e+00 : f32
    %282 = vector.broadcast %cst_121 : f32 to vector<8x64xf32>
    %283 = arith.maximumf %281, %282 : vector<8x64xf32>
    %284 = arith.truncf %283 : vector<8x64xf32> to vector<8x64xbf16>
    %c0_122 = arith.constant 0 : index
    %c0_123 = arith.constant 0 : index
    %285 = vector.load %arg19[%c0_122, %c0_123] : memref<64x32xbf16, #tpu.memory_space<vmem>>, vector<64x32xbf16>
    %cst_124 = arith.constant dense<0.000000e+00> : vector<8x32xf32>
    %286 = tpu.matmul %284, %285, %cst_124 {dimension_numbers = #tpu.dot_dimension_numbers<[1], [0], [0], [1], [0, 0, 1, 1], [], []>} : vector<8x64xbf16>, vector<64x32xbf16>, vector<8x32xf32> -> vector<8x32xf32>
    %c0_125 = arith.constant 0 : index
    %c0_126 = arith.constant 0 : index
    %287 = vector.load %arg20[%c0_125, %c0_126] : memref<1x32xf32, #tpu.memory_space<vmem>>, vector<1x32xf32>
    %288 = vector.broadcast %287 : vector<1x32xf32> to vector<8x32xf32>
    %289 = arith.addf %286, %288 : vector<8x32xf32>
    %290 = arith.addf %289, %275 : vector<8x32xf32>
    %c0_127 = arith.constant 0 : index
    %c0_128 = arith.constant 0 : index
    %291 = vector.load %arg21[%c0_127, %c0_128] : memref<1x32xf32, #tpu.memory_space<vmem>>, vector<1x32xf32>
    %c0_129 = arith.constant 0 : index
    %c0_130 = arith.constant 0 : index
    %292 = vector.load %arg22[%c0_129, %c0_130] : memref<1x32xf32, #tpu.memory_space<vmem>>, vector<1x32xf32>
    %cst_131 = arith.constant dense<0.000000e+00> : vector<8xf32>
    %293 = vector.multi_reduction <add>, %290, %cst_131 [1] : vector<8x32xf32> to vector<8xf32>
    %294 = vector.shape_cast %293 : vector<8xf32> to vector<8x1xf32>
    %cst_132 = arith.constant 3.200000e+01 : f32
    %295 = vector.broadcast %cst_132 : f32 to vector<8x1xf32>
    %296 = arith.divf %294, %295 : vector<8x1xf32>
    %297 = vector.broadcast %296 : vector<8x1xf32> to vector<8x32xf32>
    %298 = arith.subf %290, %297 : vector<8x32xf32>
    %299 = arith.mulf %298, %298 : vector<8x32xf32>
    %cst_133 = arith.constant dense<0.000000e+00> : vector<8xf32>
    %300 = vector.multi_reduction <add>, %299, %cst_133 [1] : vector<8x32xf32> to vector<8xf32>
    %301 = vector.shape_cast %300 : vector<8xf32> to vector<8x1xf32>
    %cst_134 = arith.constant 3.200000e+01 : f32
    %302 = vector.broadcast %cst_134 : f32 to vector<8x1xf32>
    %303 = arith.divf %301, %302 : vector<8x1xf32>
    %304 = vector.broadcast %296 : vector<8x1xf32> to vector<8x32xf32>
    %305 = arith.subf %290, %304 : vector<8x32xf32>
    %cst_135 = arith.constant 9.99999974E-6 : f32
    %306 = vector.broadcast %cst_135 : f32 to vector<8x1xf32>
    %307 = arith.addf %303, %306 : vector<8x1xf32>
    %308 = math.rsqrt %307 : vector<8x1xf32>
    %309 = vector.broadcast %308 : vector<8x1xf32> to vector<8x32xf32>
    %310 = arith.mulf %305, %309 : vector<8x32xf32>
    %311 = vector.broadcast %291 : vector<1x32xf32> to vector<8x32xf32>
    %312 = arith.mulf %310, %311 : vector<8x32xf32>
    %313 = vector.broadcast %292 : vector<1x32xf32> to vector<8x32xf32>
    %314 = arith.addf %312, %313 : vector<8x32xf32>
    %c0_136 = arith.constant 0 : index
    %c0_137 = arith.constant 0 : index
    %c0_138 = arith.constant 0 : index
    %315 = vector.load %arg23[%c0_136, %c0_137, %c0_138] : memref<1x8x32xf32, #tpu.memory_space<vmem>>, vector<1x8x32xf32>
    %316 = vector.shape_cast %315 : vector<1x8x32xf32> to vector<8x32xf32>
    %317 = vector.shape_cast %314 : vector<8x32xf32> to vector<1x8x32xf32>
    tpu.vector_store %arg23[%c0_136, %c0_137, %c0_138], %317 {strides = array<i32>} : memref<1x8x32xf32, #tpu.memory_space<vmem>>, vector<1x8x32xf32>,
    return
  }
  func.func @transform_0(%arg0: i32, %arg1: i32) -> (i32, i32, i32) {
    %c0_i32 = arith.constant 0 : i32
    %c0_i32_0 = arith.constant 0 : i32
    return %arg0, %arg1, %c0_i32 : i32, i32, i32
  }
  func.func @transform_1(%arg0: i32, %arg1: i32) -> (i32, i32, i32) {
    %c0_i32 = arith.constant 0 : i32
    %c0_i32_0 = arith.constant 0 : i32
    %c0_i32_1 = arith.constant 0 : i32
    return %arg0, %c0_i32, %c0_i32_0 : i32, i32, i32
  }
  func.func @transform_2(%arg0: i32, %arg1: i32) -> (i32, i32, i32) {
    %c0_i32 = arith.constant 0 : i32
    %c0_i32_0 = arith.constant 0 : i32
    %c0_i32_1 = arith.constant 0 : i32
    return %arg0, %c0_i32, %c0_i32_0 : i32, i32, i32
  }
  func.func @transform_3(%arg0: i32, %arg1: i32) -> (i32, i32) {
    %c0_i32 = arith.constant 0 : i32
    %c0_i32_0 = arith.constant 0 : i32
    %c0_i32_1 = arith.constant 0 : i32
    return %c0_i32, %c0_i32_0 : i32, i32
  }
  func.func @transform_4(%arg0: i32, %arg1: i32) -> (i32, i32) {
    %c0_i32 = arith.constant 0 : i32
    %c0_i32_0 = arith.constant 0 : i32
    %c0_i32_1 = arith.constant 0 : i32
    return %c0_i32, %c0_i32_0 : i32, i32
  }
  func.func @transform_5(%arg0: i32, %arg1: i32) -> (i32, i32) {
    %c0_i32 = arith.constant 0 : i32
    %c0_i32_0 = arith.constant 0 : i32
    %c0_i32_1 = arith.constant 0 : i32
    return %c0_i32, %c0_i32_0 : i32, i32
  }
  func.func @transform_6(%arg0: i32, %arg1: i32) -> (i32, i32) {
    %c0_i32 = arith.constant 0 : i32
    %c0_i32_0 = arith.constant 0 : i32
    %c0_i32_1 = arith.constant 0 : i32
    return %c0_i32, %c0_i32_0 : i32, i32
  }
  func.func @transform_7(%arg0: i32, %arg1: i32) -> (i32, i32) {
    %c0_i32 = arith.constant 0 : i32
    %c0_i32_0 = arith.constant 0 : i32
    %c0_i32_1 = arith.constant 0 : i32
    return %c0_i32, %c0_i32_0 : i32, i32
  }
  func.func @transform_8(%arg0: i32, %arg1: i32) -> (i32, i32) {
    %c0_i32 = arith.constant 0 : i32
    %c0_i32_0 = arith.constant 0 : i32
    %c0_i32_1 = arith.constant 0 : i32
    return %c0_i32, %c0_i32_0 : i32, i32
  }
  func.func @transform_9(%arg0: i32, %arg1: i32) -> (i32, i32) {
    %c0_i32 = arith.constant 0 : i32
    %c0_i32_0 = arith.constant 0 : i32
    %c0_i32_1 = arith.constant 0 : i32
    return %c0_i32, %c0_i32_0 : i32, i32
  }
  func.func @transform_10(%arg0: i32, %arg1: i32) -> (i32, i32) {
    %c0_i32 = arith.constant 0 : i32
    %c0_i32_0 = arith.constant 0 : i32
    %c0_i32_1 = arith.constant 0 : i32
    return %c0_i32, %c0_i32_0 : i32, i32
  }
  func.func @transform_11(%arg0: i32, %arg1: i32) -> (i32, i32) {
    %c0_i32 = arith.constant 0 : i32
    %c0_i32_0 = arith.constant 0 : i32
    %c0_i32_1 = arith.constant 0 : i32
    return %c0_i32, %c0_i32_0 : i32, i32
  }
  func.func @transform_12(%arg0: i32, %arg1: i32) -> (i32, i32) {
    %c0_i32 = arith.constant 0 : i32
    %c0_i32_0 = arith.constant 0 : i32
    %c0_i32_1 = arith.constant 0 : i32
    return %c0_i32, %c0_i32_0 : i32, i32
  }
  func.func @transform_13(%arg0: i32, %arg1: i32) -> (i32, i32) {
    %c0_i32 = arith.constant 0 : i32
    %c0_i32_0 = arith.constant 0 : i32
    %c0_i32_1 = arith.constant 0 : i32
    return %c0_i32, %c0_i32_0 : i32, i32
  }
  func.func @transform_14(%arg0: i32, %arg1: i32) -> (i32, i32) {
    %c0_i32 = arith.constant 0 : i32
    %c0_i32_0 = arith.constant 0 : i32
    %c0_i32_1 = arith.constant 0 : i32
    return %c0_i32, %c0_i32_0 : i32, i32
  }
  func.func @transform_15(%arg0: i32, %arg1: i32) -> (i32, i32) {
    %c0_i32 = arith.constant 0 : i32
    %c0_i32_0 = arith.constant 0 : i32
    %c0_i32_1 = arith.constant 0 : i32
    return %c0_i32, %c0_i32_0 : i32, i32
  }
  func.func @transform_16(%arg0: i32, %arg1: i32) -> (i32, i32) {
    %c0_i32 = arith.constant 0 : i32
    %c0_i32_0 = arith.constant 0 : i32
    %c0_i32_1 = arith.constant 0 : i32
    return %c0_i32, %c0_i32_0 : i32, i32
  }
  func.func @transform_17(%arg0: i32, %arg1: i32) -> (i32, i32) {
    %c0_i32 = arith.constant 0 : i32
    %c0_i32_0 = arith.constant 0 : i32
    %c0_i32_1 = arith.constant 0 : i32
    return %c0_i32, %c0_i32_0 : i32, i32
  }
  func.func @transform_18(%arg0: i32, %arg1: i32) -> (i32, i32) {
    %c0_i32 = arith.constant 0 : i32
    %c0_i32_0 = arith.constant 0 : i32
    %c0_i32_1 = arith.constant 0 : i32
    return %c0_i32, %c0_i32_0 : i32, i32
  }
  func.func @transform_19(%arg0: i32, %arg1: i32) -> (i32, i32) {
    %c0_i32 = arith.constant 0 : i32
    %c0_i32_0 = arith.constant 0 : i32
    %c0_i32_1 = arith.constant 0 : i32
    return %c0_i32, %c0_i32_0 : i32, i32
  }
  func.func @transform_20(%arg0: i32, %arg1: i32) -> (i32, i32) {
    %c0_i32 = arith.constant 0 : i32
    %c0_i32_0 = arith.constant 0 : i32
    %c0_i32_1 = arith.constant 0 : i32
    return %c0_i32, %c0_i32_0 : i32, i32
  }
  func.func @transform_21(%arg0: i32, %arg1: i32) -> (i32, i32, i32) {
    %c0_i32 = arith.constant 0 : i32
    %c0_i32_0 = arith.constant 0 : i32
    return %arg0, %arg1, %c0_i32 : i32, i32, i32
  }
  func.func @transform_22(%arg0: i32, %arg1: i32) -> (i32, i32, i32, i32) {
    %c0_i32 = arith.constant 0 : i32
    %c0_i32_0 = arith.constant 0 : i32
    %c0_i32_1 = arith.constant 0 : i32
    return %arg0, %c0_i32, %arg1, %c0_i32_0 : i32, i32, i32, i32
  }
  func.func @transform_23(%arg0: i32, %arg1: i32) -> (i32, i32, i32, i32) {
    %c0_i32 = arith.constant 0 : i32
    %c0_i32_0 = arith.constant 0 : i32
    %c0_i32_1 = arith.constant 0 : i32
    return %arg0, %c0_i32, %arg1, %c0_i32_0 : i32, i32, i32, i32
  }
}

</mosaic_0001>

<llo_original>
// kernel: tpu_custom_call.1
$region0: #{tpu_custom_call.1}
  #allocation0 [shape = 'u32[]', space=smem, size = 0x4, offset = 0x4, fixed_abs, tag = 'smem constant byte address 0x4 - core index']
  #allocation1 [shape = 'u32[144,128]{1,0:T(1,128)}', space=vmem, size = 0x12000, scoped, tag = 'internal scratch']
  %s0 = inlined_call_operand.vmem [shape: f32[2,8,32], index: 0, kind: input, shape index: {}]
  %s1 = inlined_call_operand.hbm [shape: f32[2,8,32], index: 1, kind: input, shape index: {}]
  %s2 = inlined_call_operand.vmem [shape: f32[2,16,32], index: 2, kind: input, shape index: {}]
  %s3 = inlined_call_operand.hbm [shape: bf16[32,32], index: 3, kind: input, shape index: {}]
  %s4 = inlined_call_operand.vmem [shape: f32[1,32], index: 4, kind: input, shape index: {}]
  %s5 = inlined_call_operand.hbm [shape: bf16[32,64], index: 5, kind: input, shape index: {}]
  %s6 = inlined_call_operand.hbm [shape: f32[1,64], index: 6, kind: input, shape index: {}]
  %s7 = inlined_call_operand.hbm [shape: f32[1,32], index: 7, kind: input, shape index: {}]
  %s8 = inlined_call_operand.hbm [shape: f32[1,32], index: 8, kind: input, shape index: {}]
  %s9 = inlined_call_operand.vmem [shape: bf16[32,32], index: 9, kind: input, shape index: {}]
  %s10 = inlined_call_operand.hbm [shape: f32[1,32], index: 10, kind: input, shape index: {}]
  %s11 = inlined_call_operand.hbm [shape: bf16[32,64], index: 11, kind: input, shape index: {}]
  %s12 = inlined_call_operand.hbm [shape: f32[1,64], index: 12, kind: input, shape index: {}]
  %s13 = inlined_call_operand.hbm [shape: f32[1,32], index: 13, kind: input, shape index: {}]
  %s14 = inlined_call_operand.vmem [shape: f32[1,32], index: 14, kind: input, shape index: {}]
  %s15 = inlined_call_operand.vmem [shape: bf16[32,64], index: 15, kind: input, shape index: {}]
  %s16 = inlined_call_operand.vmem [shape: f32[1,64], index: 16, kind: input, shape index: {}]
  %s17 = inlined_call_operand.vmem [shape: bf16[64,32], index: 17, kind: input, shape index: {}]
  %s18 = inlined_call_operand.vmem [shape: f32[1,32], index: 18, kind: input, shape index: {}]
  %s19 = inlined_call_operand.vmem [shape: f32[1,32], index: 19, kind: input, shape index: {}]
  %s20 = inlined_call_operand.vmem [shape: f32[1,32], index: 20, kind: input, shape index: {}]
  %s21 = inlined_call_operand.hbm [shape: f32[2,8,32], index: 21, kind: output, shape index: {0}]
  %s22 = inlined_call_operand.hbm [shape: f32[2,4,8,128], index: 22, kind: output, shape index: {1}]
  %s23 = inlined_call_operand.hbm [shape: f32[2,4,8,128], index: 23, kind: output, shape index: {2}]
  %24 = xla_tuple %s21, %s22, %s23
  %s25 = sld [smem:[#allocation0]]
  $region173: #{tpu_custom_call.1} parent=0
    _
  %s27 = ssub.s32 1, %s25
  %s28 = scalar_select 0, %s27, %s25
  $region1: #{tpu_custom_call.1} parent=0
    #allocation2 [shape = 'u8[8192]{0}', space=vmem, size = 0x2000, scoped, tag = 'input window, operand 1']
    #allocation3 [shape = 's32[2]{0}', space=sflag, size = 0x8, scoped, tag = 'scoped memory for tpu_custom_call.1']
    #allocation4 [shape = 's32[2]{0}', space=sflag, size = 0x8, scoped, tag = 'scoped memory for tpu_custom_call.1']
    #allocation5 [shape = 'u8[8192]{0}', space=vmem, size = 0x2000, scoped, tag = 'input window, operand 3, single buffered']
    #allocation6 [shape = 's32[1]{0}', space=sflag, size = 0x4, scoped, tag = 'scoped memory for tpu_custom_call.1']
    #allocation7 [shape = 'u8[8192]{0}', space=vmem, size = 0x2000, scoped, tag = 'input window, operand 5, single buffered']
    #allocation8 [shape = 'u8[512]{0}', space=vmem, size = 0x400, scoped, tag = 'input window, operand 6, single buffered']
    #allocation9 [shape = 's32[1]{0}', space=sflag, size = 0x4, scoped, tag = 'scoped memory for tpu_custom_call.1']
    #allocation10 [shape = 'u8[512]{0}', space=vmem, size = 0x400, scoped, tag = 'input window, operand 7, single buffered']
    #allocation11 [shape = 'u8[512]{0}', space=vmem, size = 0x400, scoped, tag = 'input window, operand 8, single buffered']
    #allocation12 [shape = 's32[1]{0}', space=sflag, size = 0x4, scoped, tag = 'scoped memory for tpu_custom_call.1']
    #allocation13 [shape = 'u8[512]{0}', space=vmem, size = 0x400, scoped, tag = 'input window, operand 10, single buffered']
    #allocation14 [shape = 'u8[8192]{0}', space=vmem, size = 0x2000, scoped, tag = 'input window, operand 11, single buffered']
    #allocation15 [shape = 's32[1]{0}', space=sflag, size = 0x4, scoped, tag = 'scoped memory for tpu_custom_call.1']
    #allocation16 [shape = 'u8[512]{0}', space=vmem, size = 0x400, scoped, tag = 'input window, operand 12, single buffered']
    #allocation17 [shape = 'u8[512]{0}', space=vmem, size = 0x400, scoped, tag = 'input window, operand 13, single buffered']
    #allocation18 [shape = 's32[1]{0}', space=sflag, size = 0x4, scoped, tag = 'scoped memory for tpu_custom_call.1']
    #allocation19 [shape = 'u8[8192]{0}', space=vmem, size = 0x2000, scoped, tag = 'output window, operand 0']
    #allocation20 [shape = 'u8[32768]{0}', space=vmem, size = 0x8000, scoped, tag = 'output window, operand 1']
    #allocation21 [shape = 's32[2]{0}', space=sflag, size = 0x8, scoped, tag = 'scoped memory for tpu_custom_call.1']
    #allocation22 [shape = 'u8[32768]{0}', space=vmem, size = 0x8000, scoped, tag = 'output window, operand 2']
    %29 = vsyncpa [#allocation3], 0
    %s30 = scalar_lea.sflag [#allocation3], 1
    %31 = vsyncpa %s30, 0
    %32 = vsyncpa [#allocation6], 0
    %33 = vsyncpa [#allocation9], 0
    %34 = vsyncpa [#allocation12], 0
    %35 = vsyncpa [#allocation15], 0
    %36 = vsyncpa [#allocation18], 0
    %37 = vsyncpa [#allocation4], 0
    %s38 = scalar_lea.sflag [#allocation4], 1
    %39 = vsyncpa %s38, 0
    %40 = vsyncpa [#allocation21], 0
    %s41 = scalar_lea.sflag [#allocation21], 1
    %42 = vsyncpa %s41, 0
    loop: start=0, step=1, limit=4
    $region2: #{tpu_custom_call.1} parent=1 // loop_pre_header
      _
    $region3: #{tpu_custom_call.1} parent=1 // loop_header
      %s44 = sphi 0, %s48
      %p45 = scmp.ge.s32.totalorder %s44, 4
      %s51 = sphi 0, %s63
      %s52 = sphi 0, %s59
      %s53 = sphi 0, %s51
      %s54 = sphi 0, %s52
      %s55 = sphi 0, %s53
      %s56 = sphi 0, %s54
      %s68 = sphi 0, %s70
      %s71 = sphi 0, %s68
      %s72 = sphi 0, %s71
      %s88 = sphi 0, %s72
      %s94 = sphi 0, %s96
      %s97 = sphi 0, %s94
      %s98 = sphi 0, %s97
      %s114 = sphi 0, %s98
      %s120 = sphi 0, %s122
      %s123 = sphi 0, %s120
      %s124 = sphi 0, %s123
      %s140 = sphi 0, %s124
      %s144 = sphi 0, %s144
      %s146 = sphi 0, %s144
      %s147 = sphi 0, %s146
      %s161 = sphi 0, %s147
      %s165 = sphi 0, %s165
      %s167 = sphi 0, %s165
      %s168 = sphi 0, %s167
      %s182 = sphi 0, %s168
      %s186 = sphi 0, %s186
      %s188 = sphi 0, %s186
      %s189 = sphi 0, %s188
      %s203 = sphi 0, %s189
      %s207 = sphi 0, %s207
      %s209 = sphi 0, %s207
      %s210 = sphi 0, %s209
      %s224 = sphi 0, %s210
      %s228 = sphi 0, %s228
      %s230 = sphi 0, %s228
      %s231 = sphi 0, %s230
      %s245 = sphi 0, %s231
      %s249 = sphi 0, %s249
      %s251 = sphi 0, %s249
      %s252 = sphi 0, %s251
      %s266 = sphi 0, %s252
      %s270 = sphi 0, %s270
      %s272 = sphi 0, %s270
      %s273 = sphi 0, %s272
      %s287 = sphi 0, %s273
      %s291 = sphi 0, %s291
      %s293 = sphi 0, %s291
      %s294 = sphi 0, %s293
      %s308 = sphi 0, %s294
      %s312 = sphi 0, %s312
      %s314 = sphi 0, %s312
      %s315 = sphi 0, %s314
      %s329 = sphi 0, %s315
      %s333 = sphi 0, %s333
      %s335 = sphi 0, %s333
      %s336 = sphi 0, %s335
      %s350 = sphi 0, %s336
      %s354 = sphi 0, %s354
      %s356 = sphi 0, %s354
      %s357 = sphi 0, %s356
      %s371 = sphi 0, %s357
      %s375 = sphi 0, %s375
      %s377 = sphi 0, %s375
      %s378 = sphi 0, %s377
      %s392 = sphi 0, %s378
      %s396 = sphi 0, %s396
      %s398 = sphi 0, %s396
      %s399 = sphi 0, %s398
      %s413 = sphi 0, %s399
      %s417 = sphi 0, %s417
      %s419 = sphi 0, %s417
      %s420 = sphi 0, %s419
      %s434 = sphi 0, %s420
      %s438 = sphi 0, %s438
      %s440 = sphi 0, %s438
      %s441 = sphi 0, %s440
      %s455 = sphi 0, %s441
      %s459 = sphi 0, %s459
      %s461 = sphi 0, %s459
      %s462 = sphi 0, %s461
      %s476 = sphi 0, %s462
      %s480 = sphi 0, %s480
      %s482 = sphi 0, %s480
      %s483 = sphi 0, %s482
      %s497 = sphi 0, %s483
      %s501 = sphi 0, %s501
      %s503 = sphi 0, %s501
      %s504 = sphi 0, %s503
      %s518 = sphi 0, %s504
      %s526 = sphi 0, %s528
      %s529 = sphi 0, %s526
      %s530 = sphi 0, %s529
      %s546 = sphi 0, %s530
      %s554 = sphi 0, %s556
      %s557 = sphi 0, %s554
      %s558 = sphi 0, %s557
      %s574 = sphi 0, %s558
      %s582 = sphi 0, %s584
      %s585 = sphi 0, %s582
      %s586 = sphi 0, %s585
      %s602 = sphi 0, %s586
    $region4: #{tpu_custom_call.1} parent=1 // loop_header_branch
      %47 = sbr.rel (%p45) target = $region8
    $region5: #{tpu_custom_call.1} parent=1 // loop_body
      %s49 = ssub.s32 %s44, 1
      %s50 = ssub.s32 %s44, 2
      %s57 = sadd.s32 1, %s52
      %p58 = scmp.ge.s32.totalorder %s57, 1
      %s59 = scalar_select %p58, 0, %s57
      %s60 = sadd.s32 1, %s51
      %s61 = scalar_select %p58, %s60, %s51
      %p62 = scmp.ge.s32.totalorder %s61, 2
      %s63 = scalar_select %p62, 0, %s61
      %s64 = ssub.s32 %s51, %s63
      %s65 = ssub.s32 %s52, %s59
      %s66 = sor.u32 %s64, %s65
      %p67 = scmp.eq.s32.totalorder %s66, 0
      %s69 = sadd.s32 %s68, 1
      %s70 = scalar_select %p67, %s68, %s69
      %p73 = pneg %p67
      %p74 = scmp.eq.s32.totalorder %s44, 1
      %p75 = por %p73, %p74
      %p76 = scmp.ne.s32.totalorder %s68, %s71
      %p77 = scmp.eq.s32.totalorder %s44, 0
      %p78 = por %p76, %p77
      %p79 = scmp.ne.s32.totalorder %s68, %s71
      %p80 = scmp.eq.s32.totalorder %s49, 1
      %p81 = por %p79, %p80
      %p82 = scmp.ne.s32.totalorder %s71, %s72
      %p83 = scmp.eq.s32.totalorder %s49, 0
      %p84 = por %p82, %p83
      %p85 = scmp.ne.s32.totalorder %s71, %s72
      %p86 = scmp.eq.s32.totalorder %s50, 1
      %p87 = por %p85, %p86
      %p89 = scmp.ne.s32.totalorder %s72, %s88
      %p90 = scmp.eq.s32.totalorder %s50, 0
      %p91 = por %p89, %p90
      %s92 = ssub.s32 %s51, %s63
      %p93 = scmp.eq.s32.totalorder %s92, 0
      %s95 = sadd.s32 %s94, 1
      %s96 = scalar_select %p93, %s94, %s95
      %p99 = pneg %p93
      %p100 = scmp.eq.s32.totalorder %s44, 1
      %p101 = por %p99, %p100
      %p102 = scmp.ne.s32.totalorder %s94, %s97
      %p103 = scmp.eq.s32.totalorder %s44, 0
      %p104 = por %p102, %p103
      %p105 = scmp.ne.s32.totalorder %s94, %s97
      %p106 = scmp.eq.s32.totalorder %s49, 1
      %p107 = por %p105, %p106
      %p108 = scmp.ne.s32.totalorder %s97, %s98
      %p109 = scmp.eq.s32.totalorder %s49, 0
      %p110 = por %p108, %p109
      %p111 = scmp.ne.s32.totalorder %s97, %s98
      %p112 = scmp.eq.s32.totalorder %s50, 1
      %p113 = por %p111, %p112
      %p115 = scmp.ne.s32.totalorder %s98, %s114
      %p116 = scmp.eq.s32.totalorder %s50, 0
      %p117 = por %p115, %p116
      %s118 = ssub.s32 %s51, %s63
      %p119 = scmp.eq.s32.totalorder %s118, 0
      %s121 = sadd.s32 %s120, 1
      %s122 = scalar_select %p119, %s120, %s121
      %p125 = pneg %p119
      %p126 = scmp.eq.s32.totalorder %s44, 1
      %p127 = por %p125, %p126
      %p128 = scmp.ne.s32.totalorder %s120, %s123
      %p129 = scmp.eq.s32.totalorder %s44, 0
      %p130 = por %p128, %p129
      %p131 = scmp.ne.s32.totalorder %s120, %s123
      %p132 = scmp.eq.s32.totalorder %s49, 1
      %p133 = por %p131, %p132
      %p134 = scmp.ne.s32.totalorder %s123, %s124
      %p135 = scmp.eq.s32.totalorder %s49, 0
      %p136 = por %p134, %p135
      %p137 = scmp.ne.s32.totalorder %s123, %s124
      %p138 = scmp.eq.s32.totalorder %s50, 1
      %p139 = por %p137, %p138
      %p141 = scmp.ne.s32.totalorder %s124, %s140
      %p142 = scmp.eq.s32.totalorder %s50, 0
      %p143 = por %p141, %p142
      %s145 = sadd.s32 %s144, 1
      %p148 = scmp.eq.s32.totalorder %s44, 1
      %p149 = scmp.ne.s32.totalorder %s144, %s146
      %p150 = scmp.eq.s32.totalorder %s44, 0
      %p151 = por %p149, %p150
      %p152 = scmp.ne.s32.totalorder %s144, %s146
      %p153 = scmp.eq.s32.totalorder %s49, 1
      %p154 = por %p152, %p153
      %p155 = scmp.ne.s32.totalorder %s146, %s147
      %p156 = scmp.eq.s32.totalorder %s49, 0
      %p157 = por %p155, %p156
      %p158 = scmp.ne.s32.totalorder %s146, %s147
      %p159 = scmp.eq.s32.totalorder %s50, 1
      %p160 = por %p158, %p159
      %p162 = scmp.ne.s32.totalorder %s147, %s161
      %p163 = scmp.eq.s32.totalorder %s50, 0
      %p164 = por %p162, %p163
      %s166 = sadd.s32 %s165, 1
      %p169 = scmp.eq.s32.totalorder %s44, 1
      %p170 = scmp.ne.s32.totalorder %s165, %s167
      %p171 = scmp.eq.s32.totalorder %s44, 0
      %p172 = por %p170, %p171
      %p173 = scmp.ne.s32.totalorder %s165, %s167
      %p174 = scmp.eq.s32.totalorder %s49, 1
      %p175 = por %p173, %p174
      %p176 = scmp.ne.s32.totalorder %s167, %s168
      %p177 = scmp.eq.s32.totalorder %s49, 0
      %p178 = por %p176, %p177
      %p179 = scmp.ne.s32.totalorder %s167, %s168
      %p180 = scmp.eq.s32.totalorder %s50, 1
      %p181 = por %p179, %p180
      %p183 = scmp.ne.s32.totalorder %s168, %s182
      %p184 = scmp.eq.s32.totalorder %s50, 0
      %p185 = por %p183, %p184
      %s187 = sadd.s32 %s186, 1
      %p190 = scmp.eq.s32.totalorder %s44, 1
      %p191 = scmp.ne.s32.totalorder %s186, %s188
      %p192 = scmp.eq.s32.totalorder %s44, 0
      %p193 = por %p191, %p192
      %p194 = scmp.ne.s32.totalorder %s186, %s188
      %p195 = scmp.eq.s32.totalorder %s49, 1
      %p196 = por %p194, %p195
      %p197 = scmp.ne.s32.totalorder %s188, %s189
      %p198 = scmp.eq.s32.totalorder %s49, 0
      %p199 = por %p197, %p198
      %p200 = scmp.ne.s32.totalorder %s188, %s189
      %p201 = scmp.eq.s32.totalorder %s50, 1
      %p202 = por %p200, %p201
      %p204 = scmp.ne.s32.totalorder %s189, %s203
      %p205 = scmp.eq.s32.totalorder %s50, 0
      %p206 = por %p204, %p205
      %s208 = sadd.s32 %s207, 1
      %p211 = scmp.eq.s32.totalorder %s44, 1
      %p212 = scmp.ne.s32.totalorder %s207, %s209
      %p213 = scmp.eq.s32.totalorder %s44, 0
      %p214 = por %p212, %p213
      %p215 = scmp.ne.s32.totalorder %s207, %s209
      %p216 = scmp.eq.s32.totalorder %s49, 1
      %p217 = por %p215, %p216
      %p218 = scmp.ne.s32.totalorder %s209, %s210
      %p219 = scmp.eq.s32.totalorder %s49, 0
      %p220 = por %p218, %p219
      %p221 = scmp.ne.s32.totalorder %s209, %s210
      %p222 = scmp.eq.s32.totalorder %s50, 1
      %p223 = por %p221, %p222
      %p225 = scmp.ne.s32.totalorder %s210, %s224
      %p226 = scmp.eq.s32.totalorder %s50, 0
      %p227 = por %p225, %p226
      %s229 = sadd.s32 %s228, 1
      %p232 = scmp.eq.s32.totalorder %s44, 1
      %p233 = scmp.ne.s32.totalorder %s228, %s230
      %p234 = scmp.eq.s32.totalorder %s44, 0
      %p235 = por %p233, %p234
      %p236 = scmp.ne.s32.totalorder %s228, %s230
      %p237 = scmp.eq.s32.totalorder %s49, 1
      %p238 = por %p236, %p237
      %p239 = scmp.ne.s32.totalorder %s230, %s231
      %p240 = scmp.eq.s32.totalorder %s49, 0
      %p241 = por %p239, %p240
      %p242 = scmp.ne.s32.totalorder %s230, %s231
      %p243 = scmp.eq.s32.totalorder %s50, 1
      %p244 = por %p242, %p243
      %p246 = scmp.ne.s32.totalorder %s231, %s245
      %p247 = scmp.eq.s32.totalorder %s50, 0
      %p248 = por %p246, %p247
      %s250 = sadd.s32 %s249, 1
      %p253 = scmp.eq.s32.totalorder %s44, 1
      %p254 = scmp.ne.s32.totalorder %s249, %s251
      %p255 = scmp.eq.s32.totalorder %s44, 0
      %p256 = por %p254, %p255
      %p257 = scmp.ne.s32.totalorder %s249, %s251
      %p258 = scmp.eq.s32.totalorder %s49, 1
      %p259 = por %p257, %p258
      %p260 = scmp.ne.s32.totalorder %s251, %s252
      %p261 = scmp.eq.s32.totalorder %s49, 0
      %p262 = por %p260, %p261
      %p263 = scmp.ne.s32.totalorder %s251, %s252
      %p264 = scmp.eq.s32.totalorder %s50, 1
      %p265 = por %p263, %p264
      %p267 = scmp.ne.s32.totalorder %s252, %s266
      %p268 = scmp.eq.s32.totalorder %s50, 0
      %p269 = por %p267, %p268
      %s271 = sadd.s32 %s270, 1
      %p274 = scmp.eq.s32.totalorder %s44, 1
      %p275 = scmp.ne.s32.totalorder %s270, %s272
      %p276 = scmp.eq.s32.totalorder %s44, 0
      %p277 = por %p275, %p276
      %p278 = scmp.ne.s32.totalorder %s270, %s272
      %p279 = scmp.eq.s32.totalorder %s49, 1
      %p280 = por %p278, %p279
      %p281 = scmp.ne.s32.totalorder %s272, %s273
      %p282 = scmp.eq.s32.totalorder %s49, 0
      %p283 = por %p281, %p282
      %p284 = scmp.ne.s32.totalorder %s272, %s273
      %p285 = scmp.eq.s32.totalorder %s50, 1
      %p286 = por %p284, %p285
      %p288 = scmp.ne.s32.totalorder %s273, %s287
      %p289 = scmp.eq.s32.totalorder %s50, 0
      %p290 = por %p288, %p289
      %s292 = sadd.s32 %s291, 1
      %p295 = scmp.eq.s32.totalorder %s44, 1
      %p296 = scmp.ne.s32.totalorder %s291, %s293
      %p297 = scmp.eq.s32.totalorder %s44, 0
      %p298 = por %p296, %p297
      %p299 = scmp.ne.s32.totalorder %s291, %s293
      %p300 = scmp.eq.s32.totalorder %s49, 1
      %p301 = por %p299, %p300
      %p302 = scmp.ne.s32.totalorder %s293, %s294
      %p303 = scmp.eq.s32.totalorder %s49, 0
      %p304 = por %p302, %p303
      %p305 = scmp.ne.s32.totalorder %s293, %s294
      %p306 = scmp.eq.s32.totalorder %s50, 1
      %p307 = por %p305, %p306
      %p309 = scmp.ne.s32.totalorder %s294, %s308
      %p310 = scmp.eq.s32.totalorder %s50, 0
      %p311 = por %p309, %p310
      %s313 = sadd.s32 %s312, 1
      %p316 = scmp.eq.s32.totalorder %s44, 1
      %p317 = scmp.ne.s32.totalorder %s312, %s314
      %p318 = scmp.eq.s32.totalorder %s44, 0
      %p319 = por %p317, %p318
      %p320 = scmp.ne.s32.totalorder %s312, %s314
      %p321 = scmp.eq.s32.totalorder %s49, 1
      %p322 = por %p320, %p321
      %p323 = scmp.ne.s32.totalorder %s314, %s315
      %p324 = scmp.eq.s32.totalorder %s49, 0
      %p325 = por %p323, %p324
      %p326 = scmp.ne.s32.totalorder %s314, %s315
      %p327 = scmp.eq.s32.totalorder %s50, 1
      %p328 = por %p326, %p327
      %p330 = scmp.ne.s32.totalorder %s315, %s329
      %p331 = scmp.eq.s32.totalorder %s50, 0
      %p332 = por %p330, %p331
      %s334 = sadd.s32 %s333, 1
      %p337 = scmp.eq.s32.totalorder %s44, 1
      %p338 = scmp.ne.s32.totalorder %s333, %s335
      %p339 = scmp.eq.s32.totalorder %s44, 0
      %p340 = por %p338, %p339
      %p341 = scmp.ne.s32.totalorder %s333, %s335
      %p342 = scmp.eq.s32.totalorder %s49, 1
      %p343 = por %p341, %p342
      %p344 = scmp.ne.s32.totalorder %s335, %s336
      %p345 = scmp.eq.s32.totalorder %s49, 0
      %p346 = por %p344, %p345
      %p347 = scmp.ne.s32.totalorder %s335, %s336
      %p348 = scmp.eq.s32.totalorder %s50, 1
      %p349 = por %p347, %p348
      %p351 = scmp.ne.s32.totalorder %s336, %s350
      %p352 = scmp.eq.s32.totalorder %s50, 0
      %p353 = por %p351, %p352
      %s355 = sadd.s32 %s354, 1
      %p358 = scmp.eq.s32.totalorder %s44, 1
      %p359 = scmp.ne.s32.totalorder %s354, %s356
      %p360 = scmp.eq.s32.totalorder %s44, 0
      %p361 = por %p359, %p360
      %p362 = scmp.ne.s32.totalorder %s354, %s356
      %p363 = scmp.eq.s32.totalorder %s49, 1
      %p364 = por %p362, %p363
      %p365 = scmp.ne.s32.totalorder %s356, %s357
      %p366 = scmp.eq.s32.totalorder %s49, 0
      %p367 = por %p365, %p366
      %p368 = scmp.ne.s32.totalorder %s356, %s357
      %p369 = scmp.eq.s32.totalorder %s50, 1
      %p370 = por %p368, %p369
      %p372 = scmp.ne.s32.totalorder %s357, %s371
      %p373 = scmp.eq.s32.totalorder %s50, 0
      %p374 = por %p372, %p373
      %s376 = sadd.s32 %s375, 1
      %p379 = scmp.eq.s32.totalorder %s44, 1
      %p380 = scmp.ne.s32.totalorder %s375, %s377
      %p381 = scmp.eq.s32.totalorder %s44, 0
      %p382 = por %p380, %p381
      %p383 = scmp.ne.s32.totalorder %s375, %s377
      %p384 = scmp.eq.s32.totalorder %s49, 1
      %p385 = por %p383, %p384
      %p386 = scmp.ne.s32.totalorder %s377, %s378
      %p387 = scmp.eq.s32.totalorder %s49, 0
      %p388 = por %p386, %p387
      %p389 = scmp.ne.s32.totalorder %s377, %s378
      %p390 = scmp.eq.s32.totalorder %s50, 1
      %p391 = por %p389, %p390
      %p393 = scmp.ne.s32.totalorder %s378, %s392
      %p394 = scmp.eq.s32.totalorder %s50, 0
      %p395 = por %p393, %p394
      %s397 = sadd.s32 %s396, 1
      %p400 = scmp.eq.s32.totalorder %s44, 1
      %p401 = scmp.ne.s32.totalorder %s396, %s398
      %p402 = scmp.eq.s32.totalorder %s44, 0
      %p403 = por %p401, %p402
      %p404 = scmp.ne.s32.totalorder %s396, %s398
      %p405 = scmp.eq.s32.totalorder %s49, 1
      %p406 = por %p404, %p405
      %p407 = scmp.ne.s32.totalorder %s398, %s399
      %p408 = scmp.eq.s32.totalorder %s49, 0
      %p409 = por %p407, %p408
      %p410 = scmp.ne.s32.totalorder %s398, %s399
      %p411 = scmp.eq.s32.totalorder %s50, 1
      %p412 = por %p410, %p411
      %p414 = scmp.ne.s32.totalorder %s399, %s413
      %p415 = scmp.eq.s32.totalorder %s50, 0
      %p416 = por %p414, %p415
      %s418 = sadd.s32 %s417, 1
      %p421 = scmp.eq.s32.totalorder %s44, 1
      %p422 = scmp.ne.s32.totalorder %s417, %s419
      %p423 = scmp.eq.s32.totalorder %s44, 0
      %p424 = por %p422, %p423
      %p425 = scmp.ne.s32.totalorder %s417, %s419
      %p426 = scmp.eq.s32.totalorder %s49, 1
      %p427 = por %p425, %p426
      %p428 = scmp.ne.s32.totalorder %s419, %s420
      %p429 = scmp.eq.s32.totalorder %s49, 0
      %p430 = por %p428, %p429
      %p431 = scmp.ne.s32.totalorder %s419, %s420
      %p432 = scmp.eq.s32.totalorder %s50, 1
      %p433 = por %p431, %p432
      %p435 = scmp.ne.s32.totalorder %s420, %s434
      %p436 = scmp.eq.s32.totalorder %s50, 0
      %p437 = por %p435, %p436
      %s439 = sadd.s32 %s438, 1
      %p442 = scmp.eq.s32.totalorder %s44, 1
      %p443 = scmp.ne.s32.totalorder %s438, %s440
      %p444 = scmp.eq.s32.totalorder %s44, 0
      %p445 = por %p443, %p444
      %p446 = scmp.ne.s32.totalorder %s438, %s440
      %p447 = scmp.eq.s32.totalorder %s49, 1
      %p448 = por %p446, %p447
      %p449 = scmp.ne.s32.totalorder %s440, %s441
      %p450 = scmp.eq.s32.totalorder %s49, 0
      %p451 = por %p449, %p450
      %p452 = scmp.ne.s32.totalorder %s440, %s441
      %p453 = scmp.eq.s32.totalorder %s50, 1
      %p454 = por %p452, %p453
      %p456 = scmp.ne.s32.totalorder %s441, %s455
      %p457 = scmp.eq.s32.totalorder %s50, 0
      %p458 = por %p456, %p457
      %s460 = sadd.s32 %s459, 1
      %p463 = scmp.eq.s32.totalorder %s44, 1
      %p464 = scmp.ne.s32.totalorder %s459, %s461
      %p465 = scmp.eq.s32.totalorder %s44, 0
      %p466 = por %p464, %p465
      %p467 = scmp.ne.s32.totalorder %s459, %s461
      %p468 = scmp.eq.s32.totalorder %s49, 1
      %p469 = por %p467, %p468
      %p470 = scmp.ne.s32.totalorder %s461, %s462
      %p471 = scmp.eq.s32.totalorder %s49, 0
      %p472 = por %p470, %p471
      %p473 = scmp.ne.s32.totalorder %s461, %s462
      %p474 = scmp.eq.s32.totalorder %s50, 1
      %p475 = por %p473, %p474
      %p477 = scmp.ne.s32.totalorder %s462, %s476
      %p478 = scmp.eq.s32.totalorder %s50, 0
      %p479 = por %p477, %p478
      %s481 = sadd.s32 %s480, 1
      %p484 = scmp.eq.s32.totalorder %s44, 1
      %p485 = scmp.ne.s32.totalorder %s480, %s482
      %p486 = scmp.eq.s32.totalorder %s44, 0
      %p487 = por %p485, %p486
      %p488 = scmp.ne.s32.totalorder %s480, %s482
      %p489 = scmp.eq.s32.totalorder %s49, 1
      %p490 = por %p488, %p489
      %p491 = scmp.ne.s32.totalorder %s482, %s483
      %p492 = scmp.eq.s32.totalorder %s49, 0
      %p493 = por %p491, %p492
      %p494 = scmp.ne.s32.totalorder %s482, %s483
      %p495 = scmp.eq.s32.totalorder %s50, 1
      %p496 = por %p494, %p495
      %p498 = scmp.ne.s32.totalorder %s483, %s497
      %p499 = scmp.eq.s32.totalorder %s50, 0
      %p500 = por %p498, %p499
      %s502 = sadd.s32 %s501, 1
      %p505 = scmp.eq.s32.totalorder %s44, 1
      %p506 = scmp.ne.s32.totalorder %s501, %s503
      %p507 = scmp.eq.s32.totalorder %s44, 0
      %p508 = por %p506, %p507
      %p509 = scmp.ne.s32.totalorder %s501, %s503
      %p510 = scmp.eq.s32.totalorder %s49, 1
      %p511 = por %p509, %p510
      %p512 = scmp.ne.s32.totalorder %s503, %s504
      %p513 = scmp.eq.s32.totalorder %s49, 0
      %p514 = por %p512, %p513
      %p515 = scmp.ne.s32.totalorder %s503, %s504
      %p516 = scmp.eq.s32.totalorder %s50, 1
      %p517 = por %p515, %p516
      %p519 = scmp.ne.s32.totalorder %s504, %s518
      %p520 = scmp.eq.s32.totalorder %s50, 0
      %p521 = por %p519, %p520
      %s522 = ssub.s32 %s51, %s63
      %s523 = ssub.s32 %s52, %s59
      %s524 = sor.u32 %s522, %s523
      %p525 = scmp.eq.s32.totalorder %s524, 0
      %s527 = sadd.s32 %s526, 1
      %s528 = scalar_select %p525, %s526, %s527
      %p531 = pneg %p525
      %p532 = scmp.eq.s32.totalorder %s44, 1
      %p533 = por %p531, %p532
      %p534 = scmp.ne.s32.totalorder %s526, %s529
      %p535 = scmp.eq.s32.totalorder %s44, 0
      %p536 = por %p534, %p535
      %p537 = scmp.ne.s32.totalorder %s526, %s529
      %p538 = scmp.eq.s32.totalorder %s49, 1
      %p539 = por %p537, %p538
      %p540 = scmp.ne.s32.totalorder %s529, %s530
      %p541 = scmp.eq.s32.totalorder %s49, 0
      %p542 = por %p540, %p541
      %p543 = scmp.ne.s32.totalorder %s529, %s530
      %p544 = scmp.eq.s32.totalorder %s50, 1
      %p545 = por %p543, %p544
      %p547 = scmp.ne.s32.totalorder %s530, %s546
      %p548 = scmp.eq.s32.totalorder %s50, 0
      %p549 = por %p547, %p548
      %s550 = ssub.s32 %s51, %s63
      %s551 = ssub.s32 %s52, %s59
      %s552 = sor.u32 %s550, %s551
      %p553 = scmp.eq.s32.totalorder %s552, 0
      %s555 = sadd.s32 %s554, 1
      %s556 = scalar_select %p553, %s554, %s555
      %p559 = pneg %p553
      %p560 = scmp.eq.s32.totalorder %s44, 1
      %p561 = por %p559, %p560
      %p562 = scmp.ne.s32.totalorder %s554, %s557
      %p563 = scmp.eq.s32.totalorder %s44, 0
      %p564 = por %p562, %p563
      %p565 = scmp.ne.s32.totalorder %s554, %s557
      %p566 = scmp.eq.s32.totalorder %s49, 1
      %p567 = por %p565, %p566
      %p568 = scmp.ne.s32.totalorder %s557, %s558
      %p569 = scmp.eq.s32.totalorder %s49, 0
      %p570 = por %p568, %p569
      %p571 = scmp.ne.s32.totalorder %s557, %s558
      %p572 = scmp.eq.s32.totalorder %s50, 1
      %p573 = por %p571, %p572
      %p575 = scmp.ne.s32.totalorder %s558, %s574
      %p576 = scmp.eq.s32.totalorder %s50, 0
      %p577 = por %p575, %p576
      %s578 = ssub.s32 %s51, %s63
      %s579 = ssub.s32 %s52, %s59
      %s580 = sor.u32 %s578, %s579
      %p581 = scmp.eq.s32.totalorder %s580, 0
      %s583 = sadd.s32 %s582, 1
      %s584 = scalar_select %p581, %s582, %s583
      %p587 = pneg %p581
      %p588 = scmp.eq.s32.totalorder %s44, 1
      %p589 = por %p587, %p588
      %p590 = scmp.ne.s32.totalorder %s582, %s585
      %p591 = scmp.eq.s32.totalorder %s44, 0
      %p592 = por %p590, %p591
      %p593 = scmp.ne.s32.totalorder %s582, %s585
      %p594 = scmp.eq.s32.totalorder %s49, 1
      %p595 = por %p593, %p594
      %p596 = scmp.ne.s32.totalorder %s585, %s586
      %p597 = scmp.eq.s32.totalorder %s49, 0
      %p598 = por %p596, %p597
      %p599 = scmp.ne.s32.totalorder %s585, %s586
      %p600 = scmp.eq.s32.totalorder %s50, 1
      %p601 = por %p599, %p600
      %p603 = scmp.ne.s32.totalorder %s586, %s602
      %p604 = scmp.eq.s32.totalorder %s50, 0
      %p605 = por %p603, %p604
      %p606 = scmp.le.s32.totalorder 1, %s44
      %p607 = scmp.lt.s32.totalorder %s44, 3
      %p608 = pnand %p606, %p607
      %p609 = pneg %p608
      // Predicated region
      $region9: #{tpu_custom_call.1} parent=5 // pred_check
        _
      $region10: #{tpu_custom_call.1} parent=5 // pred_check_branch
        %611 = sbr.rel (%p608) target = $region12
      $region11: #{tpu_custom_call.1} parent=5 // pred_region
        %s612 = ssub.s32 %s44, 1
        // Predicated region
        $region13: #{tpu_custom_call.1} parent=11 // pred_check
          %p613 = pneg %p157
        $region14: #{tpu_custom_call.1} parent=11 // pred_check_branch
          %615 = sbr.rel (%p613) target = $region16
        $region15: #{tpu_custom_call.1} parent=11 // pred_region
          %s617 = ssub.s32 256, 256
          %618 = vsyncadd [#allocation6], %s617
          %s619 = sshll.u32 [#allocation5], 4
          %s620 = int_to_ptr.vmem [resolvable:$true] %s619
          %625 = dma.hbm_to_vmem [thread:$0]  %s3, 256, %s620, [#allocation6], 64, 64, 4
        $region16: #{tpu_custom_call.1} parent=11 // pred_fallthru
          _
        // Predicated region
        $region17: #{tpu_custom_call.1} parent=11 // pred_check
          %p626 = pneg %p178
        $region18: #{tpu_custom_call.1} parent=11 // pred_check_branch
          %628 = sbr.rel (%p626) target = $region20
        $region19: #{tpu_custom_call.1} parent=11 // pred_region
          _
        $region20: #{tpu_custom_call.1} parent=11 // pred_fallthru
          _
        // Predicated region
        $region21: #{tpu_custom_call.1} parent=11 // pred_check
          %p629 = pneg %p199
        $region22: #{tpu_custom_call.1} parent=11 // pred_check_branch
          %631 = sbr.rel (%p629) target = $region24
        $region23: #{tpu_custom_call.1} parent=11 // pred_region
          %s633 = ssub.s32 256, 256
          %634 = vsyncadd [#allocation6], %s633
          %s635 = sshll.u32 [#allocation7], 4
          %s636 = int_to_ptr.vmem [resolvable:$true] %s635
          %641 = dma.hbm_to_vmem [thread:$0]  %s5, 256, %s636, [#allocation6], 64, 64, 4
        $region24: #{tpu_custom_call.1} parent=11 // pred_fallthru
          _
        // Predicated region
        $region25: #{tpu_custom_call.1} parent=11 // pred_check
          %p642 = pneg %p220
        $region26: #{tpu_custom_call.1} parent=11 // pred_check_branch
          %644 = sbr.rel (%p642) target = $region28
        $region27: #{tpu_custom_call.1} parent=11 // pred_region
          %s646 = ssub.s32 16, 16
          %647 = vsyncadd [#allocation9], %s646
          %s649 = sshll.u32 [#allocation8], 4
          %s650 = int_to_ptr.vmem [resolvable:$true] %s649
          %652 = dma.hbm_to_vmem [thread:$0]  %s6, 16, %s650, [#allocation9]
        $region28: #{tpu_custom_call.1} parent=11 // pred_fallthru
          _
        // Predicated region
        $region29: #{tpu_custom_call.1} parent=11 // pred_check
          %p653 = pneg %p241
        $region30: #{tpu_custom_call.1} parent=11 // pred_check_branch
          %655 = sbr.rel (%p653) target = $region32
        $region31: #{tpu_custom_call.1} parent=11 // pred_region
          %s657 = ssub.s32 16, 16
          %658 = vsyncadd [#allocation9], %s657
          %s660 = sshll.u32 [#allocation10], 4
          %s661 = int_to_ptr.vmem [resolvable:$true] %s660
          %663 = dma.hbm_to_vmem [thread:$0]  %s7, 16, %s661, [#allocation9]
        $region32: #{tpu_custom_call.1} parent=11 // pred_fallthru
          _
        // Predicated region
        $region33: #{tpu_custom_call.1} parent=11 // pred_check
          %p664 = pneg %p262
        $region34: #{tpu_custom_call.1} parent=11 // pred_check_branch
          %666 = sbr.rel (%p664) target = $region36
        $region35: #{tpu_custom_call.1} parent=11 // pred_region
          %s668 = ssub.s32 16, 16
          %669 = vsyncadd [#allocation12], %s668
          %s671 = sshll.u32 [#allocation11], 4
          %s672 = int_to_ptr.vmem [resolvable:$true] %s671
          %674 = dma.hbm_to_vmem [thread:$0]  %s8, 16, %s672, [#allocation12]
        $region36: #{tpu_custom_call.1} parent=11 // pred_fallthru
          _
        // Predicated region
        $region37: #{tpu_custom_call.1} parent=11 // pred_check
          %p675 = pneg %p283
        $region38: #{tpu_custom_call.1} parent=11 // pred_check_branch
          %677 = sbr.rel (%p675) target = $region40
        $region39: #{tpu_custom_call.1} parent=11 // pred_region
          _
        $region40: #{tpu_custom_call.1} parent=11 // pred_fallthru
          _
        // Predicated region
        $region41: #{tpu_custom_call.1} parent=11 // pred_check
          %p678 = pneg %p304
        $region42: #{tpu_custom_call.1} parent=11 // pred_check_branch
          %680 = sbr.rel (%p678) target = $region44
        $region43: #{tpu_custom_call.1} parent=11 // pred_region
          %s682 = ssub.s32 16, 16
          %683 = vsyncadd [#allocation12], %s682
          %s685 = sshll.u32 [#allocation13], 4
          %s686 = int_to_ptr.vmem [resolvable:$true] %s685
          %688 = dma.hbm_to_vmem [thread:$0]  %s10, 16, %s686, [#allocation12]
        $region44: #{tpu_custom_call.1} parent=11 // pred_fallthru
          _
        // Predicated region
        $region45: #{tpu_custom_call.1} parent=11 // pred_check
          %p689 = pneg %p325
        $region46: #{tpu_custom_call.1} parent=11 // pred_check_branch
          %691 = sbr.rel (%p689) target = $region48
        $region47: #{tpu_custom_call.1} parent=11 // pred_region
          %s693 = ssub.s32 256, 256
          %694 = vsyncadd [#allocation15], %s693
          %s695 = sshll.u32 [#allocation14], 4
          %s696 = int_to_ptr.vmem [resolvable:$true] %s695
          %701 = dma.hbm_to_vmem [thread:$0]  %s11, 256, %s696, [#allocation15], 64, 64, 4
        $region48: #{tpu_custom_call.1} parent=11 // pred_fallthru
          _
        // Predicated region
        $region49: #{tpu_custom_call.1} parent=11 // pred_check
          %p702 = pneg %p346
        $region50: #{tpu_custom_call.1} parent=11 // pred_check_branch
          %704 = sbr.rel (%p702) target = $region52
        $region51: #{tpu_custom_call.1} parent=11 // pred_region
          %s706 = ssub.s32 16, 16
          %707 = vsyncadd [#allocation15], %s706
          %s709 = sshll.u32 [#allocation16], 4
          %s710 = int_to_ptr.vmem [resolvable:$true] %s709
          %712 = dma.hbm_to_vmem [thread:$0]  %s12, 16, %s710, [#allocation15]
        $region52: #{tpu_custom_call.1} parent=11 // pred_fallthru
          _
        // Predicated region
        $region53: #{tpu_custom_call.1} parent=11 // pred_check
          %p713 = pneg %p367
        $region54: #{tpu_custom_call.1} parent=11 // pred_check_branch
          %715 = sbr.rel (%p713) target = $region56
        $region55: #{tpu_custom_call.1} parent=11 // pred_region
          %s717 = ssub.s32 16, 16
          %718 = vsyncadd [#allocation18], %s717
          %s720 = sshll.u32 [#allocation17], 4
          %s721 = int_to_ptr.vmem [resolvable:$true] %s720
          %723 = dma.hbm_to_vmem [thread:$0]  %s13, 16, %s721, [#allocation18]
        $region56: #{tpu_custom_call.1} parent=11 // pred_fallthru
          _
        // Predicated region
        $region57: #{tpu_custom_call.1} parent=11 // pred_check
          %p724 = pneg %p388
        $region58: #{tpu_custom_call.1} parent=11 // pred_check_branch
          %726 = sbr.rel (%p724) target = $region60
        $region59: #{tpu_custom_call.1} parent=11 // pred_region
          _
        $region60: #{tpu_custom_call.1} parent=11 // pred_fallthru
          _
        // Predicated region
        $region61: #{tpu_custom_call.1} parent=11 // pred_check
          %p727 = pneg %p409
        $region62: #{tpu_custom_call.1} parent=11 // pred_check_branch
          %729 = sbr.rel (%p727) target = $region64
        $region63: #{tpu_custom_call.1} parent=11 // pred_region
          _
        $region64: #{tpu_custom_call.1} parent=11 // pred_fallthru
          _
        // Predicated region
        $region65: #{tpu_custom_call.1} parent=11 // pred_check
          %p730 = pneg %p430
        $region66: #{tpu_custom_call.1} parent=11 // pred_check_branch
          %732 = sbr.rel (%p730) target = $region68
        $region67: #{tpu_custom_call.1} parent=11 // pred_region
          _
        $region68: #{tpu_custom_call.1} parent=11 // pred_fallthru
          _
        // Predicated region
        $region69: #{tpu_custom_call.1} parent=11 // pred_check
          %p733 = pneg %p451
        $region70: #{tpu_custom_call.1} parent=11 // pred_check_branch
          %735 = sbr.rel (%p733) target = $region72
        $region71: #{tpu_custom_call.1} parent=11 // pred_region
          _
        $region72: #{tpu_custom_call.1} parent=11 // pred_fallthru
          _
        // Predicated region
        $region73: #{tpu_custom_call.1} parent=11 // pred_check
          %p736 = pneg %p472
        $region74: #{tpu_custom_call.1} parent=11 // pred_check_branch
          %738 = sbr.rel (%p736) target = $region76
        $region75: #{tpu_custom_call.1} parent=11 // pred_region
          _
        $region76: #{tpu_custom_call.1} parent=11 // pred_fallthru
          _
        // Predicated region
        $region77: #{tpu_custom_call.1} parent=11 // pred_check
          %p739 = pneg %p493
        $region78: #{tpu_custom_call.1} parent=11 // pred_check_branch
          %741 = sbr.rel (%p739) target = $region80
        $region79: #{tpu_custom_call.1} parent=11 // pred_region
          _
        $region80: #{tpu_custom_call.1} parent=11 // pred_fallthru
          _
        // Predicated region
        $region81: #{tpu_custom_call.1} parent=11 // pred_check
          %p742 = pneg %p514
        $region82: #{tpu_custom_call.1} parent=11 // pred_check_branch
          %744 = sbr.rel (%p742) target = $region84
        $region83: #{tpu_custom_call.1} parent=11 // pred_region
          _
        $region84: #{tpu_custom_call.1} parent=11 // pred_fallthru
          _
      $region12: #{tpu_custom_call.1} parent=5 // pred_fallthru
        _
      %p745 = scmp.lt.s32.totalorder %s44, 2
      // Predicated region
      $region85: #{tpu_custom_call.1} parent=5 // pred_check
        %p746 = pneg %p745
      $region86: #{tpu_custom_call.1} parent=5 // pred_check_branch
        %748 = sbr.rel (%p746) target = $region88
      $region87: #{tpu_custom_call.1} parent=5 // pred_region
        // Predicated region
        $region89: #{tpu_custom_call.1} parent=87 // pred_check
          %p749 = pneg %p78
        $region90: #{tpu_custom_call.1} parent=87 // pred_check_branch
          %751 = sbr.rel (%p749) target = $region92
        $region91: #{tpu_custom_call.1} parent=87 // pred_region
          %p752 = scmp.lt.s32.totalorder %s51, 1
          %s753 = scalar_select %p752, %s51, 1
          %p754 = scmp.lt.s32.totalorder %s52, 0
          %s755 = scalar_select %p754, %s52, 0
          %s756 = sadd.s32 %s755, %s753
          %s757 = smul.addr %s756, 8
          %s758 = scalar_lea.vmem %s0, %s757
        $region92: #{tpu_custom_call.1} parent=87 // pred_fallthru
          _
        // Predicated region
        $region93: #{tpu_custom_call.1} parent=87 // pred_check
          %p759 = pneg %p104
        $region94: #{tpu_custom_call.1} parent=87 // pred_check_branch
          %761 = sbr.rel (%p759) target = $region96
        $region95: #{tpu_custom_call.1} parent=87 // pred_region
          %s762 = sand.u32 %s94, 1
          %s763 = scalar_lea.sflag [#allocation3], %s762
          %s764 = sand.u32 %s94, 1
          %s765 = smul.addr %s764, 8
          %s766 = scalar_lea.vmem [#allocation2], %s765
          %s768 = ssub.s32 128, 128
          %769 = vsyncadd %s763, %s768
          %s770 = smul.addr %s51, 128
          %s771 = scalar_lea.hbm %s1, %s770
          %s773 = sshll.u32 %s766, 4
          %s774 = int_to_ptr.vmem [resolvable:$true] %s773
          %776 = dma.hbm_to_vmem [thread:$0]  %s771, 128, %s774, %s763
        $region96: #{tpu_custom_call.1} parent=87 // pred_fallthru
          _
        // Predicated region
        $region97: #{tpu_custom_call.1} parent=87 // pred_check
          %p777 = pneg %p130
        $region98: #{tpu_custom_call.1} parent=87 // pred_check_branch
          %779 = sbr.rel (%p777) target = $region100
        $region99: #{tpu_custom_call.1} parent=87 // pred_region
          %p780 = scmp.lt.s32.totalorder %s51, 1
          %s781 = scalar_select %p780, %s51, 1
          %s782 = smul.addr %s781, 2
          %s783 = smul.addr %s782, 8
          %s784 = scalar_lea.vmem %s2, %s783
        $region100: #{tpu_custom_call.1} parent=87 // pred_fallthru
          _
      $region88: #{tpu_custom_call.1} parent=5 // pred_fallthru
        _
      %p785 = scmp.le.s32.totalorder 1, %s44
      %p786 = scmp.lt.s32.totalorder %s44, 3
      %p787 = pnand %p785, %p786
      %p788 = pneg %p787
      // Predicated region
      $region101: #{tpu_custom_call.1} parent=5 // pred_check
        _
      $region102: #{tpu_custom_call.1} parent=5 // pred_check_branch
        %790 = sbr.rel (%p787) target = $region104
      $region103: #{tpu_custom_call.1} parent=5 // pred_region
        %s791 = ssub.s32 %s44, 1
        %s792 = sand.u32 %s97, 1
        %s793 = scalar_lea.sflag [#allocation3], %s792
        %s794 = sand.u32 %s97, 1
        %s795 = smul.addr %s794, 8
        %s796 = scalar_lea.vmem [#allocation2], %s795
        // Predicated region
        $region105: #{tpu_custom_call.1} parent=103 // pred_check
          %p797 = pneg %p110
        $region106: #{tpu_custom_call.1} parent=103 // pred_check_branch
          %799 = sbr.rel (%p797) target = $region108
        $region107: #{tpu_custom_call.1} parent=103 // pred_region
          %800 = dma.done %s793, 128
        $region108: #{tpu_custom_call.1} parent=103 // pred_fallthru
          _
        // Predicated region
        $region109: #{tpu_custom_call.1} parent=103 // pred_check
          %p801 = pneg %p157
        $region110: #{tpu_custom_call.1} parent=103 // pred_check_branch
          %803 = sbr.rel (%p801) target = $region112
        $region111: #{tpu_custom_call.1} parent=103 // pred_region
          %804 = dma.done [#allocation6], 256
        $region112: #{tpu_custom_call.1} parent=103 // pred_fallthru
          _
        // Predicated region
        $region113: #{tpu_custom_call.1} parent=103 // pred_check
          %p805 = pneg %p199
        $region114: #{tpu_custom_call.1} parent=103 // pred_check_branch
          %807 = sbr.rel (%p805) target = $region116
        $region115: #{tpu_custom_call.1} parent=103 // pred_region
          %808 = dma.done [#allocation6], 256
        $region116: #{tpu_custom_call.1} parent=103 // pred_fallthru
          _
        // Predicated region
        $region117: #{tpu_custom_call.1} parent=103 // pred_check
          %p809 = pneg %p220
        $region118: #{tpu_custom_call.1} parent=103 // pred_check_branch
          %811 = sbr.rel (%p809) target = $region120
        $region119: #{tpu_custom_call.1} parent=103 // pred_region
          %812 = dma.done [#allocation9], 16
        $region120: #{tpu_custom_call.1} parent=103 // pred_fallthru
          _
        // Predicated region
        $region121: #{tpu_custom_call.1} parent=103 // pred_check
          %p813 = pneg %p241
        $region122: #{tpu_custom_call.1} parent=103 // pred_check_branch
          %815 = sbr.rel (%p813) target = $region124
        $region123: #{tpu_custom_call.1} parent=103 // pred_region
          %816 = dma.done [#allocation9], 16
        $region124: #{tpu_custom_call.1} parent=103 // pred_fallthru
          _
        // Predicated region
        $region125: #{tpu_custom_call.1} parent=103 // pred_check
          %p817 = pneg %p262
        $region126: #{tpu_custom_call.1} parent=103 // pred_check_branch
          %819 = sbr.rel (%p817) target = $region128
        $region127: #{tpu_custom_call.1} parent=103 // pred_region
          %820 = dma.done [#allocation12], 16
        $region128: #{tpu_custom_call.1} parent=103 // pred_fallthru
          _
        // Predicated region
        $region129: #{tpu_custom_call.1} parent=103 // pred_check
          %p821 = pneg %p304
        $region130: #{tpu_custom_call.1} parent=103 // pred_check_branch
          %823 = sbr.rel (%p821) target = $region132
        $region131: #{tpu_custom_call.1} parent=103 // pred_region
          %824 = dma.done [#allocation12], 16
        $region132: #{tpu_custom_call.1} parent=103 // pred_fallthru
          _
        // Predicated region
        $region133: #{tpu_custom_call.1} parent=103 // pred_check
          %p825 = pneg %p325
        $region134: #{tpu_custom_call.1} parent=103 // pred_check_branch
          %827 = sbr.rel (%p825) target = $region136
        $region135: #{tpu_custom_call.1} parent=103 // pred_region
          %828 = dma.done [#allocation15], 256
        $region136: #{tpu_custom_call.1} parent=103 // pred_fallthru
          _
        // Predicated region
        $region137: #{tpu_custom_call.1} parent=103 // pred_check
          %p829 = pneg %p346
        $region138: #{tpu_custom_call.1} parent=103 // pred_check_branch
          %831 = sbr.rel (%p829) target = $region140
        $region139: #{tpu_custom_call.1} parent=103 // pred_region
          %832 = dma.done [#allocation15], 16
        $region140: #{tpu_custom_call.1} parent=103 // pred_fallthru
          _
        // Predicated region
        $region141: #{tpu_custom_call.1} parent=103 // pred_check
          %p833 = pneg %p367
        $region142: #{tpu_custom_call.1} parent=103 // pred_check_branch
          %835 = sbr.rel (%p833) target = $region144
        $region143: #{tpu_custom_call.1} parent=103 // pred_region
          %836 = dma.done [#allocation18], 16
        $region144: #{tpu_custom_call.1} parent=103 // pred_fallthru
          _
        %p837 = scmp.lt.s32.totalorder %s53, 1
        %s838 = scalar_select %p837, %s53, 1
        %p839 = scmp.lt.s32.totalorder %s54, 0
        %s840 = scalar_select %p839, %s54, 0
        %s841 = sadd.s32 %s840, %s838
        %s842 = smul.addr %s841, 8
        %s843 = scalar_lea.vmem %s0, %s842
        %p844 = pneg %p84
        %p845 = pneg %p81
        %s846 = sand.u32 %s97, 1
        %s847 = scalar_lea.sflag [#allocation3], %s846
        %s848 = sand.u32 %s97, 1
        %s849 = smul.addr %s848, 8
        %s850 = scalar_lea.vmem [#allocation2], %s849
        %p851 = pneg %p110
        %p852 = pneg %p107
        %p853 = scmp.lt.s32.totalorder %s53, 1
        %s854 = scalar_select %p853, %s53, 1
        %s855 = smul.addr %s854, 2
        %s856 = smul.addr %s855, 8
        %s857 = scalar_lea.vmem %s2, %s856
        %p858 = pneg %p136
        %p859 = pneg %p133
        %p860 = pneg %p157
        %p861 = pneg %p154
        %p862 = pneg %p178
        %p863 = pneg %p175
        %p864 = pneg %p199
        %p865 = pneg %p196
        %p866 = pneg %p220
        %p867 = pneg %p217
        %p868 = pneg %p241
        %p869 = pneg %p238
        %p870 = pneg %p262
        %p871 = pneg %p259
        %p872 = pneg %p283
        %p873 = pneg %p280
        %p874 = pneg %p304
        %p875 = pneg %p301
        %p876 = pneg %p325
        %p877 = pneg %p322
        %p878 = pneg %p346
        %p879 = pneg %p343
        %p880 = pneg %p367
        %p881 = pneg %p364
        %p882 = pneg %p388
        %p883 = pneg %p385
        %p884 = pneg %p409
        %p885 = pneg %p406
        %p886 = pneg %p430
        %p887 = pneg %p427
        %p888 = pneg %p451
        %p889 = pneg %p448
        %p890 = pneg %p472
        %p891 = pneg %p469
        %p892 = pneg %p493
        %p893 = pneg %p490
        %p894 = pneg %p514
        %p895 = pneg %p511
        %p896 = pneg %p542
        %p897 = pneg %p539
        %s898 = sand.u32 %s529, 1
        %s899 = scalar_lea.sflag [#allocation4], %s898
        %s900 = sand.u32 %s529, 1
        %s901 = smul.addr %s900, 8
        %s902 = scalar_lea.vmem [#allocation19], %s901
        %p903 = pneg %p570
        %p904 = pneg %p567
        %s905 = sand.u32 %s49, 1
        %s906 = scalar_lea.sflag [#allocation21], %s905
        %s907 = sand.u32 %s557, 1
        %s908 = smul.addr %s907, 32
        %s909 = scalar_lea.vmem [#allocation20], %s908
        %p910 = pneg %p598
        %p911 = pneg %p595
        %s912 = sand.u32 %s49, 1
        %s913 = scalar_lea.sflag [#allocation21], %s912
        %s914 = sand.u32 %s585, 1
        %s915 = smul.addr %s914, 32
        %s916 = scalar_lea.vmem [#allocation22], %s915
        %p917 = scmp.lt.s32.totalorder %s53, 1
        %s918 = scalar_select %p917, %s53, 1
        %p919 = scmp.lt.s32.totalorder %s54, 0
        %s920 = scalar_select %p919, %s54, 0
        %s921 = sadd.s32 %s920, %s918
        %s922 = smul.addr %s921, 8
        %s923 = scalar_lea.vmem %s0, %s922
        %p924 = scmp.lt.s32.totalorder %s53, 1
        %s925 = scalar_select %p924, %s53, 1
        %s926 = smul.addr %s925, 2
        %s927 = smul.addr %s926, 8
        %s928 = scalar_lea.vmem %s2, %s927
        %v930 = vld [vmem:[%s923] sm:$0xff]
        %v931 = vld [vmem:[%s796] sm:$0xff]
        %v932 = vld [vmem:[%s928] sm:$0xff]
        %v933 = vld [vmem:[%s928 + $0x8] sm:$0xff]
        %v934 = vld [vmem:[#allocation5] sm:$0xf]
        %v935 = vld [vmem:[#allocation5 + $0x4] sm:$0xf]
        %v936 = vld [vmem:[#allocation5 + $0x8] sm:$0xf]
        %v937 = vld [vmem:[#allocation5 + $0xc] sm:$0xf]
        %v938 = vld [vmem:[%s4] sm:$0x1]
        %v939 = vld [vmem:[#allocation7] sm:$0xf]
        %v940 = vld [vmem:[#allocation7 + $0x4] sm:$0xf]
        %v941 = vld [vmem:[#allocation7 + $0x8] sm:$0xf]
        %v942 = vld [vmem:[#allocation7 + $0xc] sm:$0xf]
        %v943 = vld [vmem:[#allocation8] sm:$0x1]
        %v944 = vld [vmem:[#allocation10] sm:$0x1]
        %v945 = vld [vmem:[#allocation11] sm:$0x1]
        %v946 = vpack.c.bf16 %v930, %v930
        %v948 = vlaneseq
        %v949 = vshrl.u32 %v948, 7
        %v950 = vsub.s32 0, %v949
        %v951 = vrot.slane %v938, %v950
        %v957 = vunpack.c.l.b16 %v934
        %v958 = vunpack.c.l.b16 %v935
        %v959 = vunpack.c.l.b16 %v936
        %v960 = vunpack.c.l.b16 %v937
        %v961 = vpack.c.b16 %v958, %v957
        %v962 = vpack.c.b16 %v960, %v959
        %vm965 = vcmask 261120
        %v967 = vsel %vm965, %v946, 0
        %969 = vmatprep.subr.bf16.mxu0 0
        %970 = vmatpush1.bf16.msra.mxu0 %v961
        %971 = vmatprep.subr.bf16.mxu0 0
        %972 = vmatpush1.bf16.msra.mxu0 %v962
        %973 = vmatprep.subr.bf16.mxu0 0
        %974 = vmatpush1.bf16.msra.mxu0 0
        %975 = vmatprep.subr.bf16.mxu0 0
        %976 = vmatpush1.bf16.msra.mxu0 0
        %977 = vmatprep.subr.bf16.mxu0 0
        %978 = vmatpush1.bf16.msra.mxu0 0
        %979 = vmatprep.subr.bf16.mxu0 0
        %980 = vmatpush1.bf16.msra.mxu0 0
        %981 = vmatprep.subr.bf16.mxu0 0
        %982 = vmatpush1.bf16.msra.mxu0 0
        %983 = vmatprep.subr.bf16.mxu0 0
        %984 = vmatpush1.bf16.msra.mxu0 0
        %985 = vmatprep.subr.bf16.mxu0 0
        %986 = vmatpush1.bf16.msra.mxu0 0
        %987 = vmatprep.subr.bf16.mxu0 0
        %988 = vmatpush1.bf16.msra.mxu0 0
        %989 = vmatprep.subr.bf16.mxu0 0
        %990 = vmatpush1.bf16.msra.mxu0 0
        %991 = vmatprep.subr.bf16.mxu0 0
        %992 = vmatpush1.bf16.msra.mxu0 0
        %993 = vmatprep.subr.bf16.mxu0 0
        %994 = vmatpush1.bf16.msra.mxu0 0
        %995 = vmatprep.subr.bf16.mxu0 0
        %996 = vmatpush1.bf16.msra.mxu0 0
        %997 = vmatprep.subr.bf16.mxu0 0
        %998 = vmatpush1.bf16.msra.mxu0 0
        %999 = vmatprep.subr.bf16.mxu0 0
        %1000 = vmatpush1.bf16.msra.mxu0 0
        %1001 = vmatprep.mubr.bf16.mxu0 0
        %1002 = vmatmul.mubr.bf16.gmra.mrb[0].mxu0 %v967
        %v1003 = vpop.f32.mrb[0].mxu0
        %v1004 = vadd.f32 %v951, %v1003
        %v1005 = vpop.f32.mrb[0].mxu0
        %v1006 = vpop.f32.mrb[0].mxu0
        %v1007 = vpop.f32.mrb[0].mxu0
        %1008 = vdwg.mxu0
        %v1009 = vpack.c.bf16 %v931, %v931
        %v1011 = vlaneseq
        %v1012 = vshrl.u32 %v1011, 7
        %v1013 = vsub.s32 0, %v1012
        %v1014 = vrot.slane %v943, %v1013
        %v1020 = vunpack.c.l.b16 %v939
        %v1021 = vunpack.c.l.b16 %v940
        %v1022 = vunpack.c.l.b16 %v941
        %v1023 = vunpack.c.l.b16 %v942
        %v1024 = vpack.c.b16 %v1021, %v1020
        %v1025 = vpack.c.b16 %v1023, %v1022
        %v1029 = vsel %vm965, %v1009, 0
        %1031 = vmatprep.subr.bf16.mxu0 0
        %1032 = vmatpush1.bf16.msra.mxu0 %v1024
        %1033 = vmatprep.subr.bf16.mxu0 0
        %1034 = vmatpush1.bf16.msra.mxu0 %v1025
        %1035 = vmatprep.subr.bf16.mxu0 0
        %1036 = vmatpush1.bf16.msra.mxu0 0
        %1037 = vmatprep.subr.bf16.mxu0 0
        %1038 = vmatpush1.bf16.msra.mxu0 0
        %1039 = vmatprep.subr.bf16.mxu0 0
        %1040 = vmatpush1.bf16.msra.mxu0 0
        %1041 = vmatprep.subr.bf16.mxu0 0
        %1042 = vmatpush1.bf16.msra.mxu0 0
        %1043 = vmatprep.subr.bf16.mxu0 0
        %1044 = vmatpush1.bf16.msra.mxu0 0
        %1045 = vmatprep.subr.bf16.mxu0 0
        %1046 = vmatpush1.bf16.msra.mxu0 0
        %1047 = vmatprep.subr.bf16.mxu0 0
        %1048 = vmatpush1.bf16.msra.mxu0 0
        %1049 = vmatprep.subr.bf16.mxu0 0
        %1050 = vmatpush1.bf16.msra.mxu0 0
        %1051 = vmatprep.subr.bf16.mxu0 0
        %1052 = vmatpush1.bf16.msra.mxu0 0
        %1053 = vmatprep.subr.bf16.mxu0 0
        %1054 = vmatpush1.bf16.msra.mxu0 0
        %1055 = vmatprep.subr.bf16.mxu0 0
        %1056 = vmatpush1.bf16.msra.mxu0 0
        %1057 = vmatprep.subr.bf16.mxu0 0
        %1058 = vmatpush1.bf16.msra.mxu0 0
        %1059 = vmatprep.subr.bf16.mxu0 0
        %1060 = vmatpush1.bf16.msra.mxu0 0
        %1061 = vmatprep.subr.bf16.mxu0 0
        %1062 = vmatpush1.bf16.msra.mxu0 0
        %1063 = vmatprep.mubr.bf16.mxu0 0
        %1064 = vmatmul.mubr.bf16.gmra.mrb[0].mxu0 %v1029
        %v1065 = vpop.f32.mrb[0].mxu0
        %v1066 = vadd.f32 %v1014, %v1065
        %v1067 = vpop.f32.mrb[0].mxu0
        %v1068 = vpop.f32.mrb[0].mxu0
        %v1069 = vpop.f32.mrb[0].mxu0
        %1070 = vdwg.mxu0
        %v1071 = vpack.c.bf16 %v1004, %v1004
        %v1072 = vpack.c.bf16 %v1066, %v1066
        %vm1073 = vcmask 64512
        %v1075 = vsel %vm1073, %v1071, 0
        %v1078 = vsel %vm1073, %v1072, 0
        %1080 = vmatprep.subr.bf16.mxu0 0
        %1081 = vmatpush1.bf16.xpose.msra.mxu0 %v1078
        %1082 = vmatprep.subr.bf16.mxu0 0
        %1083 = vmatpush1.bf16.xpose.msra.mxu0 0
        %1084 = vmatprep.subr.bf16.mxu0 0
        %1085 = vmatpush1.bf16.xpose.msra.mxu0 0
        %1086 = vmatprep.subr.bf16.mxu0 0
        %1087 = vmatpush1.bf16.xpose.msra.mxu0 0
        %1088 = vmatprep.subr.bf16.mxu0 0
        %1089 = vmatpush1.bf16.xpose.msra.mxu0 0
        %1090 = vmatprep.subr.bf16.mxu0 0
        %1091 = vmatpush1.bf16.xpose.msra.mxu0 0
        %1092 = vmatprep.subr.bf16.mxu0 0
        %1093 = vmatpush1.bf16.xpose.msra.mxu0 0
        %1094 = vmatprep.subr.bf16.mxu0 0
        %1095 = vmatpush1.bf16.xpose.msra.mxu0 0
        %1096 = vmatprep.subr.bf16.mxu0 0
        %1097 = vmatpush1.bf16.xpose.msra.mxu0 0
        %1098 = vmatprep.subr.bf16.mxu0 0
        %1099 = vmatpush1.bf16.xpose.msra.mxu0 0
        %1100 = vmatprep.subr.bf16.mxu0 0
        %1101 = vmatpush1.bf16.xpose.msra.mxu0 0
        %1102 = vmatprep.subr.bf16.mxu0 0
        %1103 = vmatpush1.bf16.xpose.msra.mxu0 0
        %1104 = vmatprep.subr.bf16.mxu0 0
        %1105 = vmatpush1.bf16.xpose.msra.mxu0 0
        %1106 = vmatprep.subr.bf16.mxu0 0
        %1107 = vmatpush1.bf16.xpose.msra.mxu0 0
        %1108 = vmatprep.subr.bf16.mxu0 0
        %1109 = vmatpush1.bf16.xpose.msra.mxu0 0
        %1110 = vmatprep.subr.bf16.mxu0 0
        %1111 = vmatpush1.bf16.xpose.msra.mxu0 0
        %1112 = vmatprep.mubr.bf16.mxu0 0
        %1113 = vmatmul.mubr.bf16.gmra.mrb[0].mxu0 %v1075
        %v1114 = vpop.f32.mrb[0].mxu0
        %v1115 = vadd.f32 0.0, %v1114
        %v1116 = vpop.f32.mrb[0].mxu0
        %v1117 = vpop.f32.mrb[0].mxu0
        %v1118 = vpop.f32.mrb[0].mxu0
        %1119 = vdwg.mxu0
        %v1120 = vsel %vm1073, %v1115, -inf
        %1121 = vmax.xlane.f32.xlu0 %v1120
        %v1122 = vpop.xlane.xlu0 %1121
        %v1123 = vsub.f32 %v1115, %v1122
        %v1124 = vmul.f32 %v1123, 1.442695
        %v1125 = vpow.pop %v1124
        %v1126 = vsel %vm1073, %v1125, 0.0
        %1127 = vadd.xlane.f32.xlu0 %v1126
        %v1128 = vpop.xlane.xlu0 %1127
        %v1129 = vrcp.pop %v1128
        %v1130 = vmul.f32 1.0, %v1129
        %v1131 = vmul.f32 %v1125, %v1130
        %v1132 = vsel %vm1073, %v1131, 0.0
        %1133 = vst [vmem:[%s909] sm:$0xff] %v1132
        %v1134 = vpack.c.bf16 %v1131, %v1131
        %1136 = vrot.lane.b32.xlu0 %v1072, 96
        %v1137 = vpop.permute.xlu0 %1136
        %v1139 = vsel %vm1073, %v1134, 0
        %vm1141 = vcmask 1043456
        %v1143 = vsel %vm1141, %v1137, 0
        %1145 = vmatprep.subr.bf16.mxu0 0
        %1146 = vmatpush1.bf16.msra.mxu0 %v1143
        %1147 = vmatprep.subr.bf16.mxu0 0
        %1148 = vmatpush1.bf16.msra.mxu0 0
        %1149 = vmatprep.subr.bf16.mxu0 0
        %1150 = vmatpush1.bf16.msra.mxu0 0
        %1151 = vmatprep.subr.bf16.mxu0 0
        %1152 = vmatpush1.bf16.msra.mxu0 0
        %1153 = vmatprep.subr.bf16.mxu0 0
        %1154 = vmatpush1.bf16.msra.mxu0 0
        %1155 = vmatprep.subr.bf16.mxu0 0
        %1156 = vmatpush1.bf16.msra.mxu0 0
        %1157 = vmatprep.subr.bf16.mxu0 0
        %1158 = vmatpush1.bf16.msra.mxu0 0
        %1159 = vmatprep.subr.bf16.mxu0 0
        %1160 = vmatpush1.bf16.msra.mxu0 0
        %1161 = vmatprep.subr.bf16.mxu0 0
        %1162 = vmatpush1.bf16.msra.mxu0 0
        %1163 = vmatprep.subr.bf16.mxu0 0
        %1164 = vmatpush1.bf16.msra.mxu0 0
        %1165 = vmatprep.subr.bf16.mxu0 0
        %1166 = vmatpush1.bf16.msra.mxu0 0
        %1167 = vmatprep.subr.bf16.mxu0 0
        %1168 = vmatpush1.bf16.msra.mxu0 0
        %1169 = vmatprep.subr.bf16.mxu0 0
        %1170 = vmatpush1.bf16.msra.mxu0 0
        %1171 = vmatprep.subr.bf16.mxu0 0
        %1172 = vmatpush1.bf16.msra.mxu0 0
        %1173 = vmatprep.subr.bf16.mxu0 0
        %1174 = vmatpush1.bf16.msra.mxu0 0
        %1175 = vmatprep.subr.bf16.mxu0 0
        %1176 = vmatpush1.bf16.msra.mxu0 0
        %1177 = vmatprep.mubr.bf16.mxu0 0
        %1178 = vmatmul.mubr.bf16.gmra.mrb[0].mxu0 %v1139
        %v1179 = vpop.f32.mrb[0].mxu0
        %v1180 = vadd.f32 0.0, %v1179
        %v1181 = vpop.f32.mrb[0].mxu0
        %v1182 = vpop.f32.mrb[0].mxu0
        %v1183 = vpop.f32.mrb[0].mxu0
        %1184 = vdwg.mxu0
        %1186 = vrot.lane.b32.xlu0 %v1071, 120
        %v1187 = vpop.permute.xlu0 %1186
        %1188 = vrot.lane.b32.xlu0 %v1072, 120
        %v1189 = vpop.permute.xlu0 %1188
        %v1191 = vsel %vm1073, %v1187, 0
        %v1194 = vsel %vm1073, %v1189, 0
        %1196 = vmatprep.subr.bf16.mxu0 0
        %1197 = vmatpush1.bf16.xpose.msra.mxu0 %v1194
        %1198 = vmatprep.subr.bf16.mxu0 0
        %1199 = vmatpush1.bf16.xpose.msra.mxu0 0
        %1200 = vmatprep.subr.bf16.mxu0 0
        %1201 = vmatpush1.bf16.xpose.msra.mxu0 0
        %1202 = vmatprep.subr.bf16.mxu0 0
        %1203 = vmatpush1.bf16.xpose.msra.mxu0 0
        %1204 = vmatprep.subr.bf16.mxu0 0
        %1205 = vmatpush1.bf16.xpose.msra.mxu0 0
        %1206 = vmatprep.subr.bf16.mxu0 0
        %1207 = vmatpush1.bf16.xpose.msra.mxu0 0
        %1208 = vmatprep.subr.bf16.mxu0 0
        %1209 = vmatpush1.bf16.xpose.msra.mxu0 0
        %1210 = vmatprep.subr.bf16.mxu0 0
        %1211 = vmatpush1.bf16.xpose.msra.mxu0 0
        %1212 = vmatprep.subr.bf16.mxu0 0
        %1213 = vmatpush1.bf16.xpose.msra.mxu0 0
        %1214 = vmatprep.subr.bf16.mxu0 0
        %1215 = vmatpush1.bf16.xpose.msra.mxu0 0
        %1216 = vmatprep.subr.bf16.mxu0 0
        %1217 = vmatpush1.bf16.xpose.msra.mxu0 0
        %1218 = vmatprep.subr.bf16.mxu0 0
        %1219 = vmatpush1.bf16.xpose.msra.mxu0 0
        %1220 = vmatprep.subr.bf16.mxu0 0
        %1221 = vmatpush1.bf16.xpose.msra.mxu0 0
        %1222 = vmatprep.subr.bf16.mxu0 0
        %1223 = vmatpush1.bf16.xpose.msra.mxu0 0
        %1224 = vmatprep.subr.bf16.mxu0 0
        %1225 = vmatpush1.bf16.xpose.msra.mxu0 0
        %1226 = vmatprep.subr.bf16.mxu0 0
        %1227 = vmatpush1.bf16.xpose.msra.mxu0 0
        %1228 = vmatprep.mubr.bf16.mxu0 0
        %1229 = vmatmul.mubr.bf16.gmra.mrb[0].mxu0 %v1191
        %v1230 = vpop.f32.mrb[0].mxu0
        %v1231 = vadd.f32 0.0, %v1230
        %v1232 = vpop.f32.mrb[0].mxu0
        %v1233 = vpop.f32.mrb[0].mxu0
        %v1234 = vpop.f32.mrb[0].mxu0
        %1235 = vdwg.mxu0
        %v1236 = vsel %vm1073, %v1231, -inf
        %1237 = vmax.xlane.f32.xlu0 %v1236
        %v1238 = vpop.xlane.xlu0 %1237
        %v1239 = vsub.f32 %v1231, %v1238
        %v1240 = vmul.f32 %v1239, 1.442695
        %v1241 = vpow.pop %v1240
        %v1242 = vsel %vm1073, %v1241, 0.0
        %1243 = vadd.xlane.f32.xlu0 %v1242
        %v1244 = vpop.xlane.xlu0 %1243
        %v1245 = vrcp.pop %v1244
        %v1246 = vmul.f32 1.0, %v1245
        %v1247 = vmul.f32 %v1241, %v1246
        %v1248 = vsel %vm1073, %v1247, 0.0
        %s1249 = scalar_lea.vmem %s909, 8 [#allocation20]
        %1250 = vst [vmem:[%s1249] sm:$0xff] %v1248
        %v1251 = vpack.c.bf16 %v1247, %v1247
        %1252 = vrot.lane.b32.xlu0 %v1072, 88
        %v1253 = vpop.permute.xlu0 %1252
        %v1255 = vsel %vm1073, %v1251, 0
        %v1258 = vsel %vm1141, %v1253, 0
        %1260 = vmatprep.subr.bf16.mxu0 0
        %1261 = vmatpush1.bf16.msra.mxu0 %v1258
        %1262 = vmatprep.subr.bf16.mxu0 0
        %1263 = vmatpush1.bf16.msra.mxu0 0
        %1264 = vmatprep.subr.bf16.mxu0 0
        %1265 = vmatpush1.bf16.msra.mxu0 0
        %1266 = vmatprep.subr.bf16.mxu0 0
        %1267 = vmatpush1.bf16.msra.mxu0 0
        %1268 = vmatprep.subr.bf16.mxu0 0
        %1269 = vmatpush1.bf16.msra.mxu0 0
        %1270 = vmatprep.subr.bf16.mxu0 0
        %1271 = vmatpush1.bf16.msra.mxu0 0
        %1272 = vmatprep.subr.bf16.mxu0 0
        %1273 = vmatpush1.bf16.msra.mxu0 0
        %1274 = vmatprep.subr.bf16.mxu0 0
        %1275 = vmatpush1.bf16.msra.mxu0 0
        %1276 = vmatprep.subr.bf16.mxu0 0
        %1277 = vmatpush1.bf16.msra.mxu0 0
        %1278 = vmatprep.subr.bf16.mxu0 0
        %1279 = vmatpush1.bf16.msra.mxu0 0
        %1280 = vmatprep.subr.bf16.mxu0 0
        %1281 = vmatpush1.bf16.msra.mxu0 0
        %1282 = vmatprep.subr.bf16.mxu0 0
        %1283 = vmatpush1.bf16.msra.mxu0 0
        %1284 = vmatprep.subr.bf16.mxu0 0
        %1285 = vmatpush1.bf16.msra.mxu0 0
        %1286 = vmatprep.subr.bf16.mxu0 0
        %1287 = vmatpush1.bf16.msra.mxu0 0
        %1288 = vmatprep.subr.bf16.mxu0 0
        %1289 = vmatpush1.bf16.msra.mxu0 0
        %1290 = vmatprep.subr.bf16.mxu0 0
        %1291 = vmatpush1.bf16.msra.mxu0 0
        %1292 = vmatprep.mubr.bf16.mxu0 0
        %1293 = vmatmul.mubr.bf16.gmra.mrb[0].mxu0 %v1255
        %v1294 = vpop.f32.mrb[0].mxu0
        %v1295 = vadd.f32 0.0, %v1294
        %v1296 = vpop.f32.mrb[0].mxu0
        %v1297 = vpop.f32.mrb[0].mxu0
        %v1298 = vpop.f32.mrb[0].mxu0
        %1299 = vdwg.mxu0
        %1300 = vrot.lane.b32.xlu0 %v1071, 112
        %v1301 = vpop.permute.xlu0 %1300
        %1302 = vrot.lane.b32.xlu0 %v1072, 112
        %v1303 = vpop.permute.xlu0 %1302
        %v1305 = vsel %vm1073, %v1301, 0
        %v1308 = vsel %vm1073, %v1303, 0
        %1310 = vmatprep.subr.bf16.mxu0 0
        %1311 = vmatpush1.bf16.xpose.msra.mxu0 %v1308
        %1312 = vmatprep.subr.bf16.mxu0 0
        %1313 = vmatpush1.bf16.xpose.msra.mxu0 0
        %1314 = vmatprep.subr.bf16.mxu0 0
        %1315 = vmatpush1.bf16.xpose.msra.mxu0 0
        %1316 = vmatprep.subr.bf16.mxu0 0
        %1317 = vmatpush1.bf16.xpose.msra.mxu0 0
        %1318 = vmatprep.subr.bf16.mxu0 0
        %1319 = vmatpush1.bf16.xpose.msra.mxu0 0
        %1320 = vmatprep.subr.bf16.mxu0 0
        %1321 = vmatpush1.bf16.xpose.msra.mxu0 0
        %1322 = vmatprep.subr.bf16.mxu0 0
        %1323 = vmatpush1.bf16.xpose.msra.mxu0 0
        %1324 = vmatprep.subr.bf16.mxu0 0
        %1325 = vmatpush1.bf16.xpose.msra.mxu0 0
        %1326 = vmatprep.subr.bf16.mxu0 0
        %1327 = vmatpush1.bf16.xpose.msra.mxu0 0
        %1328 = vmatprep.subr.bf16.mxu0 0
        %1329 = vmatpush1.bf16.xpose.msra.mxu0 0
        %1330 = vmatprep.subr.bf16.mxu0 0
        %1331 = vmatpush1.bf16.xpose.msra.mxu0 0
        %1332 = vmatprep.subr.bf16.mxu0 0
        %1333 = vmatpush1.bf16.xpose.msra.mxu0 0
        %1334 = vmatprep.subr.bf16.mxu0 0
        %1335 = vmatpush1.bf16.xpose.msra.mxu0 0
        %1336 = vmatprep.subr.bf16.mxu0 0
        %1337 = vmatpush1.bf16.xpose.msra.mxu0 0
        %1338 = vmatprep.subr.bf16.mxu0 0
        %1339 = vmatpush1.bf16.xpose.msra.mxu0 0
        %1340 = vmatprep.subr.bf16.mxu0 0
        %1341 = vmatpush1.bf16.xpose.msra.mxu0 0
        %1342 = vmatprep.mubr.bf16.mxu0 0
        %1343 = vmatmul.mubr.bf16.gmra.mrb[0].mxu0 %v1305
        %v1344 = vpop.f32.mrb[0].mxu0
        %v1345 = vadd.f32 0.0, %v1344
        %v1346 = vpop.f32.mrb[0].mxu0
        %v1347 = vpop.f32.mrb[0].mxu0
        %v1348 = vpop.f32.mrb[0].mxu0
        %1349 = vdwg.mxu0
        %v1350 = vsel %vm1073, %v1345, -inf
        %1351 = vmax.xlane.f32.xlu0 %v1350
        %v1352 = vpop.xlane.xlu0 %1351
        %v1353 = vsub.f32 %v1345, %v1352
        %v1354 = vmul.f32 %v1353, 1.442695
        %v1355 = vpow.pop %v1354
        %v1356 = vsel %vm1073, %v1355, 0.0
        %1357 = vadd.xlane.f32.xlu0 %v1356
        %v1358 = vpop.xlane.xlu0 %1357
        %v1359 = vrcp.pop %v1358
        %v1360 = vmul.f32 1.0, %v1359
        %v1361 = vmul.f32 %v1355, %v1360
        %v1362 = vsel %vm1073, %v1361, 0.0
        %s1363 = scalar_lea.vmem %s909, 16 [#allocation20]
        %1364 = vst [vmem:[%s1363] sm:$0xff] %v1362
        %v1365 = vpack.c.bf16 %v1361, %v1361
        %1366 = vrot.lane.b32.xlu0 %v1072, 80
        %v1367 = vpop.permute.xlu0 %1366
        %v1369 = vsel %vm1073, %v1365, 0
        %v1372 = vsel %vm1141, %v1367, 0
        %1374 = vmatprep.subr.bf16.mxu0 0
        %1375 = vmatpush1.bf16.msra.mxu0 %v1372
        %1376 = vmatprep.subr.bf16.mxu0 0
        %1377 = vmatpush1.bf16.msra.mxu0 0
        %1378 = vmatprep.subr.bf16.mxu0 0
        %1379 = vmatpush1.bf16.msra.mxu0 0
        %1380 = vmatprep.subr.bf16.mxu0 0
        %1381 = vmatpush1.bf16.msra.mxu0 0
        %1382 = vmatprep.subr.bf16.mxu0 0
        %1383 = vmatpush1.bf16.msra.mxu0 0
        %1384 = vmatprep.subr.bf16.mxu0 0
        %1385 = vmatpush1.bf16.msra.mxu0 0
        %1386 = vmatprep.subr.bf16.mxu0 0
        %1387 = vmatpush1.bf16.msra.mxu0 0
        %1388 = vmatprep.subr.bf16.mxu0 0
        %1389 = vmatpush1.bf16.msra.mxu0 0
        %1390 = vmatprep.subr.bf16.mxu0 0
        %1391 = vmatpush1.bf16.msra.mxu0 0
        %1392 = vmatprep.subr.bf16.mxu0 0
        %1393 = vmatpush1.bf16.msra.mxu0 0
        %1394 = vmatprep.subr.bf16.mxu0 0
        %1395 = vmatpush1.bf16.msra.mxu0 0
        %1396 = vmatprep.subr.bf16.mxu0 0
        %1397 = vmatpush1.bf16.msra.mxu0 0
        %1398 = vmatprep.subr.bf16.mxu0 0
        %1399 = vmatpush1.bf16.msra.mxu0 0
        %1400 = vmatprep.subr.bf16.mxu0 0
        %1401 = vmatpush1.bf16.msra.mxu0 0
        %1402 = vmatprep.subr.bf16.mxu0 0
        %1403 = vmatpush1.bf16.msra.mxu0 0
        %1404 = vmatprep.subr.bf16.mxu0 0
        %1405 = vmatpush1.bf16.msra.mxu0 0
        %1406 = vmatprep.mubr.bf16.mxu0 0
        %1407 = vmatmul.mubr.bf16.gmra.mrb[0].mxu0 %v1369
        %v1408 = vpop.f32.mrb[0].mxu0
        %v1409 = vadd.f32 0.0, %v1408
        %v1410 = vpop.f32.mrb[0].mxu0
        %v1411 = vpop.f32.mrb[0].mxu0
        %v1412 = vpop.f32.mrb[0].mxu0
        %1413 = vdwg.mxu0
        %1414 = vrot.lane.b32.xlu0 %v1071, 104
        %v1415 = vpop.permute.xlu0 %1414
        %1416 = vrot.lane.b32.xlu0 %v1072, 104
        %v1417 = vpop.permute.xlu0 %1416
        %v1419 = vsel %vm1073, %v1415, 0
        %v1422 = vsel %vm1073, %v1417, 0
        %1424 = vmatprep.subr.bf16.mxu0 0
        %1425 = vmatpush1.bf16.xpose.msra.mxu0 %v1422
        %1426 = vmatprep.subr.bf16.mxu0 0
        %1427 = vmatpush1.bf16.xpose.msra.mxu0 0
        %1428 = vmatprep.subr.bf16.mxu0 0
        %1429 = vmatpush1.bf16.xpose.msra.mxu0 0
        %1430 = vmatprep.subr.bf16.mxu0 0
        %1431 = vmatpush1.bf16.xpose.msra.mxu0 0
        %1432 = vmatprep.subr.bf16.mxu0 0
        %1433 = vmatpush1.bf16.xpose.msra.mxu0 0
        %1434 = vmatprep.subr.bf16.mxu0 0
        %1435 = vmatpush1.bf16.xpose.msra.mxu0 0
        %1436 = vmatprep.subr.bf16.mxu0 0
        %1437 = vmatpush1.bf16.xpose.msra.mxu0 0
        %1438 = vmatprep.subr.bf16.mxu0 0
        %1439 = vmatpush1.bf16.xpose.msra.mxu0 0
        %1440 = vmatprep.subr.bf16.mxu0 0
        %1441 = vmatpush1.bf16.xpose.msra.mxu0 0
        %1442 = vmatprep.subr.bf16.mxu0 0
        %1443 = vmatpush1.bf16.xpose.msra.mxu0 0
        %1444 = vmatprep.subr.bf16.mxu0 0
        %1445 = vmatpush1.bf16.xpose.msra.mxu0 0
        %1446 = vmatprep.subr.bf16.mxu0 0
        %1447 = vmatpush1.bf16.xpose.msra.mxu0 0
        %1448 = vmatprep.subr.bf16.mxu0 0
        %1449 = vmatpush1.bf16.xpose.msra.mxu0 0
        %1450 = vmatprep.subr.bf16.mxu0 0
        %1451 = vmatpush1.bf16.xpose.msra.mxu0 0
        %1452 = vmatprep.subr.bf16.mxu0 0
        %1453 = vmatpush1.bf16.xpose.msra.mxu0 0
        %1454 = vmatprep.subr.bf16.mxu0 0
        %1455 = vmatpush1.bf16.xpose.msra.mxu0 0
        %1456 = vmatprep.mubr.bf16.mxu0 0
        %1457 = vmatmul.mubr.bf16.gmra.mrb[0].mxu0 %v1419
        %v1458 = vpop.f32.mrb[0].mxu0
        %v1459 = vadd.f32 0.0, %v1458
        %v1460 = vpop.f32.mrb[0].mxu0
        %v1461 = vpop.f32.mrb[0].mxu0
        %v1462 = vpop.f32.mrb[0].mxu0
        %1463 = vdwg.mxu0
        %v1464 = vsel %vm1073, %v1459, -inf
        %1465 = vmax.xlane.f32.xlu0 %v1464
        %v1466 = vpop.xlane.xlu0 %1465
        %v1467 = vsub.f32 %v1459, %v1466
        %v1468 = vmul.f32 %v1467, 1.442695
        %v1469 = vpow.pop %v1468
        %v1470 = vsel %vm1073, %v1469, 0.0
        %1471 = vadd.xlane.f32.xlu0 %v1470
        %v1472 = vpop.xlane.xlu0 %1471
        %v1473 = vrcp.pop %v1472
        %v1474 = vmul.f32 1.0, %v1473
        %v1475 = vmul.f32 %v1469, %v1474
        %v1476 = vsel %vm1073, %v1475, 0.0
        %s1477 = scalar_lea.vmem %s909, 24 [#allocation20]
        %1478 = vst [vmem:[%s1477] sm:$0xff] %v1476
        %v1479 = vpack.c.bf16 %v1475, %v1475
        %1480 = vrot.lane.b32.xlu0 %v1072, 72
        %v1481 = vpop.permute.xlu0 %1480
        %v1483 = vsel %vm1073, %v1479, 0
        %v1486 = vsel %vm1141, %v1481, 0
        %1488 = vmatprep.subr.bf16.mxu0 0
        %1489 = vmatpush1.bf16.msra.mxu0 %v1486
        %1490 = vmatprep.subr.bf16.mxu0 0
        %1491 = vmatpush1.bf16.msra.mxu0 0
        %1492 = vmatprep.subr.bf16.mxu0 0
        %1493 = vmatpush1.bf16.msra.mxu0 0
        %1494 = vmatprep.subr.bf16.mxu0 0
        %1495 = vmatpush1.bf16.msra.mxu0 0
        %1496 = vmatprep.subr.bf16.mxu0 0
        %1497 = vmatpush1.bf16.msra.mxu0 0
        %1498 = vmatprep.subr.bf16.mxu0 0
        %1499 = vmatpush1.bf16.msra.mxu0 0
        %1500 = vmatprep.subr.bf16.mxu0 0
        %1501 = vmatpush1.bf16.msra.mxu0 0
        %1502 = vmatprep.subr.bf16.mxu0 0
        %1503 = vmatpush1.bf16.msra.mxu0 0
        %1504 = vmatprep.subr.bf16.mxu0 0
        %1505 = vmatpush1.bf16.msra.mxu0 0
        %1506 = vmatprep.subr.bf16.mxu0 0
        %1507 = vmatpush1.bf16.msra.mxu0 0
        %1508 = vmatprep.subr.bf16.mxu0 0
        %1509 = vmatpush1.bf16.msra.mxu0 0
        %1510 = vmatprep.subr.bf16.mxu0 0
        %1511 = vmatpush1.bf16.msra.mxu0 0
        %1512 = vmatprep.subr.bf16.mxu0 0
        %1513 = vmatpush1.bf16.msra.mxu0 0
        %1514 = vmatprep.subr.bf16.mxu0 0
        %1515 = vmatpush1.bf16.msra.mxu0 0
        %1516 = vmatprep.subr.bf16.mxu0 0
        %1517 = vmatpush1.bf16.msra.mxu0 0
        %1518 = vmatprep.subr.bf16.mxu0 0
        %1519 = vmatpush1.bf16.msra.mxu0 0
        %1520 = vmatprep.mubr.bf16.mxu0 0
        %1521 = vmatmul.mubr.bf16.gmra.mrb[0].mxu0 %v1483
        %v1522 = vpop.f32.mrb[0].mxu0
        %v1523 = vadd.f32 0.0, %v1522
        %v1524 = vpop.f32.mrb[0].mxu0
        %v1525 = vpop.f32.mrb[0].mxu0
        %v1526 = vpop.f32.mrb[0].mxu0
        %1527 = vdwg.mxu0
        %1529 = vrot.lane.b32.xlu0 %v1295, 8
        %v1530 = vpop.permute.xlu0 %1529
        %1533 = vrot.lane.b32.xlu0 %v1409, 16
        %v1534 = vpop.permute.xlu0 %1533
        %1537 = vrot.lane.b32.xlu0 %v1523, 24
        %v1538 = vpop.permute.xlu0 %1537
        %v1540 = vsel %vm1073, %v1180, %v1530
        %vm1541 = vcmask 130048
        %v1542 = vsel %vm1541, %v1540, %v1534
        %vm1543 = vcmask 195584
        %v1544 = vsel %vm1543, %v1542, %v1538
        %v1545 = vadd.f32 %v1544, %v930
        %v1546 = vsel %vm965, %v1545, 0.0
        %1547 = vadd.xlane.f32.xlu0 %v1546
        %v1548 = vpop.xlane.xlu0 %1547
        %v1549 = vrcp.pop 32.0
        %v1550 = vmul.f32 %v1548, %v1549
        %v1551 = vsub.f32 %v1545, %v1550
        %v1552 = vmul.f32 %v1551, %v1551
        %v1553 = vsel %vm965, %v1552, 0.0
        %1554 = vadd.xlane.f32.xlu0 %v1553
        %v1555 = vpop.xlane.xlu0 %1554
        %v1556 = vmul.f32 %v1555, %v1549
        %v1557 = vadd.f32 %v1556, 1e-05
        %v1558 = vrsqrt.pop %v1557
        %v1559 = vmul.f32 %v1551, %v1558
        %v1561 = vlaneseq
        %v1562 = vshrl.u32 %v1561, 7
        %v1563 = vsub.s32 0, %v1562
        %v1564 = vrot.slane %v944, %v1563
        %v1566 = vmul.f32 %v1559, %v1564
        %v1568 = vlaneseq
        %v1569 = vshrl.u32 %v1568, 7
        %v1570 = vsub.s32 0, %v1569
        %v1571 = vrot.slane %v945, %v1570
        %v1573 = vadd.f32 %v1566, %v1571
        %v1574 = vld [vmem:[%s9] sm:$0xf]
        %v1575 = vld [vmem:[%s9 + $0x4] sm:$0xf]
        %v1576 = vld [vmem:[%s9 + $0x8] sm:$0xf]
        %v1577 = vld [vmem:[%s9 + $0xc] sm:$0xf]
        %v1578 = vld [vmem:[#allocation13] sm:$0x1]
        %v1579 = vld [vmem:[#allocation14] sm:$0xf]
        %v1580 = vld [vmem:[#allocation14 + $0x4] sm:$0xf]
        %v1581 = vld [vmem:[#allocation14 + $0x8] sm:$0xf]
        %v1582 = vld [vmem:[#allocation14 + $0xc] sm:$0xf]
        %v1583 = vld [vmem:[#allocation16] sm:$0x1]
        %v1584 = vld [vmem:[#allocation17] sm:$0x1]
        %v1585 = vld [vmem:[%s14] sm:$0x1]
        %v1586 = vpack.c.bf16 %v1573, %v1573
        %v1588 = vlaneseq
        %v1589 = vshrl.u32 %v1588, 7
        %v1590 = vsub.s32 0, %v1589
        %v1591 = vrot.slane %v1578, %v1590
        %v1597 = vunpack.c.l.b16 %v1574
        %v1598 = vunpack.c.l.b16 %v1575
        %v1599 = vunpack.c.l.b16 %v1576
        %v1600 = vunpack.c.l.b16 %v1577
        %v1601 = vpack.c.b16 %v1598, %v1597
        %v1602 = vpack.c.b16 %v1600, %v1599
        %v1606 = vsel %vm965, %v1586, 0
        %1608 = vmatprep.subr.bf16.mxu0 0
        %1609 = vmatpush1.bf16.msra.mxu0 %v1601
        %1610 = vmatprep.subr.bf16.mxu0 0
        %1611 = vmatpush1.bf16.msra.mxu0 %v1602
        %1612 = vmatprep.subr.bf16.mxu0 0
        %1613 = vmatpush1.bf16.msra.mxu0 0
        %1614 = vmatprep.subr.bf16.mxu0 0
        %1615 = vmatpush1.bf16.msra.mxu0 0
        %1616 = vmatprep.subr.bf16.mxu0 0
        %1617 = vmatpush1.bf16.msra.mxu0 0
        %1618 = vmatprep.subr.bf16.mxu0 0
        %1619 = vmatpush1.bf16.msra.mxu0 0
        %1620 = vmatprep.subr.bf16.mxu0 0
        %1621 = vmatpush1.bf16.msra.mxu0 0
        %1622 = vmatprep.subr.bf16.mxu0 0
        %1623 = vmatpush1.bf16.msra.mxu0 0
        %1624 = vmatprep.subr.bf16.mxu0 0
        %1625 = vmatpush1.bf16.msra.mxu0 0
        %1626 = vmatprep.subr.bf16.mxu0 0
        %1627 = vmatpush1.bf16.msra.mxu0 0
        %1628 = vmatprep.subr.bf16.mxu0 0
        %1629 = vmatpush1.bf16.msra.mxu0 0
        %1630 = vmatprep.subr.bf16.mxu0 0
        %1631 = vmatpush1.bf16.msra.mxu0 0
        %1632 = vmatprep.subr.bf16.mxu0 0
        %1633 = vmatpush1.bf16.msra.mxu0 0
        %1634 = vmatprep.subr.bf16.mxu0 0
        %1635 = vmatpush1.bf16.msra.mxu0 0
        %1636 = vmatprep.subr.bf16.mxu0 0
        %1637 = vmatpush1.bf16.msra.mxu0 0
        %1638 = vmatprep.subr.bf16.mxu0 0
        %1639 = vmatpush1.bf16.msra.mxu0 0
        %1640 = vmatprep.mubr.bf16.mxu0 0
        %1641 = vmatmul.mubr.bf16.gmra.mrb[0].mxu0 %v1606
        %v1642 = vpop.f32.mrb[0].mxu0
        %v1643 = vadd.f32 %v1591, %v1642
        %v1644 = vpop.f32.mrb[0].mxu0
        %v1645 = vpop.f32.mrb[0].mxu0
        %v1646 = vpop.f32.mrb[0].mxu0
        %1647 = vdwg.mxu0
        %v1648 = vpack.c.bf16 %v933, %v932
        %v1650 = vlaneseq
        %v1651 = vshrl.u32 %v1650, 7
        %v1652 = vsub.s32 0, %v1651
        %v1653 = vrot.slane %v1583, %v1652
        %v1659 = vunpack.c.l.b16 %v1579
        %v1660 = vunpack.c.l.b16 %v1580
        %v1661 = vunpack.c.l.b16 %v1581
        %v1662 = vunpack.c.l.b16 %v1582
        %v1663 = vpack.c.b16 %v1660, %v1659
        %v1664 = vpack.c.b16 %v1662, %v1661
        %v1668 = vsel %vm965, %v1648, 0
        %1670 = vmatprep.subr.bf16.mxu0 0
        %1671 = vmatpush1.bf16.msra.mxu0 %v1663
        %1672 = vmatprep.subr.bf16.mxu0 0
        %1673 = vmatpush1.bf16.msra.mxu0 %v1664
        %1674 = vmatprep.subr.bf16.mxu0 0
        %1675 = vmatpush1.bf16.msra.mxu0 0
        %1676 = vmatprep.subr.bf16.mxu0 0
        %1677 = vmatpush1.bf16.msra.mxu0 0
        %1678 = vmatprep.subr.bf16.mxu0 0
        %1679 = vmatpush1.bf16.msra.mxu0 0
        %1680 = vmatprep.subr.bf16.mxu0 0
        %1681 = vmatpush1.bf16.msra.mxu0 0
        %1682 = vmatprep.subr.bf16.mxu0 0
        %1683 = vmatpush1.bf16.msra.mxu0 0
        %1684 = vmatprep.subr.bf16.mxu0 0
        %1685 = vmatpush1.bf16.msra.mxu0 0
        %1686 = vmatprep.subr.bf16.mxu0 0
        %1687 = vmatpush1.bf16.msra.mxu0 0
        %1688 = vmatprep.subr.bf16.mxu0 0
        %1689 = vmatpush1.bf16.msra.mxu0 0
        %1690 = vmatprep.subr.bf16.mxu0 0
        %1691 = vmatpush1.bf16.msra.mxu0 0
        %1692 = vmatprep.subr.bf16.mxu0 0
        %1693 = vmatpush1.bf16.msra.mxu0 0
        %1694 = vmatprep.subr.bf16.mxu0 0
        %1695 = vmatpush1.bf16.msra.mxu0 0
        %1696 = vmatprep.subr.bf16.mxu0 0
        %1697 = vmatpush1.bf16.msra.mxu0 0
        %1698 = vmatprep.subr.bf16.mxu0 0
        %1699 = vmatpush1.bf16.msra.mxu0 0
        %1700 = vmatprep.subr.bf16.mxu0 0
        %1701 = vmatpush1.bf16.msra.mxu0 0
        %1702 = vmatprep.mubr.bf16.mxu0 0
        %1703 = vmatmul.mubr.bf16.gmra.mrb[0].mxu0 %v1668
        %v1704 = vpop.f32.mrb[0].mxu0
        %v1705 = vadd.f32 %v1653, %v1704
        %v1706 = vpop.f32.mrb[0].mxu0
        %v1707 = vpop.f32.mrb[0].mxu0
        %v1708 = vadd.f32 %v1653, %v1707
        %v1709 = vpop.f32.mrb[0].mxu0
        %1710 = vdwg.mxu0
        %v1711 = vpack.c.bf16 %v1643, %v1643
        %v1712 = vpack.c.bf16 %v1708, %v1705
        %v1714 = vsel %vm1073, %v1711, 0
        %v1717 = vsel %vm1073, %v1712, 0
        %1719 = vmatprep.subr.bf16.mxu0 0
        %1720 = vmatpush1.bf16.xpose.msra.mxu0 %v1717
        %1721 = vmatprep.subr.bf16.mxu0 0
        %1722 = vmatpush1.bf16.xpose.msra.mxu0 0
        %1723 = vmatprep.subr.bf16.mxu0 0
        %1724 = vmatpush1.bf16.xpose.msra.mxu0 0
        %1725 = vmatprep.subr.bf16.mxu0 0
        %1726 = vmatpush1.bf16.xpose.msra.mxu0 0
        %1727 = vmatprep.subr.bf16.mxu0 0
        %1728 = vmatpush1.bf16.xpose.msra.mxu0 0
        %1729 = vmatprep.subr.bf16.mxu0 0
        %1730 = vmatpush1.bf16.xpose.msra.mxu0 0
        %1731 = vmatprep.subr.bf16.mxu0 0
        %1732 = vmatpush1.bf16.xpose.msra.mxu0 0
        %1733 = vmatprep.subr.bf16.mxu0 0
        %1734 = vmatpush1.bf16.xpose.msra.mxu0 0
        %1735 = vmatprep.subr.bf16.mxu0 0
        %1736 = vmatpush1.bf16.xpose.msra.mxu0 0
        %1737 = vmatprep.subr.bf16.mxu0 0
        %1738 = vmatpush1.bf16.xpose.msra.mxu0 0
        %1739 = vmatprep.subr.bf16.mxu0 0
        %1740 = vmatpush1.bf16.xpose.msra.mxu0 0
        %1741 = vmatprep.subr.bf16.mxu0 0
        %1742 = vmatpush1.bf16.xpose.msra.mxu0 0
        %1743 = vmatprep.subr.bf16.mxu0 0
        %1744 = vmatpush1.bf16.xpose.msra.mxu0 0
        %1745 = vmatprep.subr.bf16.mxu0 0
        %1746 = vmatpush1.bf16.xpose.msra.mxu0 0
        %1747 = vmatprep.subr.bf16.mxu0 0
        %1748 = vmatpush1.bf16.xpose.msra.mxu0 0
        %1749 = vmatprep.subr.bf16.mxu0 0
        %1750 = vmatpush1.bf16.xpose.msra.mxu0 0
        %1751 = vmatprep.mubr.bf16.mxu0 0
        %1752 = vmatmul.mubr.bf16.gmra.mrb[0].mxu0 %v1714
        %v1753 = vpop.f32.mrb[0].mxu0
        %v1754 = vadd.f32 0.0, %v1753
        %v1755 = vpop.f32.mrb[0].mxu0
        %v1756 = vpop.f32.mrb[0].mxu0
        %v1757 = vpop.f32.mrb[0].mxu0
        %1758 = vdwg.mxu0
        %v1759 = vsel %vm1541, %v1754, -inf
        %1760 = vmax.xlane.f32.xlu0 %v1759
        %v1761 = vpop.xlane.xlu0 %1760
        %v1762 = vsub.f32 %v1754, %v1761
        %v1763 = vmul.f32 %v1762, 1.442695
        %v1764 = vpow.pop %v1763
        %v1765 = vsel %vm1541, %v1764, 0.0
        %1766 = vadd.xlane.f32.xlu0 %v1765
        %v1767 = vpop.xlane.xlu0 %1766
        %v1768 = vrcp.pop %v1767
        %v1769 = vmul.f32 1.0, %v1768
        %v1770 = vmul.f32 %v1764, %v1769
        %v1771 = vsel %vm1541, %v1770, 0.0
        %1772 = vst [vmem:[%s916] sm:$0xff] %v1771
        %v1773 = vpack.c.bf16 %v1770, %v1770
        %1775 = vrot.lane.b32.xlu0 %v1712, 96
        %v1776 = vpop.permute.xlu0 %1775
        %v1779 = vsel %vm1541, %v1773, 0
        %1781 = vmatprep.subr.bf16.mxu0 0
        %1782 = vmatpush1.bf16.msra.mxu0 %v1776
        %1783 = vmatprep.subr.bf16.mxu0 0
        %1784 = vmatpush1.bf16.msra.mxu0 0
        %1785 = vmatprep.subr.bf16.mxu0 0
        %1786 = vmatpush1.bf16.msra.mxu0 0
        %1787 = vmatprep.subr.bf16.mxu0 0
        %1788 = vmatpush1.bf16.msra.mxu0 0
        %1789 = vmatprep.subr.bf16.mxu0 0
        %1790 = vmatpush1.bf16.msra.mxu0 0
        %1791 = vmatprep.subr.bf16.mxu0 0
        %1792 = vmatpush1.bf16.msra.mxu0 0
        %1793 = vmatprep.subr.bf16.mxu0 0
        %1794 = vmatpush1.bf16.msra.mxu0 0
        %1795 = vmatprep.subr.bf16.mxu0 0
        %1796 = vmatpush1.bf16.msra.mxu0 0
        %1797 = vmatprep.subr.bf16.mxu0 0
        %1798 = vmatpush1.bf16.msra.mxu0 0
        %1799 = vmatprep.subr.bf16.mxu0 0
        %1800 = vmatpush1.bf16.msra.mxu0 0
        %1801 = vmatprep.subr.bf16.mxu0 0
        %1802 = vmatpush1.bf16.msra.mxu0 0
        %1803 = vmatprep.subr.bf16.mxu0 0
        %1804 = vmatpush1.bf16.msra.mxu0 0
        %1805 = vmatprep.subr.bf16.mxu0 0
        %1806 = vmatpush1.bf16.msra.mxu0 0
        %1807 = vmatprep.subr.bf16.mxu0 0
        %1808 = vmatpush1.bf16.msra.mxu0 0
        %1809 = vmatprep.subr.bf16.mxu0 0
        %1810 = vmatpush1.bf16.msra.mxu0 0
        %1811 = vmatprep.subr.bf16.mxu0 0
        %1812 = vmatpush1.bf16.msra.mxu0 0
        %1813 = vmatprep.mubr.bf16.mxu0 0
        %1814 = vmatmul.mubr.bf16.gmra.mrb[0].mxu0 %v1779
        %v1815 = vpop.f32.mrb[0].mxu0
        %v1816 = vadd.f32 0.0, %v1815
        %v1817 = vpop.f32.mrb[0].mxu0
        %v1818 = vpop.f32.mrb[0].mxu0
        %v1819 = vpop.f32.mrb[0].mxu0
        %1820 = vdwg.mxu0
        %1822 = vrot.lane.b32.xlu0 %v1711, 120
        %v1823 = vpop.permute.xlu0 %1822
        %1824 = vrot.lane.b32.xlu0 %v1712, 120
        %v1825 = vpop.permute.xlu0 %1824
        %v1827 = vsel %vm1073, %v1823, 0
        %v1830 = vsel %vm1073, %v1825, 0
        %1832 = vmatprep.subr.bf16.mxu0 0
        %1833 = vmatpush1.bf16.xpose.msra.mxu0 %v1830
        %1834 = vmatprep.subr.bf16.mxu0 0
        %1835 = vmatpush1.bf16.xpose.msra.mxu0 0
        %1836 = vmatprep.subr.bf16.mxu0 0
        %1837 = vmatpush1.bf16.xpose.msra.mxu0 0
        %1838 = vmatprep.subr.bf16.mxu0 0
        %1839 = vmatpush1.bf16.xpose.msra.mxu0 0
        %1840 = vmatprep.subr.bf16.mxu0 0
        %1841 = vmatpush1.bf16.xpose.msra.mxu0 0
        %1842 = vmatprep.subr.bf16.mxu0 0
        %1843 = vmatpush1.bf16.xpose.msra.mxu0 0
        %1844 = vmatprep.subr.bf16.mxu0 0
        %1845 = vmatpush1.bf16.xpose.msra.mxu0 0
        %1846 = vmatprep.subr.bf16.mxu0 0
        %1847 = vmatpush1.bf16.xpose.msra.mxu0 0
        %1848 = vmatprep.subr.bf16.mxu0 0
        %1849 = vmatpush1.bf16.xpose.msra.mxu0 0
        %1850 = vmatprep.subr.bf16.mxu0 0
        %1851 = vmatpush1.bf16.xpose.msra.mxu0 0
        %1852 = vmatprep.subr.bf16.mxu0 0
        %1853 = vmatpush1.bf16.xpose.msra.mxu0 0
        %1854 = vmatprep.subr.bf16.mxu0 0
        %1855 = vmatpush1.bf16.xpose.msra.mxu0 0
        %1856 = vmatprep.subr.bf16.mxu0 0
        %1857 = vmatpush1.bf16.xpose.msra.mxu0 0
        %1858 = vmatprep.subr.bf16.mxu0 0
        %1859 = vmatpush1.bf16.xpose.msra.mxu0 0
        %1860 = vmatprep.subr.bf16.mxu0 0
        %1861 = vmatpush1.bf16.xpose.msra.mxu0 0
        %1862 = vmatprep.subr.bf16.mxu0 0
        %1863 = vmatpush1.bf16.xpose.msra.mxu0 0
        %1864 = vmatprep.mubr.bf16.mxu0 0
        %1865 = vmatmul.mubr.bf16.gmra.mrb[0].mxu0 %v1827
        %v1866 = vpop.f32.mrb[0].mxu0
        %v1867 = vadd.f32 0.0, %v1866
        %v1868 = vpop.f32.mrb[0].mxu0
        %v1869 = vpop.f32.mrb[0].mxu0
        %v1870 = vpop.f32.mrb[0].mxu0
        %1871 = vdwg.mxu0
        %v1872 = vsel %vm1541, %v1867, -inf
        %1873 = vmax.xlane.f32.xlu0 %v1872
        %v1874 = vpop.xlane.xlu0 %1873
        %v1875 = vsub.f32 %v1867, %v1874
        %v1876 = vmul.f32 %v1875, 1.442695
        %v1877 = vpow.pop %v1876
        %v1878 = vsel %vm1541, %v1877, 0.0
        %1879 = vadd.xlane.f32.xlu0 %v1878
        %v1880 = vpop.xlane.xlu0 %1879
        %v1881 = vrcp.pop %v1880
        %v1882 = vmul.f32 1.0, %v1881
        %v1883 = vmul.f32 %v1877, %v1882
        %v1884 = vsel %vm1541, %v1883, 0.0
        %s1885 = scalar_lea.vmem %s916, 8 [#allocation22]
        %1886 = vst [vmem:[%s1885] sm:$0xff] %v1884
        %v1887 = vpack.c.bf16 %v1883, %v1883
        %1888 = vrot.lane.b32.xlu0 %v1712, 88
        %v1889 = vpop.permute.xlu0 %1888
        %v1892 = vsel %vm1541, %v1887, 0
        %1894 = vmatprep.subr.bf16.mxu0 0
        %1895 = vmatpush1.bf16.msra.mxu0 %v1889
        %1896 = vmatprep.subr.bf16.mxu0 0
        %1897 = vmatpush1.bf16.msra.mxu0 0
        %1898 = vmatprep.subr.bf16.mxu0 0
        %1899 = vmatpush1.bf16.msra.mxu0 0
        %1900 = vmatprep.subr.bf16.mxu0 0
        %1901 = vmatpush1.bf16.msra.mxu0 0
        %1902 = vmatprep.subr.bf16.mxu0 0
        %1903 = vmatpush1.bf16.msra.mxu0 0
        %1904 = vmatprep.subr.bf16.mxu0 0
        %1905 = vmatpush1.bf16.msra.mxu0 0
        %1906 = vmatprep.subr.bf16.mxu0 0
        %1907 = vmatpush1.bf16.msra.mxu0 0
        %1908 = vmatprep.subr.bf16.mxu0 0
        %1909 = vmatpush1.bf16.msra.mxu0 0
        %1910 = vmatprep.subr.bf16.mxu0 0
        %1911 = vmatpush1.bf16.msra.mxu0 0
        %1912 = vmatprep.subr.bf16.mxu0 0
        %1913 = vmatpush1.bf16.msra.mxu0 0
        %1914 = vmatprep.subr.bf16.mxu0 0
        %1915 = vmatpush1.bf16.msra.mxu0 0
        %1916 = vmatprep.subr.bf16.mxu0 0
        %1917 = vmatpush1.bf16.msra.mxu0 0
        %1918 = vmatprep.subr.bf16.mxu0 0
        %1919 = vmatpush1.bf16.msra.mxu0 0
        %1920 = vmatprep.subr.bf16.mxu0 0
        %1921 = vmatpush1.bf16.msra.mxu0 0
        %1922 = vmatprep.subr.bf16.mxu0 0
        %1923 = vmatpush1.bf16.msra.mxu0 0
        %1924 = vmatprep.subr.bf16.mxu0 0
        %1925 = vmatpush1.bf16.msra.mxu0 0
        %1926 = vmatprep.mubr.bf16.mxu0 0
        %1927 = vmatmul.mubr.bf16.gmra.mrb[0].mxu0 %v1892
        %v1928 = vpop.f32.mrb[0].mxu0
        %v1929 = vadd.f32 0.0, %v1928
        %v1930 = vpop.f32.mrb[0].mxu0
        %v1931 = vpop.f32.mrb[0].mxu0
        %v1932 = vpop.f32.mrb[0].mxu0
        %1933 = vdwg.mxu0
        %1934 = vrot.lane.b32.xlu0 %v1711, 112
        %v1935 = vpop.permute.xlu0 %1934
        %1936 = vrot.lane.b32.xlu0 %v1712, 112
        %v1937 = vpop.permute.xlu0 %1936
        %v1939 = vsel %vm1073, %v1935, 0
        %v1942 = vsel %vm1073, %v1937, 0
        %1944 = vmatprep.subr.bf16.mxu0 0
        %1945 = vmatpush1.bf16.xpose.msra.mxu0 %v1942
        %1946 = vmatprep.subr.bf16.mxu0 0
        %1947 = vmatpush1.bf16.xpose.msra.mxu0 0
        %1948 = vmatprep.subr.bf16.mxu0 0
        %1949 = vmatpush1.bf16.xpose.msra.mxu0 0
        %1950 = vmatprep.subr.bf16.mxu0 0
        %1951 = vmatpush1.bf16.xpose.msra.mxu0 0
        %1952 = vmatprep.subr.bf16.mxu0 0
        %1953 = vmatpush1.bf16.xpose.msra.mxu0 0
        %1954 = vmatprep.subr.bf16.mxu0 0
        %1955 = vmatpush1.bf16.xpose.msra.mxu0 0
        %1956 = vmatprep.subr.bf16.mxu0 0
        %1957 = vmatpush1.bf16.xpose.msra.mxu0 0
        %1958 = vmatprep.subr.bf16.mxu0 0
        %1959 = vmatpush1.bf16.xpose.msra.mxu0 0
        %1960 = vmatprep.subr.bf16.mxu0 0
        %1961 = vmatpush1.bf16.xpose.msra.mxu0 0
        %1962 = vmatprep.subr.bf16.mxu0 0
        %1963 = vmatpush1.bf16.xpose.msra.mxu0 0
        %1964 = vmatprep.subr.bf16.mxu0 0
        %1965 = vmatpush1.bf16.xpose.msra.mxu0 0
        %1966 = vmatprep.subr.bf16.mxu0 0
        %1967 = vmatpush1.bf16.xpose.msra.mxu0 0
        %1968 = vmatprep.subr.bf16.mxu0 0
        %1969 = vmatpush1.bf16.xpose.msra.mxu0 0
        %1970 = vmatprep.subr.bf16.mxu0 0
        %1971 = vmatpush1.bf16.xpose.msra.mxu0 0
        %1972 = vmatprep.subr.bf16.mxu0 0
        %1973 = vmatpush1.bf16.xpose.msra.mxu0 0
        %1974 = vmatprep.subr.bf16.mxu0 0
        %1975 = vmatpush1.bf16.xpose.msra.mxu0 0
        %1976 = vmatprep.mubr.bf16.mxu0 0
        %1977 = vmatmul.mubr.bf16.gmra.mrb[0].mxu0 %v1939
        %v1978 = vpop.f32.mrb[0].mxu0
        %v1979 = vadd.f32 0.0, %v1978
        %v1980 = vpop.f32.mrb[0].mxu0
        %v1981 = vpop.f32.mrb[0].mxu0
        %v1982 = vpop.f32.mrb[0].mxu0
        %1983 = vdwg.mxu0
        %v1984 = vsel %vm1541, %v1979, -inf
        %1985 = vmax.xlane.f32.xlu0 %v1984
        %v1986 = vpop.xlane.xlu0 %1985
        %v1987 = vsub.f32 %v1979, %v1986
        %v1988 = vmul.f32 %v1987, 1.442695
        %v1989 = vpow.pop %v1988
        %v1990 = vsel %vm1541, %v1989, 0.0
        %1991 = vadd.xlane.f32.xlu0 %v1990
        %v1992 = vpop.xlane.xlu0 %1991
        %v1993 = vrcp.pop %v1992
        %v1994 = vmul.f32 1.0, %v1993
        %v1995 = vmul.f32 %v1989, %v1994
        %v1996 = vsel %vm1541, %v1995, 0.0
        %s1997 = scalar_lea.vmem %s916, 16 [#allocation22]
        %1998 = vst [vmem:[%s1997] sm:$0xff] %v1996
        %v1999 = vpack.c.bf16 %v1995, %v1995
        %2000 = vrot.lane.b32.xlu0 %v1712, 80
        %v2001 = vpop.permute.xlu0 %2000
        %v2004 = vsel %vm1541, %v1999, 0
        %2006 = vmatprep.subr.bf16.mxu0 0
        %2007 = vmatpush1.bf16.msra.mxu0 %v2001
        %2008 = vmatprep.subr.bf16.mxu0 0
        %2009 = vmatpush1.bf16.msra.mxu0 0
        %2010 = vmatprep.subr.bf16.mxu0 0
        %2011 = vmatpush1.bf16.msra.mxu0 0
        %2012 = vmatprep.subr.bf16.mxu0 0
        %2013 = vmatpush1.bf16.msra.mxu0 0
        %2014 = vmatprep.subr.bf16.mxu0 0
        %2015 = vmatpush1.bf16.msra.mxu0 0
        %2016 = vmatprep.subr.bf16.mxu0 0
        %2017 = vmatpush1.bf16.msra.mxu0 0
        %2018 = vmatprep.subr.bf16.mxu0 0
        %2019 = vmatpush1.bf16.msra.mxu0 0
        %2020 = vmatprep.subr.bf16.mxu0 0
        %2021 = vmatpush1.bf16.msra.mxu0 0
        %2022 = vmatprep.subr.bf16.mxu0 0
        %2023 = vmatpush1.bf16.msra.mxu0 0
        %2024 = vmatprep.subr.bf16.mxu0 0
        %2025 = vmatpush1.bf16.msra.mxu0 0
        %2026 = vmatprep.subr.bf16.mxu0 0
        %2027 = vmatpush1.bf16.msra.mxu0 0
        %2028 = vmatprep.subr.bf16.mxu0 0
        %2029 = vmatpush1.bf16.msra.mxu0 0
        %2030 = vmatprep.subr.bf16.mxu0 0
        %2031 = vmatpush1.bf16.msra.mxu0 0
        %2032 = vmatprep.subr.bf16.mxu0 0
        %2033 = vmatpush1.bf16.msra.mxu0 0
        %2034 = vmatprep.subr.bf16.mxu0 0
        %2035 = vmatpush1.bf16.msra.mxu0 0
        %2036 = vmatprep.subr.bf16.mxu0 0
        %2037 = vmatpush1.bf16.msra.mxu0 0
        %2038 = vmatprep.mubr.bf16.mxu0 0
        %2039 = vmatmul.mubr.bf16.gmra.mrb[0].mxu0 %v2004
        %v2040 = vpop.f32.mrb[0].mxu0
        %v2041 = vadd.f32 0.0, %v2040
        %v2042 = vpop.f32.mrb[0].mxu0
        %v2043 = vpop.f32.mrb[0].mxu0
        %v2044 = vpop.f32.mrb[0].mxu0
        %2045 = vdwg.mxu0
        %2046 = vrot.lane.b32.xlu0 %v1711, 104
        %v2047 = vpop.permute.xlu0 %2046
        %2048 = vrot.lane.b32.xlu0 %v1712, 104
        %v2049 = vpop.permute.xlu0 %2048
        %v2051 = vsel %vm1073, %v2047, 0
        %v2054 = vsel %vm1073, %v2049, 0
        %2056 = vmatprep.subr.bf16.mxu0 0
        %2057 = vmatpush1.bf16.xpose.msra.mxu0 %v2054
        %2058 = vmatprep.subr.bf16.mxu0 0
        %2059 = vmatpush1.bf16.xpose.msra.mxu0 0
        %2060 = vmatprep.subr.bf16.mxu0 0
        %2061 = vmatpush1.bf16.xpose.msra.mxu0 0
        %2062 = vmatprep.subr.bf16.mxu0 0
        %2063 = vmatpush1.bf16.xpose.msra.mxu0 0
        %2064 = vmatprep.subr.bf16.mxu0 0
        %2065 = vmatpush1.bf16.xpose.msra.mxu0 0
        %2066 = vmatprep.subr.bf16.mxu0 0
        %2067 = vmatpush1.bf16.xpose.msra.mxu0 0
        %2068 = vmatprep.subr.bf16.mxu0 0
        %2069 = vmatpush1.bf16.xpose.msra.mxu0 0
        %2070 = vmatprep.subr.bf16.mxu0 0
        %2071 = vmatpush1.bf16.xpose.msra.mxu0 0
        %2072 = vmatprep.subr.bf16.mxu0 0
        %2073 = vmatpush1.bf16.xpose.msra.mxu0 0
        %2074 = vmatprep.subr.bf16.mxu0 0
        %2075 = vmatpush1.bf16.xpose.msra.mxu0 0
        %2076 = vmatprep.subr.bf16.mxu0 0
        %2077 = vmatpush1.bf16.xpose.msra.mxu0 0
        %2078 = vmatprep.subr.bf16.mxu0 0
        %2079 = vmatpush1.bf16.xpose.msra.mxu0 0
        %2080 = vmatprep.subr.bf16.mxu0 0
        %2081 = vmatpush1.bf16.xpose.msra.mxu0 0
        %2082 = vmatprep.subr.bf16.mxu0 0
        %2083 = vmatpush1.bf16.xpose.msra.mxu0 0
        %2084 = vmatprep.subr.bf16.mxu0 0
        %2085 = vmatpush1.bf16.xpose.msra.mxu0 0
        %2086 = vmatprep.subr.bf16.mxu0 0
        %2087 = vmatpush1.bf16.xpose.msra.mxu0 0
        %2088 = vmatprep.mubr.bf16.mxu0 0
        %2089 = vmatmul.mubr.bf16.gmra.mrb[0].mxu0 %v2051
        %v2090 = vpop.f32.mrb[0].mxu0
        %v2091 = vadd.f32 0.0, %v2090
        %v2092 = vpop.f32.mrb[0].mxu0
        %v2093 = vpop.f32.mrb[0].mxu0
        %v2094 = vpop.f32.mrb[0].mxu0
        %2095 = vdwg.mxu0
        %v2096 = vsel %vm1541, %v2091, -inf
        %2097 = vmax.xlane.f32.xlu0 %v2096
        %v2098 = vpop.xlane.xlu0 %2097
        %v2099 = vsub.f32 %v2091, %v2098
        %v2100 = vmul.f32 %v2099, 1.442695
        %v2101 = vpow.pop %v2100
        %v2102 = vsel %vm1541, %v2101, 0.0
        %2103 = vadd.xlane.f32.xlu0 %v2102
        %v2104 = vpop.xlane.xlu0 %2103
        %v2105 = vrcp.pop %v2104
        %v2106 = vmul.f32 1.0, %v2105
        %v2107 = vmul.f32 %v2101, %v2106
        %v2108 = vsel %vm1541, %v2107, 0.0
        %s2109 = scalar_lea.vmem %s916, 24 [#allocation22]
        %2110 = vst [vmem:[%s2109] sm:$0xff] %v2108
        %v2111 = vpack.c.bf16 %v2107, %v2107
        %2112 = vrot.lane.b32.xlu0 %v1712, 72
        %v2113 = vpop.permute.xlu0 %2112
        %v2116 = vsel %vm1541, %v2111, 0
        %2118 = vmatprep.subr.bf16.mxu0 0
        %2119 = vmatpush1.bf16.msra.mxu0 %v2113
        %2120 = vmatprep.subr.bf16.mxu0 0
        %2121 = vmatpush1.bf16.msra.mxu0 0
        %2122 = vmatprep.subr.bf16.mxu0 0
        %2123 = vmatpush1.bf16.msra.mxu0 0
        %2124 = vmatprep.subr.bf16.mxu0 0
        %2125 = vmatpush1.bf16.msra.mxu0 0
        %2126 = vmatprep.subr.bf16.mxu0 0
        %2127 = vmatpush1.bf16.msra.mxu0 0
        %2128 = vmatprep.subr.bf16.mxu0 0
        %2129 = vmatpush1.bf16.msra.mxu0 0
        %2130 = vmatprep.subr.bf16.mxu0 0
        %2131 = vmatpush1.bf16.msra.mxu0 0
        %2132 = vmatprep.subr.bf16.mxu0 0
        %2133 = vmatpush1.bf16.msra.mxu0 0
        %2134 = vmatprep.subr.bf16.mxu0 0
        %2135 = vmatpush1.bf16.msra.mxu0 0
        %2136 = vmatprep.subr.bf16.mxu0 0
        %2137 = vmatpush1.bf16.msra.mxu0 0
        %2138 = vmatprep.subr.bf16.mxu0 0
        %2139 = vmatpush1.bf16.msra.mxu0 0
        %2140 = vmatprep.subr.bf16.mxu0 0
        %2141 = vmatpush1.bf16.msra.mxu0 0
        %2142 = vmatprep.subr.bf16.mxu0 0
        %2143 = vmatpush1.bf16.msra.mxu0 0
        %2144 = vmatprep.subr.bf16.mxu0 0
        %2145 = vmatpush1.bf16.msra.mxu0 0
        %2146 = vmatprep.subr.bf16.mxu0 0
        %2147 = vmatpush1.bf16.msra.mxu0 0
        %2148 = vmatprep.subr.bf16.mxu0 0
        %2149 = vmatpush1.bf16.msra.mxu0 0
        %2150 = vmatprep.mubr.bf16.mxu0 0
        %2151 = vmatmul.mubr.bf16.gmra.mrb[0].mxu0 %v2116
        %v2152 = vpop.f32.mrb[0].mxu0
        %v2153 = vadd.f32 0.0, %v2152
        %v2154 = vpop.f32.mrb[0].mxu0
        %v2155 = vpop.f32.mrb[0].mxu0
        %v2156 = vpop.f32.mrb[0].mxu0
        %2157 = vdwg.mxu0
        %2159 = vrot.lane.b32.xlu0 %v1929, 8
        %v2160 = vpop.permute.xlu0 %2159
        %2163 = vrot.lane.b32.xlu0 %v2041, 16
        %v2164 = vpop.permute.xlu0 %2163
        %2167 = vrot.lane.b32.xlu0 %v2153, 24
        %v2168 = vpop.permute.xlu0 %2167
        %v2170 = vsel %vm1073, %v1816, %v2160
        %v2171 = vsel %vm1541, %v2170, %v2164
        %v2172 = vsel %vm1543, %v2171, %v2168
        %v2173 = vadd.f32 %v2172, %v1573
        %v2174 = vsel %vm965, %v2173, 0.0
        %2175 = vadd.xlane.f32.xlu0 %v2174
        %v2176 = vpop.xlane.xlu0 %2175
        %v2177 = vmul.f32 %v2176, %v1549
        %v2178 = vsub.f32 %v2173, %v2177
        %v2179 = vmul.f32 %v2178, %v2178
        %v2180 = vsel %vm965, %v2179, 0.0
        %2181 = vadd.xlane.f32.xlu0 %v2180
        %v2182 = vpop.xlane.xlu0 %2181
        %v2183 = vmul.f32 %v2182, %v1549
        %v2184 = vadd.f32 %v2183, 1e-05
        %v2185 = vrsqrt.pop %v2184
        %v2186 = vmul.f32 %v2178, %v2185
        %v2188 = vlaneseq
        %v2189 = vshrl.u32 %v2188, 7
        %v2190 = vsub.s32 0, %v2189
        %v2191 = vrot.slane %v1584, %v2190
        %v2193 = vmul.f32 %v2186, %v2191
        %v2195 = vlaneseq
        %v2196 = vshrl.u32 %v2195, 7
        %v2197 = vsub.s32 0, %v2196
        %v2198 = vrot.slane %v1585, %v2197
        %v2200 = vadd.f32 %v2193, %v2198
        %v2201 = vpack.c.bf16 %v2200, %v2200
        %v2202 = vld [vmem:[%s15] sm:$0xf]
        %v2203 = vld [vmem:[%s15 + $0x4] sm:$0xf]
        %v2204 = vld [vmem:[%s15 + $0x8] sm:$0xf]
        %v2205 = vld [vmem:[%s15 + $0xc] sm:$0xf]
        %v2206 = vld [vmem:[%s16] sm:$0x1]
        %v2208 = vlaneseq
        %v2209 = vshrl.u32 %v2208, 7
        %v2210 = vsub.s32 0, %v2209
        %v2211 = vrot.slane %v2206, %v2210
        %v2217 = vunpack.c.l.b16 %v2202
        %v2218 = vunpack.c.l.b16 %v2203
        %v2219 = vunpack.c.l.b16 %v2204
        %v2220 = vunpack.c.l.b16 %v2205
        %v2221 = vpack.c.b16 %v2218, %v2217
        %v2222 = vpack.c.b16 %v2220, %v2219
        %v2226 = vsel %vm965, %v2201, 0
        %2228 = vmatprep.subr.bf16.mxu0 0
        %2229 = vmatpush1.bf16.msra.mxu0 %v2221
        %2230 = vmatprep.subr.bf16.mxu0 0
        %2231 = vmatpush1.bf16.msra.mxu0 %v2222
        %2232 = vmatprep.subr.bf16.mxu0 0
        %2233 = vmatpush1.bf16.msra.mxu0 0
        %2234 = vmatprep.subr.bf16.mxu0 0
        %2235 = vmatpush1.bf16.msra.mxu0 0
        %2236 = vmatprep.subr.bf16.mxu0 0
        %2237 = vmatpush1.bf16.msra.mxu0 0
        %2238 = vmatprep.subr.bf16.mxu0 0
        %2239 = vmatpush1.bf16.msra.mxu0 0
        %2240 = vmatprep.subr.bf16.mxu0 0
        %2241 = vmatpush1.bf16.msra.mxu0 0
        %2242 = vmatprep.subr.bf16.mxu0 0
        %2243 = vmatpush1.bf16.msra.mxu0 0
        %2244 = vmatprep.subr.bf16.mxu0 0
        %2245 = vmatpush1.bf16.msra.mxu0 0
        %2246 = vmatprep.subr.bf16.mxu0 0
        %2247 = vmatpush1.bf16.msra.mxu0 0
        %2248 = vmatprep.subr.bf16.mxu0 0
        %2249 = vmatpush1.bf16.msra.mxu0 0
        %2250 = vmatprep.subr.bf16.mxu0 0
        %2251 = vmatpush1.bf16.msra.mxu0 0
        %2252 = vmatprep.subr.bf16.mxu0 0
        %2253 = vmatpush1.bf16.msra.mxu0 0
        %2254 = vmatprep.subr.bf16.mxu0 0
        %2255 = vmatpush1.bf16.msra.mxu0 0
        %2256 = vmatprep.subr.bf16.mxu0 0
        %2257 = vmatpush1.bf16.msra.mxu0 0
        %2258 = vmatprep.subr.bf16.mxu0 0
        %2259 = vmatpush1.bf16.msra.mxu0 0
        %2260 = vmatprep.mubr.bf16.mxu0 0
        %2261 = vmatmul.mubr.bf16.gmra.mrb[0].mxu0 %v2226
        %v2262 = vpop.f32.mrb[0].mxu0
        %v2263 = vadd.f32 %v2211, %v2262
        %v2264 = vpop.f32.mrb[0].mxu0
        %v2265 = vpop.f32.mrb[0].mxu0
        %v2266 = vpop.f32.mrb[0].mxu0
        %2267 = vdwg.mxu0
        %v2268 = vmax.f32 %v2263, 0.0
        %v2269 = vpack.c.bf16 %v2268, %v2268
        %v2270 = vld [vmem:[%s17] sm:$0xf]
        %v2271 = vld [vmem:[%s17 + $0x4] sm:$0xf]
        %v2272 = vld [vmem:[%s17 + $0x8] sm:$0xf]
        %v2273 = vld [vmem:[%s17 + $0xc] sm:$0xf]
        %v2274 = vld [vmem:[%s17 + $0x10] sm:$0xf]
        %v2275 = vld [vmem:[%s17 + $0x14] sm:$0xf]
        %v2276 = vld [vmem:[%s17 + $0x18] sm:$0xf]
        %v2277 = vld [vmem:[%s17 + $0x1c] sm:$0xf]
        %v2278 = vld [vmem:[%s18] sm:$0x1]
        %v2280 = vlaneseq
        %v2281 = vshrl.u32 %v2280, 7
        %v2282 = vsub.s32 0, %v2281
        %v2283 = vrot.slane %v2278, %v2282
        %v2293 = vunpack.c.l.b16 %v2270
        %v2294 = vunpack.c.l.b16 %v2271
        %v2295 = vunpack.c.l.b16 %v2272
        %v2296 = vunpack.c.l.b16 %v2273
        %v2297 = vunpack.c.l.b16 %v2274
        %v2298 = vunpack.c.l.b16 %v2275
        %v2299 = vunpack.c.l.b16 %v2276
        %v2300 = vunpack.c.l.b16 %v2277
        %v2301 = vpack.c.b16 %v2294, %v2293
        %v2302 = vpack.c.b16 %v2296, %v2295
        %v2303 = vpack.c.b16 %v2298, %v2297
        %v2304 = vpack.c.b16 %v2300, %v2299
        %vm2309 = vcmask 523264
        %v2311 = vsel %vm2309, %v2269, 0
        %2313 = vmatprep.subr.bf16.mxu0 0
        %2314 = vmatpush1.bf16.msra.mxu0 %v2301
        %2315 = vmatprep.subr.bf16.mxu0 0
        %2316 = vmatpush1.bf16.msra.mxu0 %v2302
        %2317 = vmatprep.subr.bf16.mxu0 0
        %2318 = vmatpush1.bf16.msra.mxu0 %v2303
        %2319 = vmatprep.subr.bf16.mxu0 0
        %2320 = vmatpush1.bf16.msra.mxu0 %v2304
        %2321 = vmatprep.subr.bf16.mxu0 0
        %2322 = vmatpush1.bf16.msra.mxu0 0
        %2323 = vmatprep.subr.bf16.mxu0 0
        %2324 = vmatpush1.bf16.msra.mxu0 0
        %2325 = vmatprep.subr.bf16.mxu0 0
        %2326 = vmatpush1.bf16.msra.mxu0 0
        %2327 = vmatprep.subr.bf16.mxu0 0
        %2328 = vmatpush1.bf16.msra.mxu0 0
        %2329 = vmatprep.subr.bf16.mxu0 0
        %2330 = vmatpush1.bf16.msra.mxu0 0
        %2331 = vmatprep.subr.bf16.mxu0 0
        %2332 = vmatpush1.bf16.msra.mxu0 0
        %2333 = vmatprep.subr.bf16.mxu0 0
        %2334 = vmatpush1.bf16.msra.mxu0 0
        %2335 = vmatprep.subr.bf16.mxu0 0
        %2336 = vmatpush1.bf16.msra.mxu0 0
        %2337 = vmatprep.subr.bf16.mxu0 0
        %2338 = vmatpush1.bf16.msra.mxu0 0
        %2339 = vmatprep.subr.bf16.mxu0 0
        %2340 = vmatpush1.bf16.msra.mxu0 0
        %2341 = vmatprep.subr.bf16.mxu0 0
        %2342 = vmatpush1.bf16.msra.mxu0 0
        %2343 = vmatprep.subr.bf16.mxu0 0
        %2344 = vmatpush1.bf16.msra.mxu0 0
        %2345 = vmatprep.mubr.bf16.mxu0 0
        %2346 = vmatmul.mubr.bf16.gmra.mrb[0].mxu0 %v2311
        %v2347 = vpop.f32.mrb[0].mxu0
        %v2348 = vadd.f32 %v2283, %v2347
        %v2349 = vpop.f32.mrb[0].mxu0
        %v2350 = vpop.f32.mrb[0].mxu0
        %v2351 = vpop.f32.mrb[0].mxu0
        %2352 = vdwg.mxu0
        %v2353 = vadd.f32 %v2348, %v2200
        %v2354 = vld [vmem:[%s19] sm:$0x1]
        %v2355 = vld [vmem:[%s20] sm:$0x1]
        %v2356 = vsel %vm965, %v2353, 0.0
        %2357 = vadd.xlane.f32.xlu0 %v2356
        %v2358 = vpop.xlane.xlu0 %2357
        %v2359 = vmul.f32 %v2358, %v1549
        %v2360 = vsub.f32 %v2353, %v2359
        %v2361 = vmul.f32 %v2360, %v2360
        %v2362 = vsel %vm965, %v2361, 0.0
        %2363 = vadd.xlane.f32.xlu0 %v2362
        %v2364 = vpop.xlane.xlu0 %2363
        %v2365 = vmul.f32 %v2364, %v1549
        %v2366 = vadd.f32 %v2365, 1e-05
        %v2367 = vrsqrt.pop %v2366
        %v2368 = vmul.f32 %v2360, %v2367
        %v2370 = vlaneseq
        %v2371 = vshrl.u32 %v2370, 7
        %v2372 = vsub.s32 0, %v2371
        %v2373 = vrot.slane %v2354, %v2372
        %v2375 = vmul.f32 %v2368, %v2373
        %v2377 = vlaneseq
        %v2378 = vshrl.u32 %v2377, 7
        %v2379 = vsub.s32 0, %v2378
        %v2380 = vrot.slane %v2355, %v2379
        %v2382 = vadd.f32 %v2375, %v2380
        %2383 = vst.msk [vmem:[%s902] sm:$0xff] %vm965, %v2382
        %s2384 = sand.u32 %s529, 1
        %s2385 = scalar_lea.sflag [#allocation4], %s2384
        %s2386 = sand.u32 %s529, 1
        %s2387 = smul.addr %s2386, 8
        %s2388 = scalar_lea.vmem [#allocation19], %s2387
        %s2389 = sand.u32 %s49, 1
        %s2390 = scalar_lea.sflag [#allocation21], %s2389
        %s2391 = sand.u32 %s557, 1
        %s2392 = smul.addr %s2391, 32
        %s2393 = scalar_lea.vmem [#allocation20], %s2392
        %s2394 = sand.u32 %s49, 1
        %s2395 = scalar_lea.sflag [#allocation21], %s2394
        %s2396 = sand.u32 %s585, 1
        %s2397 = smul.addr %s2396, 32
        %s2398 = scalar_lea.vmem [#allocation22], %s2397
        // Predicated region
        $region145: #{tpu_custom_call.1} parent=103 // pred_check
          %p2399 = pneg %p539
        $region146: #{tpu_custom_call.1} parent=103 // pred_check_branch
          %2401 = sbr.rel (%p2399) target = $region148
        $region147: #{tpu_custom_call.1} parent=103 // pred_region
          %s2403 = ssub.s32 128, 128
          %2404 = vsyncadd %s2385, %s2403
          %s2405 = sadd.s32 %s54, %s53
          %s2406 = smul.addr %s2405, 128
          %s2407 = scalar_lea.hbm %s21, %s2406
          %s2409 = sshll.u32 %s2388, 4
          %s2410 = int_to_ptr.vmem [resolvable:$true] %s2409
          %2412 = dma.vmem_to_hbm [thread:$0]  %s2410, 128, %s2407, %s2385
        $region148: #{tpu_custom_call.1} parent=103 // pred_fallthru
          _
        // Predicated region
        $region149: #{tpu_custom_call.1} parent=103 // pred_check
          %p2413 = pneg %p567
        $region150: #{tpu_custom_call.1} parent=103 // pred_check_branch
          %2415 = sbr.rel (%p2413) target = $region152
        $region151: #{tpu_custom_call.1} parent=103 // pred_region
          %s2417 = ssub.s32 512, 512
          %2418 = vsyncadd %s2390, %s2417
          %s2419 = smul.addr %s53, 4
          %s2420 = sadd.s32 %s54, %s2419
          %s2421 = smul.addr %s2420, 128
          %s2422 = scalar_lea.hbm %s22, %s2421
          %s2423 = sshll.u32 %s2393, 4
          %s2424 = int_to_ptr.vmem [resolvable:$true] %s2423
          %2429 = dma.vmem_to_hbm [thread:$0]  %s2424, 512, %s2422, %s2390, 128, 128, 8
        $region152: #{tpu_custom_call.1} parent=103 // pred_fallthru
          _
        // Predicated region
        $region153: #{tpu_custom_call.1} parent=103 // pred_check
          %p2430 = pneg %p595
        $region154: #{tpu_custom_call.1} parent=103 // pred_check_branch
          %2432 = sbr.rel (%p2430) target = $region156
        $region155: #{tpu_custom_call.1} parent=103 // pred_region
          %s2434 = ssub.s32 512, 512
          %2435 = vsyncadd %s2395, %s2434
          %s2436 = smul.addr %s53, 4
          %s2437 = sadd.s32 %s54, %s2436
          %s2438 = smul.addr %s2437, 128
          %s2439 = scalar_lea.hbm %s23, %s2438
          %s2440 = sshll.u32 %s2398, 4
          %s2441 = int_to_ptr.vmem [resolvable:$true] %s2440
          %2446 = dma.vmem_to_hbm [thread:$0]  %s2441, 512, %s2439, %s2395, 128, 128, 8
        $region156: #{tpu_custom_call.1} parent=103 // pred_fallthru
          _
      $region104: #{tpu_custom_call.1} parent=5 // pred_fallthru
        _
      %p2447 = scmp.le.s32.totalorder 2, %s44
      // Predicated region
      $region157: #{tpu_custom_call.1} parent=5 // pred_check
        %p2448 = pneg %p2447
      $region158: #{tpu_custom_call.1} parent=5 // pred_check_branch
        %2450 = sbr.rel (%p2448) target = $region160
      $region159: #{tpu_custom_call.1} parent=5 // pred_region
        %s2451 = ssub.s32 %s44, 2
        // Predicated region
        $region161: #{tpu_custom_call.1} parent=159 // pred_check
          %p2452 = pneg %p545
        $region162: #{tpu_custom_call.1} parent=159 // pred_check_branch
          %2454 = sbr.rel (%p2452) target = $region164
        $region163: #{tpu_custom_call.1} parent=159 // pred_region
          %s2455 = sand.u32 %s530, 1
          %s2456 = scalar_lea.sflag [#allocation4], %s2455
          %s2457 = sand.u32 %s530, 1
          %s2458 = smul.addr %s2457, 8
          %s2459 = scalar_lea.vmem [#allocation19], %s2458
          %2460 = dma.done %s2456, 128
        $region164: #{tpu_custom_call.1} parent=159 // pred_fallthru
          _
        // Predicated region
        $region165: #{tpu_custom_call.1} parent=159 // pred_check
          %p2461 = pneg %p573
        $region166: #{tpu_custom_call.1} parent=159 // pred_check_branch
          %2463 = sbr.rel (%p2461) target = $region168
        $region167: #{tpu_custom_call.1} parent=159 // pred_region
          %s2464 = sand.u32 %s50, 1
          %s2465 = scalar_lea.sflag [#allocation21], %s2464
          %s2466 = sand.u32 %s558, 1
          %s2467 = smul.addr %s2466, 32
          %s2468 = scalar_lea.vmem [#allocation20], %s2467
          %2469 = dma.done %s2465, 512
        $region168: #{tpu_custom_call.1} parent=159 // pred_fallthru
          _
        // Predicated region
        $region169: #{tpu_custom_call.1} parent=159 // pred_check
          %p2470 = pneg %p601
        $region170: #{tpu_custom_call.1} parent=159 // pred_check_branch
          %2472 = sbr.rel (%p2470) target = $region172
        $region171: #{tpu_custom_call.1} parent=159 // pred_region
          %s2473 = sand.u32 %s50, 1
          %s2474 = scalar_lea.sflag [#allocation21], %s2473
          %s2475 = sand.u32 %s586, 1
          %s2476 = smul.addr %s2475, 32
          %s2477 = scalar_lea.vmem [#allocation22], %s2476
          %2478 = dma.done %s2474, 512
        $region172: #{tpu_custom_call.1} parent=159 // pred_fallthru
          _
      $region160: #{tpu_custom_call.1} parent=5 // pred_fallthru
        _
    $region6: #{tpu_custom_call.1} parent=1 // loop_footer
      %s48 = sadd.s32 1, %s44
    $region7: #{tpu_custom_call.1} parent=1 // loop_footer_branch
      %43 = sbr.rel target = $region3
    $region8: #{tpu_custom_call.1} parent=1 // loop_exit
      _
    %2479 = vsyncpa [#allocation3], 1
    %s2480 = scalar_lea.sflag [#allocation3], 1
    %2481 = vsyncpa %s2480, 1
    %2482 = vsyncpa [#allocation6], 1
    %2483 = vsyncpa [#allocation9], 1
    %2484 = vsyncpa [#allocation12], 1
    %2485 = vsyncpa [#allocation15], 1
    %2486 = vsyncpa [#allocation18], 1
    %2487 = vsyncpa [#allocation4], 1
    %s2488 = scalar_lea.sflag [#allocation4], 1
    %2489 = vsyncpa %s2488, 1
    %2490 = vsyncpa [#allocation21], 1
    %s2491 = scalar_lea.sflag [#allocation21], 1
    %2492 = vsyncpa %s2491, 1

</llo_original>
